<compile_context>
chip_gen: v6e
topology: v6e:2x2x1
jax: 0.10.0
libtpu: 0.0.40
codegen_flags: <defaults>
</compile_context>

<pallas_src>
import functools

import jax
import jax.numpy as jnp
from jax.experimental import pallas as pl
from jax.experimental.pallas import tpu as pltpu

# Sublane padding used for the in-VMEM temporal zero-pad (keeps the payload
# store 8-row aligned; taps read at offsets PAD-1 / PAD / PAD+1).
PAD = 8


def _group_norm_relu(y, gamma, beta, *, num_groups, eps):
    """GroupNorm(num_groups) + ReLU over y: (T, C) f32, per-sample stats."""
    T, C = y.shape
    gs = C // num_groups

    # Per-channel sum / sum-of-squares via ones-row MXU matmuls (keeps the
    # cross-sublane reduction off the XLU).
    ones_row = jnp.ones((1, T), jnp.float32)
    cs = jnp.dot(ones_row, y, preferred_element_type=jnp.float32)        # (1, C)
    css = jnp.dot(ones_row, y * y, preferred_element_type=jnp.float32)   # (1, C)

    # 0/1 group-indicator matrices built from iota (no transpose, no int div).
    c_idx = jax.lax.broadcasted_iota(jnp.int32, (C, num_groups), 0)
    g_idx = jax.lax.broadcasted_iota(jnp.int32, (C, num_groups), 1)
    G = ((c_idx >= g_idx * gs) & (c_idx < (g_idx + 1) * gs)).astype(jnp.float32)

    c_idx_t = jax.lax.broadcasted_iota(jnp.int32, (num_groups, C), 1)
    g_idx_t = jax.lax.broadcasted_iota(jnp.int32, (num_groups, C), 0)
    GT = ((c_idx_t >= g_idx_t * gs)
          & (c_idx_t < (g_idx_t + 1) * gs)).astype(jnp.float32)

    inv_n = 1.0 / float(T * gs)
    gmean = jnp.dot(cs, G, preferred_element_type=jnp.float32) * inv_n   # (1, G)
    gmsq = jnp.dot(css, G, preferred_element_type=jnp.float32) * inv_n   # (1, G)
    gvar = jnp.maximum(gmsq - gmean * gmean, 0.0)   # clamp f32 cancellation
    ginv = jax.lax.rsqrt(gvar + eps)

    mean_c = jnp.dot(gmean, GT, preferred_element_type=jnp.float32)      # (1, C)
    inv_c = jnp.dot(ginv, GT, preferred_element_type=jnp.float32)        # (1, C)

    out = (y - mean_c) * inv_c * gamma + beta
    return jnp.maximum(out, 0.0)                                         # ReLU


def _conv3_im2col(pad_ref, h, w_ref, b_row, T):
    """Conv1d(k=3, s=1, p=1) of h: (T, C) via VMEM zero-pad + one MXU matmul.

    pad_ref: (T + 2*PAD, C) f32 VMEM scratch
    w_ref  : (3*C, Cout) bf16, tap-major (rows [k*C:(k+1)*C] multiply x[t-1+k])
    b_row  : (1, Cout) f32
    """
    C = h.shape[1]
    zeros8 = jnp.zeros((PAD, C), pad_ref.dtype)
    pad_ref[pl.ds(0, PAD), :] = zeros8             # left zero band
    pad_ref[pl.ds(T + PAD, PAD), :] = zeros8       # right zero band
    pad_ref[pl.ds(PAD, T), :] = h                  # payload (8-aligned store)

    # im2col: [x[t-1], x[t], x[t+1]] concatenated along lanes -> (T, 3C).
    x_unf = jnp.concatenate(
        [pad_ref[pl.ds(PAD - 1, T), :],            # x[t-1]
         h,                                        # x[t]
         pad_ref[pl.ds(PAD + 1, T), :]],           # x[t+1]
        axis=1)

    y = jnp.dot(x_unf.astype(jnp.bfloat16), w_ref[...],
                preferred_element_type=jnp.float32)
    return y + b_row


def _embedding_kernel(x_ref,
                      w1_ref, b1_ref, ga1_ref, be1_ref,
                      w2_ref, b2_ref, ga2_ref, be2_ref,
                      w3_ref, b3_ref, ga3_ref, be3_ref,
                      o_ref,
                      pad2_ref, pad3_ref,
                      *, num_groups, eps):
    """Fused 3x(Conv1d(k=3,p=1) + GroupNorm(32) + ReLU) for one batch element.

    x_ref : (1, T, 3*Cin0)  first-layer input already im2col'ed in the wrapper
    wN_ref: (3*CinN, CoutN) bf16 tap-major conv weights
    bN/gaN/beN: (1, CoutN)  f32 bias / GroupNorm scale / shift
    o_ref : (1, T, 512)
    padN_ref: (T+2*PAD, CinN) f32 scratch for in-VMEM temporal zero padding
    """
    T = o_ref.shape[1]

    # ---- Layer 1: Cin is tiny (4), single shallow-K matmul on pre-unfolded x.
    x0 = x_ref[0].astype(jnp.bfloat16)                                   # (T, 3*Cin0)
    y1 = jnp.dot(x0, w1_ref[...], preferred_element_type=jnp.float32) + b1_ref[...]
    h1 = _group_norm_relu(y1, ga1_ref[...], be1_ref[...],
                          num_groups=num_groups, eps=eps)                # (T, 128)

    # ---- Layer 2: 128 -> 256, K = 384 im2col matmul.
    y2 = _conv3_im2col(pad2_ref, h1, w2_ref, b2_ref[...], T)
    h2 = _group_norm_relu(y2, ga2_ref[...], be2_ref[...],
                          num_groups=num_groups, eps=eps)                # (T, 256)

    # ---- Layer 3: 256 -> 512, K = 768 im2col matmul.
    y3 = _conv3_im2col(pad3_ref, h2, w3_ref, b3_ref[...], T)
    h3 = _group_norm_relu(y3, ga3_ref[...], be3_ref[...],
                          num_groups=num_groups, eps=eps)                # (T, 512)

    o_ref[0] = h3.astype(o_ref.dtype)


def embedding_forward(time_ncw, params, *, num_groups=32, eps=1e-5):
    """Forward pass matching Embedding.forward.

    time_ncw: (B, C_in, T) float32 (PyTorch NCW convention)
    returns : (B, 512, T) float32
    """
    x = jnp.transpose(time_ncw, (0, 2, 1))               # NCW -> NTC: (B, T, Cin)
    B, T, Cin = x.shape
    C1, C2, C3 = 128, 256, 512

    (w1, b1, g1, be1), (w2, b2, g2, be2), (w3, b3, g3, be3) = params
    assert w1.shape == (3, Cin, C1) and w2.shape == (3, C1, C2) and w3.shape == (3, C2, C3)

    # Wrapper-side im2col for the lane-sparse first layer (Cin=4): (B, T, 3*Cin).
    zero = jnp.zeros((B, 1, Cin), x.dtype)
    x_prev = jnp.concatenate([zero, x[:, :-1, :]], axis=1)   # x[t-1]
    x_next = jnp.concatenate([x[:, 1:, :], zero], axis=1)    # x[t+1]
    x_unf = jnp.concatenate([x_prev, x, x_next], axis=2)     # (B, T, 3*Cin)

    # Tap-major reshape (K, Cin, Cout) -> (3*Cin, Cout), bf16 for the MXU.
    w1r = w1.reshape(3 * Cin, C1).astype(jnp.bfloat16)
    w2r = w2.reshape(3 * C1, C2).astype(jnp.bfloat16)
    w3r = w3.reshape(3 * C2, C3).astype(jnp.bfloat16)

    def row(v):
        return v.reshape(1, -1).astype(jnp.float32)

    kernel = functools.partial(_embedding_kernel, num_groups=num_groups, eps=eps)

    # TODO(synk): for very long T (or B < #TensorCores on v7x), add a T-tile
    # grid axis with a two-pass GroupNorm (accumulate sum/sumsq, then normalize)
    # to restore pipelining and dual-core utilization.
    out = pl.pallas_call(
        kernel,
        out_shape=jax.ShapeDtypeStruct((B, T, C3), jnp.float32),
        grid_spec=pltpu.PrefetchScalarGridSpec(
            num_scalar_prefetch=0,
            grid=(B,),
            in_specs=[
                pl.BlockSpec((1, T, 3 * Cin), lambda b: (b, 0, 0)),
                # layer 1 params
                pl.BlockSpec((3 * Cin, C1), lambda b: (0, 0)),
                pl.BlockSpec((1, C1), lambda b: (0, 0)),
                pl.BlockSpec((1, C1), lambda b: (0, 0)),
                pl.BlockSpec((1, C1), lambda b: (0, 0)),
                # layer 2 params
                pl.BlockSpec((3 * C1, C2), lambda b: (0, 0)),
                pl.BlockSpec((1, C2), lambda b: (0, 0)),
                pl.BlockSpec((1, C2), lambda b: (0, 0)),
                pl.BlockSpec((1, C2), lambda b: (0, 0)),
                # layer 3 params
                pl.BlockSpec((3 * C2, C3), lambda b: (0, 0)),
                pl.BlockSpec((1, C3), lambda b: (0, 0)),
                pl.BlockSpec((1, C3), lambda b: (0, 0)),
                pl.BlockSpec((1, C3), lambda b: (0, 0)),
            ],
            out_specs=pl.BlockSpec((1, T, C3), lambda b: (b, 0, 0)),
            scratch_shapes=[
                pltpu.VMEM((T + 2 * PAD, C1), jnp.float32),   # zero-pad buf, layer 2
                pltpu.VMEM((T + 2 * PAD, C2), jnp.float32),   # zero-pad buf, layer 3
            ],
        ),
        compiler_params=pltpu.CompilerParams(
            dimension_semantics=("parallel",),
            # Explicit limit: above v5e/v6e scoped defaults (16/32 MiB), with
            # headroom under v7x's 64 MiB physical VMEM.
            vmem_limit_bytes=48 * 1024 * 1024,
        ),
    )(x_unf,
      w1r, row(b1), row(g1), row(be1),
      w2r, row(b2), row(g2), row(be2),
      w3r, row(b3), row(g3), row(be3))

    return jnp.transpose(out, (0, 2, 1))                  # NTC -> NCW


def init_embedding_params(key, in_channels):
    """Deterministic synthetic params matching the PyTorch module's shapes.

    Conv weights stored as (K=3, Cin, Cout); real PyTorch weights (Cout, Cin, K)
    map here via .permute(2, 1, 0) (cross-correlation, no kernel flip).
    GroupNorm affine params use PyTorch defaults (ones / zeros).
    """
    channels = [in_channels, 128, 256, 512]
    params = []
    for i in range(3):
        cin, cout = channels[i], channels[i + 1]
        key, kw, kb = jax.random.split(key, 3)
        fan_in = cin * 3
        scale = 1.0 / jnp.sqrt(fan_in)
        w = jax.random.uniform(kw, (3, cin, cout), jnp.float32, -scale, scale)
        b = jax.random.uniform(kb, (cout,), jnp.float32, -scale, scale)
        gamma = jnp.ones((cout,), jnp.float32)
        beta = jnp.zeros((cout,), jnp.float32)
        params.append((w, b, gamma, beta))
    return params


if __name__ == "__main__":
    key = jax.random.PRNGKey(0)
    key, kin = jax.random.split(key)

    B, C_IN, T = 2, 4, 16
    time = jax.random.normal(kin, (B, C_IN, T), dtype=jnp.float32)

    params = init_embedding_params(key, C_IN)

    out = embedding_forward(time, params)
    out = jax.block_until_ready(out)

    assert out.shape == (B, 512, T), out.shape
    assert out.dtype == jnp.float32
    assert bool(jnp.all(jnp.isfinite(out)))
    assert bool(jnp.all(out >= 0.0))            # ReLU output
    print("KERNEL_OK")
</pallas_src>

<mosaic_0001>
module attributes {stable_mosaic.version = 11 : i64} {
  func.func @_embedding_kernel(%arg0: i32, %arg1: memref<1x16x12xf32, #tpu.memory_space<vmem>>, %arg2: memref<12x128xbf16, #tpu.memory_space<vmem>>, %arg3: memref<1x128xf32, #tpu.memory_space<vmem>>, %arg4: memref<1x128xf32, #tpu.memory_space<vmem>>, %arg5: memref<1x128xf32, #tpu.memory_space<vmem>>, %arg6: memref<384x256xbf16, #tpu.memory_space<vmem>>, %arg7: memref<1x256xf32, #tpu.memory_space<vmem>>, %arg8: memref<1x256xf32, #tpu.memory_space<vmem>>, %arg9: memref<1x256xf32, #tpu.memory_space<vmem>>, %arg10: memref<768x512xbf16, #tpu.memory_space<vmem>>, %arg11: memref<1x512xf32, #tpu.memory_space<vmem>>, %arg12: memref<1x512xf32, #tpu.memory_space<vmem>>, %arg13: memref<1x512xf32, #tpu.memory_space<vmem>>, %arg14: memref<1x16x512xf32, #tpu.memory_space<vmem>>, %arg15: memref<32x128xf32, #tpu.memory_space<vmem>>, %arg16: memref<32x256xf32, #tpu.memory_space<vmem>>) attributes {dimension_semantics = [#tpu.dimension_semantics<parallel>], iteration_bounds = array<i64: 2>, scalar_prefetch = 0 : i64, scratch_operands = 2 : i64, tpu.core_type = #tpu.core_type<tc>, window_params = [{transform_indices = @transform_0, window_bounds = array<i64: 1, 16, 12>}, {pipeline_mode = #tpu.pipeline_mode<synchronous>, transform_indices = @transform_1, window_bounds = array<i64: 12, 128>}, {pipeline_mode = #tpu.pipeline_mode<synchronous>, transform_indices = @transform_2, window_bounds = array<i64: 1, 128>}, {pipeline_mode = #tpu.pipeline_mode<synchronous>, transform_indices = @transform_3, window_bounds = array<i64: 1, 128>}, {pipeline_mode = #tpu.pipeline_mode<synchronous>, transform_indices = @transform_4, window_bounds = array<i64: 1, 128>}, {pipeline_mode = #tpu.pipeline_mode<synchronous>, transform_indices = @transform_5, window_bounds = array<i64: 384, 256>}, {pipeline_mode = #tpu.pipeline_mode<synchronous>, transform_indices = @transform_6, window_bounds = array<i64: 1, 256>}, {pipeline_mode = #tpu.pipeline_mode<synchronous>, transform_indices = @transform_7, window_bounds = array<i64: 1, 256>}, {pipeline_mode = #tpu.pipeline_mode<synchronous>, transform_indices = @transform_8, window_bounds = array<i64: 1, 256>}, {pipeline_mode = #tpu.pipeline_mode<synchronous>, transform_indices = @transform_9, window_bounds = array<i64: 768, 512>}, {pipeline_mode = #tpu.pipeline_mode<synchronous>, transform_indices = @transform_10, window_bounds = array<i64: 1, 512>}, {pipeline_mode = #tpu.pipeline_mode<synchronous>, transform_indices = @transform_11, window_bounds = array<i64: 1, 512>}, {pipeline_mode = #tpu.pipeline_mode<synchronous>, transform_indices = @transform_12, window_bounds = array<i64: 1, 512>}, {transform_indices = @transform_13, window_bounds = array<i64: 1, 16, 512>}]} {
    %c0 = arith.constant 0 : index
    %c0_0 = arith.constant 0 : index
    %c0_1 = arith.constant 0 : index
    %0 = vector.load %arg1[%c0, %c0_0, %c0_1] : memref<1x16x12xf32, #tpu.memory_space<vmem>>, vector<1x16x12xf32>
    %1 = vector.shape_cast %0 : vector<1x16x12xf32> to vector<16x12xf32>
    %2 = arith.truncf %1 : vector<16x12xf32> to vector<16x12xbf16>
    %c0_2 = arith.constant 0 : index
    %c0_3 = arith.constant 0 : index
    %3 = vector.load %arg2[%c0_2, %c0_3] : memref<12x128xbf16, #tpu.memory_space<vmem>>, vector<12x128xbf16>
    %cst = arith.constant dense<0.000000e+00> : vector<16x128xf32>
    %4 = tpu.matmul %2, %3, %cst {dimension_numbers = #tpu.dot_dimension_numbers<[1], [0], [0], [1], [0, 0, 1, 1], [], []>} : vector<16x12xbf16>, vector<12x128xbf16>, vector<16x128xf32> -> vector<16x128xf32>
    %c0_4 = arith.constant 0 : index
    %c0_5 = arith.constant 0 : index
    %5 = vector.load %arg3[%c0_4, %c0_5] : memref<1x128xf32, #tpu.memory_space<vmem>>, vector<1x128xf32>
    %6 = vector.broadcast %5 : vector<1x128xf32> to vector<16x128xf32>
    %7 = arith.addf %4, %6 : vector<16x128xf32>
    %c0_6 = arith.constant 0 : index
    %c0_7 = arith.constant 0 : index
    %8 = vector.load %arg4[%c0_6, %c0_7] : memref<1x128xf32, #tpu.memory_space<vmem>>, vector<1x128xf32>
    %c0_8 = arith.constant 0 : index
    %c0_9 = arith.constant 0 : index
    %9 = vector.load %arg5[%c0_8, %c0_9] : memref<1x128xf32, #tpu.memory_space<vmem>>, vector<1x128xf32>
    %cst_10 = arith.constant 1.000000e+00 : f32
    %10 = vector.broadcast %cst_10 : f32 to vector<1x16xf32>
    %cst_11 = arith.constant dense<0.000000e+00> : vector<1x128xf32>
    %11 = tpu.matmul %10, %7, %cst_11 {dimension_numbers = #tpu.dot_dimension_numbers<[1], [0], [0], [1], [0, 0, 1, 1], [], []>} : vector<1x16xf32>, vector<16x128xf32>, vector<1x128xf32> -> vector<1x128xf32>
    %12 = arith.mulf %7, %7 : vector<16x128xf32>
    %cst_12 = arith.constant dense<0.000000e+00> : vector<1x128xf32>
    %13 = tpu.matmul %10, %12, %cst_12 {dimension_numbers = #tpu.dot_dimension_numbers<[1], [0], [0], [1], [0, 0, 1, 1], [], []>} : vector<1x16xf32>, vector<16x128xf32>, vector<1x128xf32> -> vector<1x128xf32>
    %14 = tpu.iota {dimensions = array<i32: 0>} : vector<128x32xi32>
    %15 = tpu.iota {dimensions = array<i32: 1>} : vector<128x32xi32>
    %c4_i32 = arith.constant 4 : i32
    %16 = vector.broadcast %c4_i32 : i32 to vector<128x32xi32>
    %17 = arith.muli %15, %16 : vector<128x32xi32>
    %18 = arith.cmpi sge, %14, %17 : vector<128x32xi32>
    %c1_i32 = arith.constant 1 : i32
    %19 = vector.broadcast %c1_i32 : i32 to vector<128x32xi32>
    %20 = arith.addi %15, %19 : vector<128x32xi32>
    %c4_i32_13 = arith.constant 4 : i32
    %21 = vector.broadcast %c4_i32_13 : i32 to vector<128x32xi32>
    %22 = arith.muli %20, %21 : vector<128x32xi32>
    %23 = arith.cmpi slt, %14, %22 : vector<128x32xi32>
    %24 = arith.andi %18, %23 : vector<128x32xi1>
    %25 = arith.extui %24 : vector<128x32xi1> to vector<128x32xi32>
    %26 = arith.sitofp %25 : vector<128x32xi32> to vector<128x32xf32>
    %27 = tpu.iota {dimensions = array<i32: 1>} : vector<32x128xi32>
    %28 = tpu.iota {dimensions = array<i32: 0>} : vector<32x128xi32>
    %c4_i32_14 = arith.constant 4 : i32
    %29 = vector.broadcast %c4_i32_14 : i32 to vector<32x128xi32>
    %30 = arith.muli %28, %29 : vector<32x128xi32>
    %31 = arith.cmpi sge, %27, %30 : vector<32x128xi32>
    %c1_i32_15 = arith.constant 1 : i32
    %32 = vector.broadcast %c1_i32_15 : i32 to vector<32x128xi32>
    %33 = arith.addi %28, %32 : vector<32x128xi32>
    %c4_i32_16 = arith.constant 4 : i32
    %34 = vector.broadcast %c4_i32_16 : i32 to vector<32x128xi32>
    %35 = arith.muli %33, %34 : vector<32x128xi32>
    %36 = arith.cmpi slt, %27, %35 : vector<32x128xi32>
    %37 = arith.andi %31, %36 : vector<32x128xi1>
    %38 = arith.extui %37 : vector<32x128xi1> to vector<32x128xi32>
    %39 = arith.sitofp %38 : vector<32x128xi32> to vector<32x128xf32>
    %cst_17 = arith.constant dense<0.000000e+00> : vector<1x32xf32>
    %40 = tpu.matmul %11, %26, %cst_17 {dimension_numbers = #tpu.dot_dimension_numbers<[1], [0], [0], [1], [0, 0, 1, 1], [], []>} : vector<1x128xf32>, vector<128x32xf32>, vector<1x32xf32> -> vector<1x32xf32>
    %cst_18 = arith.constant 1.562500e-02 : f32
    %41 = vector.broadcast %cst_18 : f32 to vector<1x32xf32>
    %42 = arith.mulf %40, %41 : vector<1x32xf32>
    %cst_19 = arith.constant dense<0.000000e+00> : vector<1x32xf32>
    %43 = tpu.matmul %13, %26, %cst_19 {dimension_numbers = #tpu.dot_dimension_numbers<[1], [0], [0], [1], [0, 0, 1, 1], [], []>} : vector<1x128xf32>, vector<128x32xf32>, vector<1x32xf32> -> vector<1x32xf32>
    %cst_20 = arith.constant 1.562500e-02 : f32
    %44 = vector.broadcast %cst_20 : f32 to vector<1x32xf32>
    %45 = arith.mulf %43, %44 : vector<1x32xf32>
    %46 = arith.mulf %42, %42 : vector<1x32xf32>
    %47 = arith.subf %45, %46 : vector<1x32xf32>
    %cst_21 = arith.constant 0.000000e+00 : f32
    %48 = vector.broadcast %cst_21 : f32 to vector<1x32xf32>
    %49 = arith.maximumf %47, %48 : vector<1x32xf32>
    %cst_22 = arith.constant 9.99999974E-6 : f32
    %50 = vector.broadcast %cst_22 : f32 to vector<1x32xf32>
    %51 = arith.addf %49, %50 : vector<1x32xf32>
    %52 = math.rsqrt %51 : vector<1x32xf32>
    %cst_23 = arith.constant dense<0.000000e+00> : vector<1x128xf32>
    %53 = tpu.matmul %42, %39, %cst_23 {dimension_numbers = #tpu.dot_dimension_numbers<[1], [0], [0], [1], [0, 0, 1, 1], [], []>} : vector<1x32xf32>, vector<32x128xf32>, vector<1x128xf32> -> vector<1x128xf32>
    %cst_24 = arith.constant dense<0.000000e+00> : vector<1x128xf32>
    %54 = tpu.matmul %52, %39, %cst_24 {dimension_numbers = #tpu.dot_dimension_numbers<[1], [0], [0], [1], [0, 0, 1, 1], [], []>} : vector<1x32xf32>, vector<32x128xf32>, vector<1x128xf32> -> vector<1x128xf32>
    %55 = vector.broadcast %53 : vector<1x128xf32> to vector<16x128xf32>
    %56 = arith.subf %7, %55 : vector<16x128xf32>
    %57 = vector.broadcast %54 : vector<1x128xf32> to vector<16x128xf32>
    %58 = arith.mulf %56, %57 : vector<16x128xf32>
    %59 = vector.broadcast %8 : vector<1x128xf32> to vector<16x128xf32>
    %60 = arith.mulf %58, %59 : vector<16x128xf32>
    %61 = vector.broadcast %9 : vector<1x128xf32> to vector<16x128xf32>
    %62 = arith.addf %60, %61 : vector<16x128xf32>
    %cst_25 = arith.constant 0.000000e+00 : f32
    %63 = vector.broadcast %cst_25 : f32 to vector<16x128xf32>
    %64 = arith.maximumf %62, %63 : vector<16x128xf32>
    %c0_26 = arith.constant 0 : index
    %c0_27 = arith.constant 0 : index
    %65 = vector.load %arg7[%c0_26, %c0_27] : memref<1x256xf32, #tpu.memory_space<vmem>>, vector<1x256xf32>
    %cst_28 = arith.constant 0.000000e+00 : f32
    %66 = vector.broadcast %cst_28 : f32 to vector<8x128xf32>
    %c0_29 = arith.constant 0 : index
    %c0_30 = arith.constant 0 : index
    %67 = vector.load %arg15[%c0_29, %c0_30] : memref<32x128xf32, #tpu.memory_space<vmem>>, vector<8x128xf32>
    tpu.vector_store %arg15[%c0_29, %c0_30], %66 {strides = array<i32>} : memref<32x128xf32, #tpu.memory_space<vmem>>, vector<8x128xf32>,
    %c24 = arith.constant 24 : index
    %c0_31 = arith.constant 0 : index
    %68 = vector.load %arg15[%c24, %c0_31] : memref<32x128xf32, #tpu.memory_space<vmem>>, vector<8x128xf32>
    tpu.vector_store %arg15[%c24, %c0_31], %66 {strides = array<i32>} : memref<32x128xf32, #tpu.memory_space<vmem>>, vector<8x128xf32>,
    %c8 = arith.constant 8 : index
    %c0_32 = arith.constant 0 : index
    %69 = vector.load %arg15[%c8, %c0_32] : memref<32x128xf32, #tpu.memory_space<vmem>>, vector<16x128xf32>
    tpu.vector_store %arg15[%c8, %c0_32], %64 {strides = array<i32>} : memref<32x128xf32, #tpu.memory_space<vmem>>, vector<16x128xf32>,
    %c7 = arith.constant 7 : index
    %c0_33 = arith.constant 0 : index
    %70 = vector.load %arg15[%c7, %c0_33] : memref<32x128xf32, #tpu.memory_space<vmem>>, vector<16x128xf32>
    %c9 = arith.constant 9 : index
    %c0_34 = arith.constant 0 : index
    %71 = vector.load %arg15[%c9, %c0_34] : memref<32x128xf32, #tpu.memory_space<vmem>>, vector<16x128xf32>
    %72 = tpu.concatenate %70, %64, %71 in 1 : vector<16x128xf32>, vector<16x128xf32>, vector<16x128xf32> -> vector<16x384xf32>
    %73 = arith.truncf %72 : vector<16x384xf32> to vector<16x384xbf16>
    %c0_35 = arith.constant 0 : index
    %c0_36 = arith.constant 0 : index
    %74 = vector.load %arg6[%c0_35, %c0_36] : memref<384x256xbf16, #tpu.memory_space<vmem>>, vector<384x256xbf16>
    %cst_37 = arith.constant dense<0.000000e+00> : vector<16x256xf32>
    %75 = tpu.matmul %73, %74, %cst_37 {dimension_numbers = #tpu.dot_dimension_numbers<[1], [0], [0], [1], [0, 0, 1, 1], [], []>} : vector<16x384xbf16>, vector<384x256xbf16>, vector<16x256xf32> -> vector<16x256xf32>
    %76 = vector.broadcast %65 : vector<1x256xf32> to vector<16x256xf32>
    %77 = arith.addf %75, %76 : vector<16x256xf32>
    %c0_38 = arith.constant 0 : index
    %c0_39 = arith.constant 0 : index
    %78 = vector.load %arg8[%c0_38, %c0_39] : memref<1x256xf32, #tpu.memory_space<vmem>>, vector<1x256xf32>
    %c0_40 = arith.constant 0 : index
    %c0_41 = arith.constant 0 : index
    %79 = vector.load %arg9[%c0_40, %c0_41] : memref<1x256xf32, #tpu.memory_space<vmem>>, vector<1x256xf32>
    %cst_42 = arith.constant 1.000000e+00 : f32
    %80 = vector.broadcast %cst_42 : f32 to vector<1x16xf32>
    %cst_43 = arith.constant dense<0.000000e+00> : vector<1x256xf32>
    %81 = tpu.matmul %80, %77, %cst_43 {dimension_numbers = #tpu.dot_dimension_numbers<[1], [0], [0], [1], [0, 0, 1, 1], [], []>} : vector<1x16xf32>, vector<16x256xf32>, vector<1x256xf32> -> vector<1x256xf32>
    %82 = arith.mulf %77, %77 : vector<16x256xf32>
    %cst_44 = arith.constant dense<0.000000e+00> : vector<1x256xf32>
    %83 = tpu.matmul %80, %82, %cst_44 {dimension_numbers = #tpu.dot_dimension_numbers<[1], [0], [0], [1], [0, 0, 1, 1], [], []>} : vector<1x16xf32>, vector<16x256xf32>, vector<1x256xf32> -> vector<1x256xf32>
    %84 = tpu.iota {dimensions = array<i32: 0>} : vector<256x32xi32>
    %85 = tpu.iota {dimensions = array<i32: 1>} : vector<256x32xi32>
    %c8_i32 = arith.constant 8 : i32
    %86 = vector.broadcast %c8_i32 : i32 to vector<256x32xi32>
    %87 = arith.muli %85, %86 : vector<256x32xi32>
    %88 = arith.cmpi sge, %84, %87 : vector<256x32xi32>
    %c1_i32_45 = arith.constant 1 : i32
    %89 = vector.broadcast %c1_i32_45 : i32 to vector<256x32xi32>
    %90 = arith.addi %85, %89 : vector<256x32xi32>
    %c8_i32_46 = arith.constant 8 : i32
    %91 = vector.broadcast %c8_i32_46 : i32 to vector<256x32xi32>
    %92 = arith.muli %90, %91 : vector<256x32xi32>
    %93 = arith.cmpi slt, %84, %92 : vector<256x32xi32>
    %94 = arith.andi %88, %93 : vector<256x32xi1>
    %95 = arith.extui %94 : vector<256x32xi1> to vector<256x32xi32>
    %96 = arith.sitofp %95 : vector<256x32xi32> to vector<256x32xf32>
    %97 = tpu.iota {dimensions = array<i32: 1>} : vector<32x256xi32>
    %98 = tpu.iota {dimensions = array<i32: 0>} : vector<32x256xi32>
    %c8_i32_47 = arith.constant 8 : i32
    %99 = vector.broadcast %c8_i32_47 : i32 to vector<32x256xi32>
    %100 = arith.muli %98, %99 : vector<32x256xi32>
    %101 = arith.cmpi sge, %97, %100 : vector<32x256xi32>
    %c1_i32_48 = arith.constant 1 : i32
    %102 = vector.broadcast %c1_i32_48 : i32 to vector<32x256xi32>
    %103 = arith.addi %98, %102 : vector<32x256xi32>
    %c8_i32_49 = arith.constant 8 : i32
    %104 = vector.broadcast %c8_i32_49 : i32 to vector<32x256xi32>
    %105 = arith.muli %103, %104 : vector<32x256xi32>
    %106 = arith.cmpi slt, %97, %105 : vector<32x256xi32>
    %107 = arith.andi %101, %106 : vector<32x256xi1>
    %108 = arith.extui %107 : vector<32x256xi1> to vector<32x256xi32>
    %109 = arith.sitofp %108 : vector<32x256xi32> to vector<32x256xf32>
    %cst_50 = arith.constant dense<0.000000e+00> : vector<1x32xf32>
    %110 = tpu.matmul %81, %96, %cst_50 {dimension_numbers = #tpu.dot_dimension_numbers<[1], [0], [0], [1], [0, 0, 1, 1], [], []>} : vector<1x256xf32>, vector<256x32xf32>, vector<1x32xf32> -> vector<1x32xf32>
    %cst_51 = arith.constant 7.812500e-03 : f32
    %111 = vector.broadcast %cst_51 : f32 to vector<1x32xf32>
    %112 = arith.mulf %110, %111 : vector<1x32xf32>
    %cst_52 = arith.constant dense<0.000000e+00> : vector<1x32xf32>
    %113 = tpu.matmul %83, %96, %cst_52 {dimension_numbers = #tpu.dot_dimension_numbers<[1], [0], [0], [1], [0, 0, 1, 1], [], []>} : vector<1x256xf32>, vector<256x32xf32>, vector<1x32xf32> -> vector<1x32xf32>
    %cst_53 = arith.constant 7.812500e-03 : f32
    %114 = vector.broadcast %cst_53 : f32 to vector<1x32xf32>
    %115 = arith.mulf %113, %114 : vector<1x32xf32>
    %116 = arith.mulf %112, %112 : vector<1x32xf32>
    %117 = arith.subf %115, %116 : vector<1x32xf32>
    %cst_54 = arith.constant 0.000000e+00 : f32
    %118 = vector.broadcast %cst_54 : f32 to vector<1x32xf32>
    %119 = arith.maximumf %117, %118 : vector<1x32xf32>
    %cst_55 = arith.constant 9.99999974E-6 : f32
    %120 = vector.broadcast %cst_55 : f32 to vector<1x32xf32>
    %121 = arith.addf %119, %120 : vector<1x32xf32>
    %122 = math.rsqrt %121 : vector<1x32xf32>
    %cst_56 = arith.constant dense<0.000000e+00> : vector<1x256xf32>
    %123 = tpu.matmul %112, %109, %cst_56 {dimension_numbers = #tpu.dot_dimension_numbers<[1], [0], [0], [1], [0, 0, 1, 1], [], []>} : vector<1x32xf32>, vector<32x256xf32>, vector<1x256xf32> -> vector<1x256xf32>
    %cst_57 = arith.constant dense<0.000000e+00> : vector<1x256xf32>
    %124 = tpu.matmul %122, %109, %cst_57 {dimension_numbers = #tpu.dot_dimension_numbers<[1], [0], [0], [1], [0, 0, 1, 1], [], []>} : vector<1x32xf32>, vector<32x256xf32>, vector<1x256xf32> -> vector<1x256xf32>
    %125 = vector.broadcast %123 : vector<1x256xf32> to vector<16x256xf32>
    %126 = arith.subf %77, %125 : vector<16x256xf32>
    %127 = vector.broadcast %124 : vector<1x256xf32> to vector<16x256xf32>
    %128 = arith.mulf %126, %127 : vector<16x256xf32>
    %129 = vector.broadcast %78 : vector<1x256xf32> to vector<16x256xf32>
    %130 = arith.mulf %128, %129 : vector<16x256xf32>
    %131 = vector.broadcast %79 : vector<1x256xf32> to vector<16x256xf32>
    %132 = arith.addf %130, %131 : vector<16x256xf32>
    %cst_58 = arith.constant 0.000000e+00 : f32
    %133 = vector.broadcast %cst_58 : f32 to vector<16x256xf32>
    %134 = arith.maximumf %132, %133 : vector<16x256xf32>
    %c0_59 = arith.constant 0 : index
    %c0_60 = arith.constant 0 : index
    %135 = vector.load %arg11[%c0_59, %c0_60] : memref<1x512xf32, #tpu.memory_space<vmem>>, vector<1x512xf32>
    %cst_61 = arith.constant 0.000000e+00 : f32
    %136 = vector.broadcast %cst_61 : f32 to vector<8x256xf32>
    %c0_62 = arith.constant 0 : index
    %c0_63 = arith.constant 0 : index
    %137 = vector.load %arg16[%c0_62, %c0_63] : memref<32x256xf32, #tpu.memory_space<vmem>>, vector<8x256xf32>
    tpu.vector_store %arg16[%c0_62, %c0_63], %136 {strides = array<i32>} : memref<32x256xf32, #tpu.memory_space<vmem>>, vector<8x256xf32>,
    %c24_64 = arith.constant 24 : index
    %c0_65 = arith.constant 0 : index
    %138 = vector.load %arg16[%c24_64, %c0_65] : memref<32x256xf32, #tpu.memory_space<vmem>>, vector<8x256xf32>
    tpu.vector_store %arg16[%c24_64, %c0_65], %136 {strides = array<i32>} : memref<32x256xf32, #tpu.memory_space<vmem>>, vector<8x256xf32>,
    %c8_66 = arith.constant 8 : index
    %c0_67 = arith.constant 0 : index
    %139 = vector.load %arg16[%c8_66, %c0_67] : memref<32x256xf32, #tpu.memory_space<vmem>>, vector<16x256xf32>
    tpu.vector_store %arg16[%c8_66, %c0_67], %134 {strides = array<i32>} : memref<32x256xf32, #tpu.memory_space<vmem>>, vector<16x256xf32>,
    %c7_68 = arith.constant 7 : index
    %c0_69 = arith.constant 0 : index
    %140 = vector.load %arg16[%c7_68, %c0_69] : memref<32x256xf32, #tpu.memory_space<vmem>>, vector<16x256xf32>
    %c9_70 = arith.constant 9 : index
    %c0_71 = arith.constant 0 : index
    %141 = vector.load %arg16[%c9_70, %c0_71] : memref<32x256xf32, #tpu.memory_space<vmem>>, vector<16x256xf32>
    %142 = tpu.concatenate %140, %134, %141 in 1 : vector<16x256xf32>, vector<16x256xf32>, vector<16x256xf32> -> vector<16x768xf32>
    %143 = arith.truncf %142 : vector<16x768xf32> to vector<16x768xbf16>
    %c0_72 = arith.constant 0 : index
    %c0_73 = arith.constant 0 : index
    %144 = vector.load %arg10[%c0_72, %c0_73] : memref<768x512xbf16, #tpu.memory_space<vmem>>, vector<768x512xbf16>
    %cst_74 = arith.constant dense<0.000000e+00> : vector<16x512xf32>
    %145 = tpu.matmul %143, %144, %cst_74 {dimension_numbers = #tpu.dot_dimension_numbers<[1], [0], [0], [1], [0, 0, 1, 1], [], []>} : vector<16x768xbf16>, vector<768x512xbf16>, vector<16x512xf32> -> vector<16x512xf32>
    %146 = vector.broadcast %135 : vector<1x512xf32> to vector<16x512xf32>
    %147 = arith.addf %145, %146 : vector<16x512xf32>
    %c0_75 = arith.constant 0 : index
    %c0_76 = arith.constant 0 : index
    %148 = vector.load %arg12[%c0_75, %c0_76] : memref<1x512xf32, #tpu.memory_space<vmem>>, vector<1x512xf32>
    %c0_77 = arith.constant 0 : index
    %c0_78 = arith.constant 0 : index
    %149 = vector.load %arg13[%c0_77, %c0_78] : memref<1x512xf32, #tpu.memory_space<vmem>>, vector<1x512xf32>
    %cst_79 = arith.constant 1.000000e+00 : f32
    %150 = vector.broadcast %cst_79 : f32 to vector<1x16xf32>
    %cst_80 = arith.constant dense<0.000000e+00> : vector<1x512xf32>
    %151 = tpu.matmul %150, %147, %cst_80 {dimension_numbers = #tpu.dot_dimension_numbers<[1], [0], [0], [1], [0, 0, 1, 1], [], []>} : vector<1x16xf32>, vector<16x512xf32>, vector<1x512xf32> -> vector<1x512xf32>
    %152 = arith.mulf %147, %147 : vector<16x512xf32>
    %cst_81 = arith.constant dense<0.000000e+00> : vector<1x512xf32>
    %153 = tpu.matmul %150, %152, %cst_81 {dimension_numbers = #tpu.dot_dimension_numbers<[1], [0], [0], [1], [0, 0, 1, 1], [], []>} : vector<1x16xf32>, vector<16x512xf32>, vector<1x512xf32> -> vector<1x512xf32>
    %154 = tpu.iota {dimensions = array<i32: 0>} : vector<512x32xi32>
    %155 = tpu.iota {dimensions = array<i32: 1>} : vector<512x32xi32>
    %c16_i32 = arith.constant 16 : i32
    %156 = vector.broadcast %c16_i32 : i32 to vector<512x32xi32>
    %157 = arith.muli %155, %156 : vector<512x32xi32>
    %158 = arith.cmpi sge, %154, %157 : vector<512x32xi32>
    %c1_i32_82 = arith.constant 1 : i32
    %159 = vector.broadcast %c1_i32_82 : i32 to vector<512x32xi32>
    %160 = arith.addi %155, %159 : vector<512x32xi32>
    %c16_i32_83 = arith.constant 16 : i32
    %161 = vector.broadcast %c16_i32_83 : i32 to vector<512x32xi32>
    %162 = arith.muli %160, %161 : vector<512x32xi32>
    %163 = arith.cmpi slt, %154, %162 : vector<512x32xi32>
    %164 = arith.andi %158, %163 : vector<512x32xi1>
    %165 = arith.extui %164 : vector<512x32xi1> to vector<512x32xi32>
    %166 = arith.sitofp %165 : vector<512x32xi32> to vector<512x32xf32>
    %167 = tpu.iota {dimensions = array<i32: 1>} : vector<32x512xi32>
    %168 = tpu.iota {dimensions = array<i32: 0>} : vector<32x512xi32>
    %c16_i32_84 = arith.constant 16 : i32
    %169 = vector.broadcast %c16_i32_84 : i32 to vector<32x512xi32>
    %170 = arith.muli %168, %169 : vector<32x512xi32>
    %171 = arith.cmpi sge, %167, %170 : vector<32x512xi32>
    %c1_i32_85 = arith.constant 1 : i32
    %172 = vector.broadcast %c1_i32_85 : i32 to vector<32x512xi32>
    %173 = arith.addi %168, %172 : vector<32x512xi32>
    %c16_i32_86 = arith.constant 16 : i32
    %174 = vector.broadcast %c16_i32_86 : i32 to vector<32x512xi32>
    %175 = arith.muli %173, %174 : vector<32x512xi32>
    %176 = arith.cmpi slt, %167, %175 : vector<32x512xi32>
    %177 = arith.andi %171, %176 : vector<32x512xi1>
    %178 = arith.extui %177 : vector<32x512xi1> to vector<32x512xi32>
    %179 = arith.sitofp %178 : vector<32x512xi32> to vector<32x512xf32>
    %cst_87 = arith.constant dense<0.000000e+00> : vector<1x32xf32>
    %180 = tpu.matmul %151, %166, %cst_87 {dimension_numbers = #tpu.dot_dimension_numbers<[1], [0], [0], [1], [0, 0, 1, 1], [], []>} : vector<1x512xf32>, vector<512x32xf32>, vector<1x32xf32> -> vector<1x32xf32>
    %cst_88 = arith.constant 3.906250e-03 : f32
    %181 = vector.broadcast %cst_88 : f32 to vector<1x32xf32>
    %182 = arith.mulf %180, %181 : vector<1x32xf32>
    %cst_89 = arith.constant dense<0.000000e+00> : vector<1x32xf32>
    %183 = tpu.matmul %153, %166, %cst_89 {dimension_numbers = #tpu.dot_dimension_numbers<[1], [0], [0], [1], [0, 0, 1, 1], [], []>} : vector<1x512xf32>, vector<512x32xf32>, vector<1x32xf32> -> vector<1x32xf32>
    %cst_90 = arith.constant 3.906250e-03 : f32
    %184 = vector.broadcast %cst_90 : f32 to vector<1x32xf32>
    %185 = arith.mulf %183, %184 : vector<1x32xf32>
    %186 = arith.mulf %182, %182 : vector<1x32xf32>
    %187 = arith.subf %185, %186 : vector<1x32xf32>
    %cst_91 = arith.constant 0.000000e+00 : f32
    %188 = vector.broadcast %cst_91 : f32 to vector<1x32xf32>
    %189 = arith.maximumf %187, %188 : vector<1x32xf32>
    %cst_92 = arith.constant 9.99999974E-6 : f32
    %190 = vector.broadcast %cst_92 : f32 to vector<1x32xf32>
    %191 = arith.addf %189, %190 : vector<1x32xf32>
    %192 = math.rsqrt %191 : vector<1x32xf32>
    %cst_93 = arith.constant dense<0.000000e+00> : vector<1x512xf32>
    %193 = tpu.matmul %182, %179, %cst_93 {dimension_numbers = #tpu.dot_dimension_numbers<[1], [0], [0], [1], [0, 0, 1, 1], [], []>} : vector<1x32xf32>, vector<32x512xf32>, vector<1x512xf32> -> vector<1x512xf32>
    %cst_94 = arith.constant dense<0.000000e+00> : vector<1x512xf32>
    %194 = tpu.matmul %192, %179, %cst_94 {dimension_numbers = #tpu.dot_dimension_numbers<[1], [0], [0], [1], [0, 0, 1, 1], [], []>} : vector<1x32xf32>, vector<32x512xf32>, vector<1x512xf32> -> vector<1x512xf32>
    %195 = vector.broadcast %193 : vector<1x512xf32> to vector<16x512xf32>
    %196 = arith.subf %147, %195 : vector<16x512xf32>
    %197 = vector.broadcast %194 : vector<1x512xf32> to vector<16x512xf32>
    %198 = arith.mulf %196, %197 : vector<16x512xf32>
    %199 = vector.broadcast %148 : vector<1x512xf32> to vector<16x512xf32>
    %200 = arith.mulf %198, %199 : vector<16x512xf32>
    %201 = vector.broadcast %149 : vector<1x512xf32> to vector<16x512xf32>
    %202 = arith.addf %200, %201 : vector<16x512xf32>
    %cst_95 = arith.constant 0.000000e+00 : f32
    %203 = vector.broadcast %cst_95 : f32 to vector<16x512xf32>
    %204 = arith.maximumf %202, %203 : vector<16x512xf32>
    %c0_96 = arith.constant 0 : index
    %c0_97 = arith.constant 0 : index
    %c0_98 = arith.constant 0 : index
    %205 = vector.load %arg14[%c0_96, %c0_97, %c0_98] : memref<1x16x512xf32, #tpu.memory_space<vmem>>, vector<1x16x512xf32>
    %206 = vector.shape_cast %205 : vector<1x16x512xf32> to vector<16x512xf32>
    %207 = vector.shape_cast %204 : vector<16x512xf32> to vector<1x16x512xf32>
    tpu.vector_store %arg14[%c0_96, %c0_97, %c0_98], %207 {strides = array<i32>} : memref<1x16x512xf32, #tpu.memory_space<vmem>>, vector<1x16x512xf32>,
    return
  }
  func.func @transform_0(%arg0: i32) -> (i32, i32, i32) {
    %c0_i32 = arith.constant 0 : i32
    %c0_i32_0 = arith.constant 0 : i32
    %c0_i32_1 = arith.constant 0 : i32
    return %arg0, %c0_i32, %c0_i32_0 : i32, i32, i32
  }
  func.func @transform_1(%arg0: i32) -> (i32, i32) {
    %c0_i32 = arith.constant 0 : i32
    %c0_i32_0 = arith.constant 0 : i32
    %c0_i32_1 = arith.constant 0 : i32
    return %c0_i32, %c0_i32_0 : i32, i32
  }
  func.func @transform_2(%arg0: i32) -> (i32, i32) {
    %c0_i32 = arith.constant 0 : i32
    %c0_i32_0 = arith.constant 0 : i32
    %c0_i32_1 = arith.constant 0 : i32
    return %c0_i32, %c0_i32_0 : i32, i32
  }
  func.func @transform_3(%arg0: i32) -> (i32, i32) {
    %c0_i32 = arith.constant 0 : i32
    %c0_i32_0 = arith.constant 0 : i32
    %c0_i32_1 = arith.constant 0 : i32
    return %c0_i32, %c0_i32_0 : i32, i32
  }
  func.func @transform_4(%arg0: i32) -> (i32, i32) {
    %c0_i32 = arith.constant 0 : i32
    %c0_i32_0 = arith.constant 0 : i32
    %c0_i32_1 = arith.constant 0 : i32
    return %c0_i32, %c0_i32_0 : i32, i32
  }
  func.func @transform_5(%arg0: i32) -> (i32, i32) {
    %c0_i32 = arith.constant 0 : i32
    %c0_i32_0 = arith.constant 0 : i32
    %c0_i32_1 = arith.constant 0 : i32
    return %c0_i32, %c0_i32_0 : i32, i32
  }
  func.func @transform_6(%arg0: i32) -> (i32, i32) {
    %c0_i32 = arith.constant 0 : i32
    %c0_i32_0 = arith.constant 0 : i32
    %c0_i32_1 = arith.constant 0 : i32
    return %c0_i32, %c0_i32_0 : i32, i32
  }
  func.func @transform_7(%arg0: i32) -> (i32, i32) {
    %c0_i32 = arith.constant 0 : i32
    %c0_i32_0 = arith.constant 0 : i32
    %c0_i32_1 = arith.constant 0 : i32
    return %c0_i32, %c0_i32_0 : i32, i32
  }
  func.func @transform_8(%arg0: i32) -> (i32, i32) {
    %c0_i32 = arith.constant 0 : i32
    %c0_i32_0 = arith.constant 0 : i32
    %c0_i32_1 = arith.constant 0 : i32
    return %c0_i32, %c0_i32_0 : i32, i32
  }
  func.func @transform_9(%arg0: i32) -> (i32, i32) {
    %c0_i32 = arith.constant 0 : i32
    %c0_i32_0 = arith.constant 0 : i32
    %c0_i32_1 = arith.constant 0 : i32
    return %c0_i32, %c0_i32_0 : i32, i32
  }
  func.func @transform_10(%arg0: i32) -> (i32, i32) {
    %c0_i32 = arith.constant 0 : i32
    %c0_i32_0 = arith.constant 0 : i32
    %c0_i32_1 = arith.constant 0 : i32
    return %c0_i32, %c0_i32_0 : i32, i32
  }
  func.func @transform_11(%arg0: i32) -> (i32, i32) {
    %c0_i32 = arith.constant 0 : i32
    %c0_i32_0 = arith.constant 0 : i32
    %c0_i32_1 = arith.constant 0 : i32
    return %c0_i32, %c0_i32_0 : i32, i32
  }
  func.func @transform_12(%arg0: i32) -> (i32, i32) {
    %c0_i32 = arith.constant 0 : i32
    %c0_i32_0 = arith.constant 0 : i32
    %c0_i32_1 = arith.constant 0 : i32
    return %c0_i32, %c0_i32_0 : i32, i32
  }
  func.func @transform_13(%arg0: i32) -> (i32, i32, i32) {
    %c0_i32 = arith.constant 0 : i32
    %c0_i32_0 = arith.constant 0 : i32
    %c0_i32_1 = arith.constant 0 : i32
    return %arg0, %c0_i32, %c0_i32_0 : i32, i32, i32
  }
}

</mosaic_0001>

<llo_original>
// kernel: tpu_custom_call.1
$region0: #{tpu_custom_call.1}
  #allocation0 [shape = 'u32[]', space=smem, size = 0x4, offset = 0x4, fixed_abs, tag = 'smem constant byte address 0x4 - core index']
  #allocation1 [shape = 'u32[144,128]{1,0:T(1,128)}', space=vmem, size = 0x12000, scoped, tag = 'internal scratch']
  #allocation2 [shape = 'f32[32,128]{1,0:T(8,128)}', space=vmem, size = 0x4000, scoped, tag = 'scratch operand']
  #allocation3 [shape = 'f32[32,256]{1,0:T(8,128)}', space=vmem, size = 0x8000, scoped, tag = 'scratch operand']
  %s0 = inlined_call_operand.vmem [shape: f32[2,16,12], index: 0, kind: input, shape index: {}]
  %s1 = inlined_call_operand.vmem [shape: bf16[12,128], index: 1, kind: input, shape index: {}]
  %s2 = inlined_call_operand.vmem [shape: f32[1,128], index: 2, kind: input, shape index: {}]
  %s3 = inlined_call_operand.vmem [shape: f32[1,128], index: 3, kind: input, shape index: {}]
  %s4 = inlined_call_operand.vmem [shape: f32[1,128], index: 4, kind: input, shape index: {}]
  %s5 = inlined_call_operand.hbm [shape: bf16[384,256], index: 5, kind: input, shape index: {}]
  %s6 = inlined_call_operand.vmem [shape: f32[1,256], index: 6, kind: input, shape index: {}]
  %s7 = inlined_call_operand.vmem [shape: f32[1,256], index: 7, kind: input, shape index: {}]
  %s8 = inlined_call_operand.vmem [shape: f32[1,256], index: 8, kind: input, shape index: {}]
  %s9 = inlined_call_operand.hbm [shape: bf16[768,512], index: 9, kind: input, shape index: {}]
  %s10 = inlined_call_operand.vmem [shape: f32[1,512], index: 10, kind: input, shape index: {}]
  %s11 = inlined_call_operand.vmem [shape: f32[1,512], index: 11, kind: input, shape index: {}]
  %s12 = inlined_call_operand.vmem [shape: f32[1,512], index: 12, kind: input, shape index: {}]
  %s13 = inlined_call_operand.hbm [shape: f32[2,16,512], index: 13, kind: output, shape index: {}]
  %s14 = sld [smem:[#allocation0]]
  $region93: #{tpu_custom_call.1} parent=0
    _
  %s16 = ssub.s32 1, %s14
  %s17 = scalar_select 0, %s16, %s14
  $region1: #{tpu_custom_call.1} parent=0
    #allocation4 [shape = 'u8[196608]{0}', space=vmem, size = 0x30000, scoped, tag = 'input window, operand 5, single buffered']
    #allocation5 [shape = 's32[2]{0}', space=sflag, size = 0x8, scoped, tag = 'scoped memory for tpu_custom_call.1']
    #allocation6 [shape = 's32[2]{0}', space=sflag, size = 0x8, scoped, tag = 'scoped memory for tpu_custom_call.1']
    #allocation7 [shape = 'u8[786432]{0}', space=vmem, size = 0xc0000, scoped, tag = 'input window, operand 9, single buffered']
    #allocation8 [shape = 's32[1]{0}', space=sflag, size = 0x4, scoped, tag = 'scoped memory for tpu_custom_call.1']
    #allocation9 [shape = 'u8[65536]{0}', space=vmem, size = 0x10000, scoped, tag = 'output window, operand 0']
    %18 = vsyncpa [#allocation5], 0
    %19 = vsyncpa [#allocation8], 0
    %20 = vsyncpa [#allocation6], 0
    %s21 = scalar_lea.sflag [#allocation6], 1
    %22 = vsyncpa %s21, 0
    loop: start=0, step=1, limit=4
    $region2: #{tpu_custom_call.1} parent=1 // loop_pre_header
      _
    $region3: #{tpu_custom_call.1} parent=1 // loop_header
      %s24 = sphi 0, %s28
      %p25 = scmp.ge.s32.totalorder %s24, 4
      %s34 = sphi 0, %s36
      %s37 = sphi 0, %s34
      %s38 = sphi 0, %s37
      %s54 = sphi 0, %s38
      %s58 = sphi 0, %s58
      %s60 = sphi 0, %s58
      %s61 = sphi 0, %s60
      %s75 = sphi 0, %s61
      %s79 = sphi 0, %s79
      %s81 = sphi 0, %s79
      %s82 = sphi 0, %s81
      %s96 = sphi 0, %s82
      %s100 = sphi 0, %s100
      %s102 = sphi 0, %s100
      %s103 = sphi 0, %s102
      %s117 = sphi 0, %s103
      %s121 = sphi 0, %s121
      %s123 = sphi 0, %s121
      %s124 = sphi 0, %s123
      %s138 = sphi 0, %s124
      %s142 = sphi 0, %s142
      %s144 = sphi 0, %s142
      %s145 = sphi 0, %s144
      %s159 = sphi 0, %s145
      %s163 = sphi 0, %s163
      %s165 = sphi 0, %s163
      %s166 = sphi 0, %s165
      %s180 = sphi 0, %s166
      %s184 = sphi 0, %s184
      %s186 = sphi 0, %s184
      %s187 = sphi 0, %s186
      %s201 = sphi 0, %s187
      %s205 = sphi 0, %s205
      %s207 = sphi 0, %s205
      %s208 = sphi 0, %s207
      %s222 = sphi 0, %s208
      %s226 = sphi 0, %s226
      %s228 = sphi 0, %s226
      %s229 = sphi 0, %s228
      %s243 = sphi 0, %s229
      %s247 = sphi 0, %s247
      %s249 = sphi 0, %s247
      %s250 = sphi 0, %s249
      %s264 = sphi 0, %s250
      %s268 = sphi 0, %s268
      %s270 = sphi 0, %s268
      %s271 = sphi 0, %s270
      %s285 = sphi 0, %s271
      %s289 = sphi 0, %s289
      %s291 = sphi 0, %s289
      %s292 = sphi 0, %s291
      %s306 = sphi 0, %s292
      %s312 = sphi 0, %s314
      %s315 = sphi 0, %s312
      %s316 = sphi 0, %s315
      %s332 = sphi 0, %s316
    $region4: #{tpu_custom_call.1} parent=1 // loop_header_branch
      %27 = sbr.rel (%p25) target = $region8
    $region5: #{tpu_custom_call.1} parent=1 // loop_body
      %s29 = ssub.s32 %s24, 1
      %s30 = ssub.s32 %s24, 2
      %s31 = sadd.s32 %s24, 1
      %s32 = ssub.s32 %s24, %s31
      %p33 = scmp.eq.s32.totalorder %s32, 0
      %s35 = sadd.s32 %s34, 1
      %s36 = scalar_select %p33, %s34, %s35
      %p39 = pneg %p33
      %p40 = scmp.eq.s32.totalorder %s24, 1
      %p41 = por %p39, %p40
      %p42 = scmp.ne.s32.totalorder %s34, %s37
      %p43 = scmp.eq.s32.totalorder %s24, 0
      %p44 = por %p42, %p43
      %p45 = scmp.ne.s32.totalorder %s34, %s37
      %p46 = scmp.eq.s32.totalorder %s29, 1
      %p47 = por %p45, %p46
      %p48 = scmp.ne.s32.totalorder %s37, %s38
      %p49 = scmp.eq.s32.totalorder %s29, 0
      %p50 = por %p48, %p49
      %p51 = scmp.ne.s32.totalorder %s37, %s38
      %p52 = scmp.eq.s32.totalorder %s30, 1
      %p53 = por %p51, %p52
      %p55 = scmp.ne.s32.totalorder %s38, %s54
      %p56 = scmp.eq.s32.totalorder %s30, 0
      %p57 = por %p55, %p56
      %s59 = sadd.s32 %s58, 1
      %p62 = scmp.eq.s32.totalorder %s24, 1
      %p63 = scmp.ne.s32.totalorder %s58, %s60
      %p64 = scmp.eq.s32.totalorder %s24, 0
      %p65 = por %p63, %p64
      %p66 = scmp.ne.s32.totalorder %s58, %s60
      %p67 = scmp.eq.s32.totalorder %s29, 1
      %p68 = por %p66, %p67
      %p69 = scmp.ne.s32.totalorder %s60, %s61
      %p70 = scmp.eq.s32.totalorder %s29, 0
      %p71 = por %p69, %p70
      %p72 = scmp.ne.s32.totalorder %s60, %s61
      %p73 = scmp.eq.s32.totalorder %s30, 1
      %p74 = por %p72, %p73
      %p76 = scmp.ne.s32.totalorder %s61, %s75
      %p77 = scmp.eq.s32.totalorder %s30, 0
      %p78 = por %p76, %p77
      %s80 = sadd.s32 %s79, 1
      %p83 = scmp.eq.s32.totalorder %s24, 1
      %p84 = scmp.ne.s32.totalorder %s79, %s81
      %p85 = scmp.eq.s32.totalorder %s24, 0
      %p86 = por %p84, %p85
      %p87 = scmp.ne.s32.totalorder %s79, %s81
      %p88 = scmp.eq.s32.totalorder %s29, 1
      %p89 = por %p87, %p88
      %p90 = scmp.ne.s32.totalorder %s81, %s82
      %p91 = scmp.eq.s32.totalorder %s29, 0
      %p92 = por %p90, %p91
      %p93 = scmp.ne.s32.totalorder %s81, %s82
      %p94 = scmp.eq.s32.totalorder %s30, 1
      %p95 = por %p93, %p94
      %p97 = scmp.ne.s32.totalorder %s82, %s96
      %p98 = scmp.eq.s32.totalorder %s30, 0
      %p99 = por %p97, %p98
      %s101 = sadd.s32 %s100, 1
      %p104 = scmp.eq.s32.totalorder %s24, 1
      %p105 = scmp.ne.s32.totalorder %s100, %s102
      %p106 = scmp.eq.s32.totalorder %s24, 0
      %p107 = por %p105, %p106
      %p108 = scmp.ne.s32.totalorder %s100, %s102
      %p109 = scmp.eq.s32.totalorder %s29, 1
      %p110 = por %p108, %p109
      %p111 = scmp.ne.s32.totalorder %s102, %s103
      %p112 = scmp.eq.s32.totalorder %s29, 0
      %p113 = por %p111, %p112
      %p114 = scmp.ne.s32.totalorder %s102, %s103
      %p115 = scmp.eq.s32.totalorder %s30, 1
      %p116 = por %p114, %p115
      %p118 = scmp.ne.s32.totalorder %s103, %s117
      %p119 = scmp.eq.s32.totalorder %s30, 0
      %p120 = por %p118, %p119
      %s122 = sadd.s32 %s121, 1
      %p125 = scmp.eq.s32.totalorder %s24, 1
      %p126 = scmp.ne.s32.totalorder %s121, %s123
      %p127 = scmp.eq.s32.totalorder %s24, 0
      %p128 = por %p126, %p127
      %p129 = scmp.ne.s32.totalorder %s121, %s123
      %p130 = scmp.eq.s32.totalorder %s29, 1
      %p131 = por %p129, %p130
      %p132 = scmp.ne.s32.totalorder %s123, %s124
      %p133 = scmp.eq.s32.totalorder %s29, 0
      %p134 = por %p132, %p133
      %p135 = scmp.ne.s32.totalorder %s123, %s124
      %p136 = scmp.eq.s32.totalorder %s30, 1
      %p137 = por %p135, %p136
      %p139 = scmp.ne.s32.totalorder %s124, %s138
      %p140 = scmp.eq.s32.totalorder %s30, 0
      %p141 = por %p139, %p140
      %s143 = sadd.s32 %s142, 1
      %p146 = scmp.eq.s32.totalorder %s24, 1
      %p147 = scmp.ne.s32.totalorder %s142, %s144
      %p148 = scmp.eq.s32.totalorder %s24, 0
      %p149 = por %p147, %p148
      %p150 = scmp.ne.s32.totalorder %s142, %s144
      %p151 = scmp.eq.s32.totalorder %s29, 1
      %p152 = por %p150, %p151
      %p153 = scmp.ne.s32.totalorder %s144, %s145
      %p154 = scmp.eq.s32.totalorder %s29, 0
      %p155 = por %p153, %p154
      %p156 = scmp.ne.s32.totalorder %s144, %s145
      %p157 = scmp.eq.s32.totalorder %s30, 1
      %p158 = por %p156, %p157
      %p160 = scmp.ne.s32.totalorder %s145, %s159
      %p161 = scmp.eq.s32.totalorder %s30, 0
      %p162 = por %p160, %p161
      %s164 = sadd.s32 %s163, 1
      %p167 = scmp.eq.s32.totalorder %s24, 1
      %p168 = scmp.ne.s32.totalorder %s163, %s165
      %p169 = scmp.eq.s32.totalorder %s24, 0
      %p170 = por %p168, %p169
      %p171 = scmp.ne.s32.totalorder %s163, %s165
      %p172 = scmp.eq.s32.totalorder %s29, 1
      %p173 = por %p171, %p172
      %p174 = scmp.ne.s32.totalorder %s165, %s166
      %p175 = scmp.eq.s32.totalorder %s29, 0
      %p176 = por %p174, %p175
      %p177 = scmp.ne.s32.totalorder %s165, %s166
      %p178 = scmp.eq.s32.totalorder %s30, 1
      %p179 = por %p177, %p178
      %p181 = scmp.ne.s32.totalorder %s166, %s180
      %p182 = scmp.eq.s32.totalorder %s30, 0
      %p183 = por %p181, %p182
      %s185 = sadd.s32 %s184, 1
      %p188 = scmp.eq.s32.totalorder %s24, 1
      %p189 = scmp.ne.s32.totalorder %s184, %s186
      %p190 = scmp.eq.s32.totalorder %s24, 0
      %p191 = por %p189, %p190
      %p192 = scmp.ne.s32.totalorder %s184, %s186
      %p193 = scmp.eq.s32.totalorder %s29, 1
      %p194 = por %p192, %p193
      %p195 = scmp.ne.s32.totalorder %s186, %s187
      %p196 = scmp.eq.s32.totalorder %s29, 0
      %p197 = por %p195, %p196
      %p198 = scmp.ne.s32.totalorder %s186, %s187
      %p199 = scmp.eq.s32.totalorder %s30, 1
      %p200 = por %p198, %p199
      %p202 = scmp.ne.s32.totalorder %s187, %s201
      %p203 = scmp.eq.s32.totalorder %s30, 0
      %p204 = por %p202, %p203
      %s206 = sadd.s32 %s205, 1
      %p209 = scmp.eq.s32.totalorder %s24, 1
      %p210 = scmp.ne.s32.totalorder %s205, %s207
      %p211 = scmp.eq.s32.totalorder %s24, 0
      %p212 = por %p210, %p211
      %p213 = scmp.ne.s32.totalorder %s205, %s207
      %p214 = scmp.eq.s32.totalorder %s29, 1
      %p215 = por %p213, %p214
      %p216 = scmp.ne.s32.totalorder %s207, %s208
      %p217 = scmp.eq.s32.totalorder %s29, 0
      %p218 = por %p216, %p217
      %p219 = scmp.ne.s32.totalorder %s207, %s208
      %p220 = scmp.eq.s32.totalorder %s30, 1
      %p221 = por %p219, %p220
      %p223 = scmp.ne.s32.totalorder %s208, %s222
      %p224 = scmp.eq.s32.totalorder %s30, 0
      %p225 = por %p223, %p224
      %s227 = sadd.s32 %s226, 1
      %p230 = scmp.eq.s32.totalorder %s24, 1
      %p231 = scmp.ne.s32.totalorder %s226, %s228
      %p232 = scmp.eq.s32.totalorder %s24, 0
      %p233 = por %p231, %p232
      %p234 = scmp.ne.s32.totalorder %s226, %s228
      %p235 = scmp.eq.s32.totalorder %s29, 1
      %p236 = por %p234, %p235
      %p237 = scmp.ne.s32.totalorder %s228, %s229
      %p238 = scmp.eq.s32.totalorder %s29, 0
      %p239 = por %p237, %p238
      %p240 = scmp.ne.s32.totalorder %s228, %s229
      %p241 = scmp.eq.s32.totalorder %s30, 1
      %p242 = por %p240, %p241
      %p244 = scmp.ne.s32.totalorder %s229, %s243
      %p245 = scmp.eq.s32.totalorder %s30, 0
      %p246 = por %p244, %p245
      %s248 = sadd.s32 %s247, 1
      %p251 = scmp.eq.s32.totalorder %s24, 1
      %p252 = scmp.ne.s32.totalorder %s247, %s249
      %p253 = scmp.eq.s32.totalorder %s24, 0
      %p254 = por %p252, %p253
      %p255 = scmp.ne.s32.totalorder %s247, %s249
      %p256 = scmp.eq.s32.totalorder %s29, 1
      %p257 = por %p255, %p256
      %p258 = scmp.ne.s32.totalorder %s249, %s250
      %p259 = scmp.eq.s32.totalorder %s29, 0
      %p260 = por %p258, %p259
      %p261 = scmp.ne.s32.totalorder %s249, %s250
      %p262 = scmp.eq.s32.totalorder %s30, 1
      %p263 = por %p261, %p262
      %p265 = scmp.ne.s32.totalorder %s250, %s264
      %p266 = scmp.eq.s32.totalorder %s30, 0
      %p267 = por %p265, %p266
      %s269 = sadd.s32 %s268, 1
      %p272 = scmp.eq.s32.totalorder %s24, 1
      %p273 = scmp.ne.s32.totalorder %s268, %s270
      %p274 = scmp.eq.s32.totalorder %s24, 0
      %p275 = por %p273, %p274
      %p276 = scmp.ne.s32.totalorder %s268, %s270
      %p277 = scmp.eq.s32.totalorder %s29, 1
      %p278 = por %p276, %p277
      %p279 = scmp.ne.s32.totalorder %s270, %s271
      %p280 = scmp.eq.s32.totalorder %s29, 0
      %p281 = por %p279, %p280
      %p282 = scmp.ne.s32.totalorder %s270, %s271
      %p283 = scmp.eq.s32.totalorder %s30, 1
      %p284 = por %p282, %p283
      %p286 = scmp.ne.s32.totalorder %s271, %s285
      %p287 = scmp.eq.s32.totalorder %s30, 0
      %p288 = por %p286, %p287
      %s290 = sadd.s32 %s289, 1
      %p293 = scmp.eq.s32.totalorder %s24, 1
      %p294 = scmp.ne.s32.totalorder %s289, %s291
      %p295 = scmp.eq.s32.totalorder %s24, 0
      %p296 = por %p294, %p295
      %p297 = scmp.ne.s32.totalorder %s289, %s291
      %p298 = scmp.eq.s32.totalorder %s29, 1
      %p299 = por %p297, %p298
      %p300 = scmp.ne.s32.totalorder %s291, %s292
      %p301 = scmp.eq.s32.totalorder %s29, 0
      %p302 = por %p300, %p301
      %p303 = scmp.ne.s32.totalorder %s291, %s292
      %p304 = scmp.eq.s32.totalorder %s30, 1
      %p305 = por %p303, %p304
      %p307 = scmp.ne.s32.totalorder %s292, %s306
      %p308 = scmp.eq.s32.totalorder %s30, 0
      %p309 = por %p307, %p308
      %s310 = ssub.s32 %s24, %s31
      %p311 = scmp.eq.s32.totalorder %s310, 0
      %s313 = sadd.s32 %s312, 1
      %s314 = scalar_select %p311, %s312, %s313
      %p317 = pneg %p311
      %p318 = scmp.eq.s32.totalorder %s24, 1
      %p319 = por %p317, %p318
      %p320 = scmp.ne.s32.totalorder %s312, %s315
      %p321 = scmp.eq.s32.totalorder %s24, 0
      %p322 = por %p320, %p321
      %p323 = scmp.ne.s32.totalorder %s312, %s315
      %p324 = scmp.eq.s32.totalorder %s29, 1
      %p325 = por %p323, %p324
      %p326 = scmp.ne.s32.totalorder %s315, %s316
      %p327 = scmp.eq.s32.totalorder %s29, 0
      %p328 = por %p326, %p327
      %p329 = scmp.ne.s32.totalorder %s315, %s316
      %p330 = scmp.eq.s32.totalorder %s30, 1
      %p331 = por %p329, %p330
      %p333 = scmp.ne.s32.totalorder %s316, %s332
      %p334 = scmp.eq.s32.totalorder %s30, 0
      %p335 = por %p333, %p334
      %p336 = scmp.le.s32.totalorder 1, %s24
      %p337 = scmp.lt.s32.totalorder %s24, 3
      %p338 = pnand %p336, %p337
      %p339 = pneg %p338
      // Predicated region
      $region9: #{tpu_custom_call.1} parent=5 // pred_check
        _
      $region10: #{tpu_custom_call.1} parent=5 // pred_check_branch
        %341 = sbr.rel (%p338) target = $region12
      $region11: #{tpu_custom_call.1} parent=5 // pred_region
        %s342 = ssub.s32 %s24, 1
        // Predicated region
        $region13: #{tpu_custom_call.1} parent=11 // pred_check
          %p343 = pneg %p71
        $region14: #{tpu_custom_call.1} parent=11 // pred_check_branch
          %345 = sbr.rel (%p343) target = $region16
        $region15: #{tpu_custom_call.1} parent=11 // pred_region
          _
        $region16: #{tpu_custom_call.1} parent=11 // pred_fallthru
          _
        // Predicated region
        $region17: #{tpu_custom_call.1} parent=11 // pred_check
          %p346 = pneg %p92
        $region18: #{tpu_custom_call.1} parent=11 // pred_check_branch
          %348 = sbr.rel (%p346) target = $region20
        $region19: #{tpu_custom_call.1} parent=11 // pred_region
          _
        $region20: #{tpu_custom_call.1} parent=11 // pred_fallthru
          _
        // Predicated region
        $region21: #{tpu_custom_call.1} parent=11 // pred_check
          %p349 = pneg %p113
        $region22: #{tpu_custom_call.1} parent=11 // pred_check_branch
          %351 = sbr.rel (%p349) target = $region24
        $region23: #{tpu_custom_call.1} parent=11 // pred_region
          _
        $region24: #{tpu_custom_call.1} parent=11 // pred_fallthru
          _
        // Predicated region
        $region25: #{tpu_custom_call.1} parent=11 // pred_check
          %p352 = pneg %p134
        $region26: #{tpu_custom_call.1} parent=11 // pred_check_branch
          %354 = sbr.rel (%p352) target = $region28
        $region27: #{tpu_custom_call.1} parent=11 // pred_region
          _
        $region28: #{tpu_custom_call.1} parent=11 // pred_fallthru
          _
        // Predicated region
        $region29: #{tpu_custom_call.1} parent=11 // pred_check
          %p355 = pneg %p155
        $region30: #{tpu_custom_call.1} parent=11 // pred_check_branch
          %357 = sbr.rel (%p355) target = $region32
        $region31: #{tpu_custom_call.1} parent=11 // pred_region
          %s359 = ssub.s32 6144, 6144
          %360 = vsyncadd [#allocation5], %s359
          %s361 = sshll.u32 [#allocation4], 4
          %s362 = int_to_ptr.vmem [resolvable:$true] %s361
          %367 = dma.hbm_to_vmem [thread:$0]  %s5, 6144, %s362, [#allocation5], 128, 128, 8
        $region32: #{tpu_custom_call.1} parent=11 // pred_fallthru
          _
        // Predicated region
        $region33: #{tpu_custom_call.1} parent=11 // pred_check
          %p368 = pneg %p176
        $region34: #{tpu_custom_call.1} parent=11 // pred_check_branch
          %370 = sbr.rel (%p368) target = $region36
        $region35: #{tpu_custom_call.1} parent=11 // pred_region
          _
        $region36: #{tpu_custom_call.1} parent=11 // pred_fallthru
          _
        // Predicated region
        $region37: #{tpu_custom_call.1} parent=11 // pred_check
          %p371 = pneg %p197
        $region38: #{tpu_custom_call.1} parent=11 // pred_check_branch
          %373 = sbr.rel (%p371) target = $region40
        $region39: #{tpu_custom_call.1} parent=11 // pred_region
          _
        $region40: #{tpu_custom_call.1} parent=11 // pred_fallthru
          _
        // Predicated region
        $region41: #{tpu_custom_call.1} parent=11 // pred_check
          %p374 = pneg %p218
        $region42: #{tpu_custom_call.1} parent=11 // pred_check_branch
          %376 = sbr.rel (%p374) target = $region44
        $region43: #{tpu_custom_call.1} parent=11 // pred_region
          _
        $region44: #{tpu_custom_call.1} parent=11 // pred_fallthru
          _
        // Predicated region
        $region45: #{tpu_custom_call.1} parent=11 // pred_check
          %p377 = pneg %p239
        $region46: #{tpu_custom_call.1} parent=11 // pred_check_branch
          %379 = sbr.rel (%p377) target = $region48
        $region47: #{tpu_custom_call.1} parent=11 // pred_region
          %s381 = ssub.s32 24576, 24576
          %382 = vsyncadd [#allocation8], %s381
          %s383 = sshll.u32 [#allocation7], 4
          %s384 = int_to_ptr.vmem [resolvable:$true] %s383
          %389 = dma.hbm_to_vmem [thread:$0]  %s9, 24576, %s384, [#allocation8], 256, 256, 16
        $region48: #{tpu_custom_call.1} parent=11 // pred_fallthru
          _
        // Predicated region
        $region49: #{tpu_custom_call.1} parent=11 // pred_check
          %p390 = pneg %p260
        $region50: #{tpu_custom_call.1} parent=11 // pred_check_branch
          %392 = sbr.rel (%p390) target = $region52
        $region51: #{tpu_custom_call.1} parent=11 // pred_region
          _
        $region52: #{tpu_custom_call.1} parent=11 // pred_fallthru
          _
        // Predicated region
        $region53: #{tpu_custom_call.1} parent=11 // pred_check
          %p393 = pneg %p281
        $region54: #{tpu_custom_call.1} parent=11 // pred_check_branch
          %395 = sbr.rel (%p393) target = $region56
        $region55: #{tpu_custom_call.1} parent=11 // pred_region
          _
        $region56: #{tpu_custom_call.1} parent=11 // pred_fallthru
          _
        // Predicated region
        $region57: #{tpu_custom_call.1} parent=11 // pred_check
          %p396 = pneg %p302
        $region58: #{tpu_custom_call.1} parent=11 // pred_check_branch
          %398 = sbr.rel (%p396) target = $region60
        $region59: #{tpu_custom_call.1} parent=11 // pred_region
          _
        $region60: #{tpu_custom_call.1} parent=11 // pred_fallthru
          _
      $region12: #{tpu_custom_call.1} parent=5 // pred_fallthru
        _
      %p399 = scmp.lt.s32.totalorder %s24, 2
      // Predicated region
      $region61: #{tpu_custom_call.1} parent=5 // pred_check
        %p400 = pneg %p399
      $region62: #{tpu_custom_call.1} parent=5 // pred_check_branch
        %402 = sbr.rel (%p400) target = $region64
      $region63: #{tpu_custom_call.1} parent=5 // pred_region
        // Predicated region
        $region65: #{tpu_custom_call.1} parent=63 // pred_check
          %p403 = pneg %p44
        $region66: #{tpu_custom_call.1} parent=63 // pred_check_branch
          %405 = sbr.rel (%p403) target = $region68
        $region67: #{tpu_custom_call.1} parent=63 // pred_region
          %p406 = scmp.lt.s32.totalorder %s24, 1
          %s407 = scalar_select %p406, %s24, 1
          %s408 = smul.addr %s407, 2
          %s409 = smul.addr %s408, 8
          %s410 = scalar_lea.vmem %s0, %s409
        $region68: #{tpu_custom_call.1} parent=63 // pred_fallthru
          _
      $region64: #{tpu_custom_call.1} parent=5 // pred_fallthru
        _
      %p411 = scmp.le.s32.totalorder 1, %s24
      %p412 = scmp.lt.s32.totalorder %s24, 3
      %p413 = pnand %p411, %p412
      %p414 = pneg %p413
      // Predicated region
      $region69: #{tpu_custom_call.1} parent=5 // pred_check
        _
      $region70: #{tpu_custom_call.1} parent=5 // pred_check_branch
        %416 = sbr.rel (%p413) target = $region72
      $region71: #{tpu_custom_call.1} parent=5 // pred_region
        %s417 = ssub.s32 %s24, 1
        // Predicated region
        $region73: #{tpu_custom_call.1} parent=71 // pred_check
          %p418 = pneg %p155
        $region74: #{tpu_custom_call.1} parent=71 // pred_check_branch
          %420 = sbr.rel (%p418) target = $region76
        $region75: #{tpu_custom_call.1} parent=71 // pred_region
          %421 = dma.done [#allocation5], 6144
        $region76: #{tpu_custom_call.1} parent=71 // pred_fallthru
          _
        // Predicated region
        $region77: #{tpu_custom_call.1} parent=71 // pred_check
          %p422 = pneg %p239
        $region78: #{tpu_custom_call.1} parent=71 // pred_check_branch
          %424 = sbr.rel (%p422) target = $region80
        $region79: #{tpu_custom_call.1} parent=71 // pred_region
          %425 = dma.done [#allocation8], 24576
        $region80: #{tpu_custom_call.1} parent=71 // pred_fallthru
          _
        %p426 = scmp.lt.s32.totalorder %s29, 1
        %s427 = scalar_select %p426, %s29, 1
        %s428 = smul.addr %s427, 2
        %s429 = smul.addr %s428, 8
        %s430 = scalar_lea.vmem %s0, %s429
        %p431 = pneg %p50
        %p432 = pneg %p47
        %p433 = pneg %p71
        %p434 = pneg %p68
        %p435 = pneg %p92
        %p436 = pneg %p89
        %p437 = pneg %p113
        %p438 = pneg %p110
        %p439 = pneg %p134
        %p440 = pneg %p131
        %p441 = pneg %p155
        %p442 = pneg %p152
        %p443 = pneg %p176
        %p444 = pneg %p173
        %p445 = pneg %p197
        %p446 = pneg %p194
        %p447 = pneg %p218
        %p448 = pneg %p215
        %p449 = pneg %p239
        %p450 = pneg %p236
        %p451 = pneg %p260
        %p452 = pneg %p257
        %p453 = pneg %p281
        %p454 = pneg %p278
        %p455 = pneg %p302
        %p456 = pneg %p299
        %p457 = pneg %p328
        %p458 = pneg %p325
        %s459 = sand.u32 %s315, 1
        %s460 = scalar_lea.sflag [#allocation6], %s459
        %s461 = sand.u32 %s315, 1
        %s462 = smul.addr %s461, 64
        %s463 = scalar_lea.vmem [#allocation9], %s462
        %p464 = scmp.lt.s32.totalorder %s29, 1
        %s465 = scalar_select %p464, %s29, 1
        %s466 = smul.addr %s465, 2
        %s467 = smul.addr %s466, 8
        %s468 = scalar_lea.vmem %s0, %s467
        %v470 = vld [vmem:[%s468] sm:$0xff]
        %v471 = vld [vmem:[%s468 + $0x8] sm:$0xff]
        %v472 = vpack.c.bf16 %v471, %v470
        %v473 = vld [vmem:[%s1] sm:$0xf]
        %v474 = vld [vmem:[%s1 + $0x4] sm:$0x3]
        %v475 = vld [vmem:[%s2] sm:$0x1]
        %v477 = vlaneseq
        %v478 = vshrl.u32 %v477, 7
        %v479 = vsub.s32 0, %v478
        %v480 = vrot.slane %v475, %v479
        %v484 = vunpack.c.l.b16 %v473
        %v485 = vunpack.c.l.b16 %v474
        %v486 = vpack.c.b16 %v485, %v484
        %vm487 = vcmask 97280
        %v489 = vsel %vm487, %v472, 0
        %vm491 = vcmask 1045504
        %v493 = vsel %vm491, %v486, 0
        %495 = vmatprep.subr.bf16.mxu0 0
        %496 = vmatpush1.bf16.msra.mxu0 0
        %497 = vmatprep.subr.bf16.mxu0 0
        %498 = vmatpush1.bf16.msra.mxu0 0
        %499 = vmatprep.subr.bf16.mxu0 0
        %500 = vmatpush1.bf16.msra.mxu0 0
        %501 = vmatprep.subr.bf16.mxu0 0
        %502 = vmatpush1.bf16.msra.mxu0 0
        %503 = vmatprep.subr.bf16.mxu0 0
        %504 = vmatpush1.bf16.msra.mxu0 0
        %505 = vmatprep.subr.bf16.mxu0 0
        %506 = vmatpush1.bf16.msra.mxu0 0
        %507 = vmatprep.subr.bf16.mxu0 0
        %508 = vmatpush1.bf16.msra.mxu0 0
        %509 = vmatprep.subr.bf16.mxu0 0
        %510 = vmatpush1.bf16.msra.mxu0 %v493
        %511 = vmatprep.subr.bf16.mxu0 0
        %512 = vmatpush2.bf16.msra.mxu0 0
        %513 = vmatprep.subr.bf16.mxu0 0
        %514 = vmatpush2.bf16.msra.mxu0 0
        %515 = vmatprep.subr.bf16.mxu0 0
        %516 = vmatpush2.bf16.msra.mxu0 0
        %517 = vmatprep.subr.bf16.mxu0 0
        %518 = vmatpush2.bf16.msra.mxu0 0
        %519 = vmatprep.subr.bf16.mxu0 0
        %520 = vmatpush2.bf16.msra.mxu0 0
        %521 = vmatprep.subr.bf16.mxu0 0
        %522 = vmatpush2.bf16.msra.mxu0 0
        %523 = vmatprep.subr.bf16.mxu0 0
        %524 = vmatpush2.bf16.msra.mxu0 0
        %525 = vmatprep.subr.bf16.mxu0 0
        %526 = vmatpush2.bf16.msra.mxu0 0
        %527 = vmatprep.mubr.bf16.mxu0 0
        %528 = vmatmul.mubr.bf16.gmra.mxu0 %v489
        %v529 = vpop.f32.mrf.mxu0
        %v530 = vadd.f32 %v480, %v529
        %v531 = vpop.f32.mrf.mxu0
        %v532 = vpop.f32.mrf.mxu0
        %v533 = vadd.f32 %v480, %v532
        %v534 = vpop.f32.mrf.mxu0
        %535 = vdwg.mxu0
        %v536 = vld [vmem:[%s3] sm:$0x1]
        %v537 = vld [vmem:[%s4] sm:$0x1]
        %vm538 = vcmask 130048
        %v540 = vsel %vm538, 1.0, 0
        %542 = vmatprep.subr.mxu0 0.0
        %543 = vmatpush1.msra.mxu0 0.0
        %544 = vmatprep.subr.mxu0 0.0
        %545 = vmatpush1.msra.mxu0 0.0
        %546 = vmatprep.subr.mxu0 0.0
        %547 = vmatpush1.msra.mxu0 0.0
        %548 = vmatprep.subr.mxu0 0.0
        %549 = vmatpush1.msra.mxu0 0.0
        %550 = vmatprep.subr.mxu0 0.0
        %551 = vmatpush1.msra.mxu0 0.0
        %552 = vmatprep.subr.mxu0 0.0
        %553 = vmatpush1.msra.mxu0 0.0
        %554 = vmatprep.subr.mxu0 0.0
        %555 = vmatpush1.msra.mxu0 0.0
        %556 = vmatprep.subr.mxu0 0.0
        %557 = vmatpush1.msra.mxu0 0.0
        %558 = vmatprep.subr.mxu0 0.0
        %559 = vmatpush1.msra.mxu0 0.0
        %560 = vmatprep.subr.mxu0 0.0
        %561 = vmatpush1.msra.mxu0 0.0
        %562 = vmatprep.subr.mxu0 0.0
        %563 = vmatpush1.msra.mxu0 0.0
        %564 = vmatprep.subr.mxu0 0.0
        %565 = vmatpush1.msra.mxu0 0.0
        %566 = vmatprep.subr.mxu0 0.0
        %567 = vmatpush1.msra.mxu0 0.0
        %568 = vmatprep.subr.mxu0 0.0
        %569 = vmatpush1.msra.mxu0 0.0
        %570 = vmatprep.subr.mxu0 0.0
        %571 = vmatpush1.msra.mxu0 %v533
        %572 = vmatprep.subr.mxu0 0.0
        %573 = vmatpush1.msra.mxu0 %v530
        %574 = vmatprep.subr.mxu0 0.0
        %575 = vmatpush2.msra.mxu0 0.0
        %576 = vmatprep.subr.mxu0 0.0
        %577 = vmatpush2.msra.mxu0 0.0
        %578 = vmatprep.subr.mxu0 0.0
        %579 = vmatpush2.msra.mxu0 0.0
        %580 = vmatprep.subr.mxu0 0.0
        %581 = vmatpush2.msra.mxu0 0.0
        %582 = vmatprep.subr.mxu0 0.0
        %583 = vmatpush2.msra.mxu0 0.0
        %584 = vmatprep.subr.mxu0 0.0
        %585 = vmatpush2.msra.mxu0 0.0
        %586 = vmatprep.subr.mxu0 0.0
        %587 = vmatpush2.msra.mxu0 0.0
        %588 = vmatprep.subr.mxu0 0.0
        %589 = vmatpush2.msra.mxu0 0.0
        %590 = vmatprep.subr.mxu0 0.0
        %591 = vmatpush2.msra.mxu0 0.0
        %592 = vmatprep.subr.mxu0 0.0
        %593 = vmatpush2.msra.mxu0 0.0
        %594 = vmatprep.subr.mxu0 0.0
        %595 = vmatpush2.msra.mxu0 0.0
        %596 = vmatprep.subr.mxu0 0.0
        %597 = vmatpush2.msra.mxu0 0.0
        %598 = vmatprep.subr.mxu0 0.0
        %599 = vmatpush2.msra.mxu0 0.0
        %600 = vmatprep.subr.mxu0 0.0
        %601 = vmatpush2.msra.mxu0 0.0
        %602 = vmatprep.subr.mxu0 0.0
        %603 = vmatpush2.msra.mxu0 0.0
        %604 = vmatprep.subr.mxu0 0.0
        %605 = vmatpush2.msra.mxu0 0.0
        %606 = vmatprep.mubr.f32.mxu0 0.0
        %607 = vmatmul.mubr.f32.gmra.mxu0 %v540
        %v608 = vpop.f32.mrf.mxu0
        %v609 = vadd.f32 0.0, %v608
        %v610 = vpop.f32.mrf.mxu0
        %611 = vdwg.mxu0
        %v612 = vmul.f32 %v530, %v530
        %v613 = vmul.f32 %v533, %v533
        %614 = vmatprep.subr.mxu0 0.0
        %615 = vmatpush1.msra.mxu0 0.0
        %616 = vmatprep.subr.mxu0 0.0
        %617 = vmatpush1.msra.mxu0 0.0
        %618 = vmatprep.subr.mxu0 0.0
        %619 = vmatpush1.msra.mxu0 0.0
        %620 = vmatprep.subr.mxu0 0.0
        %621 = vmatpush1.msra.mxu0 0.0
        %622 = vmatprep.subr.mxu0 0.0
        %623 = vmatpush1.msra.mxu0 0.0
        %624 = vmatprep.subr.mxu0 0.0
        %625 = vmatpush1.msra.mxu0 0.0
        %626 = vmatprep.subr.mxu0 0.0
        %627 = vmatpush1.msra.mxu0 0.0
        %628 = vmatprep.subr.mxu0 0.0
        %629 = vmatpush1.msra.mxu0 0.0
        %630 = vmatprep.subr.mxu0 0.0
        %631 = vmatpush1.msra.mxu0 0.0
        %632 = vmatprep.subr.mxu0 0.0
        %633 = vmatpush1.msra.mxu0 0.0
        %634 = vmatprep.subr.mxu0 0.0
        %635 = vmatpush1.msra.mxu0 0.0
        %636 = vmatprep.subr.mxu0 0.0
        %637 = vmatpush1.msra.mxu0 0.0
        %638 = vmatprep.subr.mxu0 0.0
        %639 = vmatpush1.msra.mxu0 0.0
        %640 = vmatprep.subr.mxu0 0.0
        %641 = vmatpush1.msra.mxu0 0.0
        %642 = vmatprep.subr.mxu0 0.0
        %643 = vmatpush1.msra.mxu0 %v613
        %644 = vmatprep.subr.mxu0 0.0
        %645 = vmatpush1.msra.mxu0 %v612
        %646 = vmatprep.subr.mxu0 0.0
        %647 = vmatpush2.msra.mxu0 0.0
        %648 = vmatprep.subr.mxu0 0.0
        %649 = vmatpush2.msra.mxu0 0.0
        %650 = vmatprep.subr.mxu0 0.0
        %651 = vmatpush2.msra.mxu0 0.0
        %652 = vmatprep.subr.mxu0 0.0
        %653 = vmatpush2.msra.mxu0 0.0
        %654 = vmatprep.subr.mxu0 0.0
        %655 = vmatpush2.msra.mxu0 0.0
        %656 = vmatprep.subr.mxu0 0.0
        %657 = vmatpush2.msra.mxu0 0.0
        %658 = vmatprep.subr.mxu0 0.0
        %659 = vmatpush2.msra.mxu0 0.0
        %660 = vmatprep.subr.mxu0 0.0
        %661 = vmatpush2.msra.mxu0 0.0
        %662 = vmatprep.subr.mxu0 0.0
        %663 = vmatpush2.msra.mxu0 0.0
        %664 = vmatprep.subr.mxu0 0.0
        %665 = vmatpush2.msra.mxu0 0.0
        %666 = vmatprep.subr.mxu0 0.0
        %667 = vmatpush2.msra.mxu0 0.0
        %668 = vmatprep.subr.mxu0 0.0
        %669 = vmatpush2.msra.mxu0 0.0
        %670 = vmatprep.subr.mxu0 0.0
        %671 = vmatpush2.msra.mxu0 0.0
        %672 = vmatprep.subr.mxu0 0.0
        %673 = vmatpush2.msra.mxu0 0.0
        %674 = vmatprep.subr.mxu0 0.0
        %675 = vmatpush2.msra.mxu0 0.0
        %676 = vmatprep.subr.mxu0 0.0
        %677 = vmatpush2.msra.mxu0 0.0
        %678 = vmatprep.mubr.f32.mxu0 0.0
        %679 = vmatmul.mubr.f32.gmra.mxu0 %v540
        %v680 = vpop.f32.mrf.mxu0
        %v681 = vadd.f32 0.0, %v680
        %v682 = vpop.f32.mrf.mxu0
        %683 = vdwg.mxu0
        %v684 = vlaneseq
        %v685 = vshrl.u32 %v684, 7
        %v686 = vadd.s32 %v685, 8
        %v687 = vadd.s32 %v685, 16
        %v688 = vadd.s32 %v685, 24
        %v689 = vadd.s32 %v685, 32
        %v690 = vadd.s32 %v685, 40
        %v691 = vadd.s32 %v685, 48
        %v692 = vadd.s32 %v685, 56
        %v693 = vadd.s32 %v685, 64
        %v694 = vadd.s32 %v685, 72
        %v695 = vadd.s32 %v685, 80
        %v696 = vadd.s32 %v685, 88
        %v697 = vadd.s32 %v685, 96
        %v698 = vadd.s32 %v685, 104
        %v699 = vadd.s32 %v685, 112
        %v700 = vadd.s32 %v685, 120
        %v701 = vlaneseq
        %v702 = vand.u32 %v701, 127
        %v703 = vmul.u32 %v702, 4
        %vm704 = vcmp.ge.s32.totalorder %v685, %v703
        %vm705 = vcmp.ge.s32.totalorder %v686, %v703
        %vm706 = vcmp.ge.s32.totalorder %v687, %v703
        %vm707 = vcmp.ge.s32.totalorder %v688, %v703
        %vm708 = vcmp.ge.s32.totalorder %v689, %v703
        %vm709 = vcmp.ge.s32.totalorder %v690, %v703
        %vm710 = vcmp.ge.s32.totalorder %v691, %v703
        %vm711 = vcmp.ge.s32.totalorder %v692, %v703
        %vm712 = vcmp.ge.s32.totalorder %v693, %v703
        %vm713 = vcmp.ge.s32.totalorder %v694, %v703
        %vm714 = vcmp.ge.s32.totalorder %v695, %v703
        %vm715 = vcmp.ge.s32.totalorder %v696, %v703
        %vm716 = vcmp.ge.s32.totalorder %v697, %v703
        %vm717 = vcmp.ge.s32.totalorder %v698, %v703
        %vm718 = vcmp.ge.s32.totalorder %v699, %v703
        %vm719 = vcmp.ge.s32.totalorder %v700, %v703
        %v720 = vadd.s32 %v702, 1
        %v721 = vmul.u32 %v720, 4
        %vm722 = vcmp.lt.s32.totalorder %v685, %v721
        %vm723 = vcmp.lt.s32.totalorder %v686, %v721
        %vm724 = vcmp.lt.s32.totalorder %v687, %v721
        %vm725 = vcmp.lt.s32.totalorder %v688, %v721
        %vm726 = vcmp.lt.s32.totalorder %v689, %v721
        %vm727 = vcmp.lt.s32.totalorder %v690, %v721
        %vm728 = vcmp.lt.s32.totalorder %v691, %v721
        %vm729 = vcmp.lt.s32.totalorder %v692, %v721
        %vm730 = vcmp.lt.s32.totalorder %v693, %v721
        %vm731 = vcmp.lt.s32.totalorder %v694, %v721
        %vm732 = vcmp.lt.s32.totalorder %v695, %v721
        %vm733 = vcmp.lt.s32.totalorder %v696, %v721
        %vm734 = vcmp.lt.s32.totalorder %v697, %v721
        %vm735 = vcmp.lt.s32.totalorder %v698, %v721
        %vm736 = vcmp.lt.s32.totalorder %v699, %v721
        %vm737 = vcmp.lt.s32.totalorder %v700, %v721
        %vm738 = vmand %vm704, %vm722
        %vm739 = vmand %vm705, %vm723
        %vm740 = vmand %vm706, %vm724
        %vm741 = vmand %vm707, %vm725
        %vm742 = vmand %vm708, %vm726
        %vm743 = vmand %vm709, %vm727
        %vm744 = vmand %vm710, %vm728
        %vm745 = vmand %vm711, %vm729
        %vm746 = vmand %vm712, %vm730
        %vm747 = vmand %vm713, %vm731
        %vm748 = vmand %vm714, %vm732
        %vm749 = vmand %vm715, %vm733
        %vm750 = vmand %vm716, %vm734
        %vm751 = vmand %vm717, %vm735
        %vm752 = vmand %vm718, %vm736
        %vm753 = vmand %vm719, %vm737
        %v754 = vsel %vm738, 1, 0
        %v755 = vsel %vm739, 1, 0
        %v756 = vsel %vm740, 1, 0
        %v757 = vsel %vm741, 1, 0
        %v758 = vsel %vm742, 1, 0
        %v759 = vsel %vm743, 1, 0
        %v760 = vsel %vm744, 1, 0
        %v761 = vsel %vm745, 1, 0
        %v762 = vsel %vm746, 1, 0
        %v763 = vsel %vm747, 1, 0
        %v764 = vsel %vm748, 1, 0
        %v765 = vsel %vm749, 1, 0
        %v766 = vsel %vm750, 1, 0
        %v767 = vsel %vm751, 1, 0
        %v768 = vsel %vm752, 1, 0
        %v769 = vsel %vm753, 1, 0
        %v770 = vcvt.s32.f32 %v754
        %v771 = vcvt.s32.f32 %v755
        %v772 = vcvt.s32.f32 %v756
        %v773 = vcvt.s32.f32 %v757
        %v774 = vcvt.s32.f32 %v758
        %v775 = vcvt.s32.f32 %v759
        %v776 = vcvt.s32.f32 %v760
        %v777 = vcvt.s32.f32 %v761
        %v778 = vcvt.s32.f32 %v762
        %v779 = vcvt.s32.f32 %v763
        %v780 = vcvt.s32.f32 %v764
        %v781 = vcvt.s32.f32 %v765
        %v782 = vcvt.s32.f32 %v766
        %v783 = vcvt.s32.f32 %v767
        %v784 = vcvt.s32.f32 %v768
        %v785 = vcvt.s32.f32 %v769
        %v786 = vmul.u32 %v685, 4
        %v787 = vmul.u32 %v686, 4
        %v788 = vmul.u32 %v687, 4
        %v789 = vmul.u32 %v688, 4
        %vm790 = vcmp.ge.s32.totalorder %v702, %v786
        %vm791 = vcmp.ge.s32.totalorder %v702, %v787
        %vm792 = vcmp.ge.s32.totalorder %v702, %v788
        %vm793 = vcmp.ge.s32.totalorder %v702, %v789
        %v794 = vadd.s32 %v685, 1
        %v795 = vadd.s32 %v686, 1
        %v796 = vadd.s32 %v687, 1
        %v797 = vadd.s32 %v688, 1
        %v798 = vmul.u32 %v794, 4
        %v799 = vmul.u32 %v795, 4
        %v800 = vmul.u32 %v796, 4
        %v801 = vmul.u32 %v797, 4
        %vm802 = vcmp.lt.s32.totalorder %v702, %v798
        %vm803 = vcmp.lt.s32.totalorder %v702, %v799
        %vm804 = vcmp.lt.s32.totalorder %v702, %v800
        %vm805 = vcmp.lt.s32.totalorder %v702, %v801
        %vm806 = vmand %vm790, %vm802
        %vm807 = vmand %vm791, %vm803
        %vm808 = vmand %vm792, %vm804
        %vm809 = vmand %vm793, %vm805
        %v810 = vsel %vm806, 1, 0
        %v811 = vsel %vm807, 1, 0
        %v812 = vsel %vm808, 1, 0
        %v813 = vsel %vm809, 1, 0
        %v814 = vcvt.s32.f32 %v810
        %v815 = vcvt.s32.f32 %v811
        %v816 = vcvt.s32.f32 %v812
        %v817 = vcvt.s32.f32 %v813
        %818 = vmatprep.subr.mxu0 0.0
        %819 = vmatpush1.msra.mxu0 %v785
        %820 = vmatprep.subr.mxu0 0.0
        %821 = vmatpush1.msra.mxu0 %v784
        %822 = vmatprep.subr.mxu0 0.0
        %823 = vmatpush1.msra.mxu0 %v783
        %824 = vmatprep.subr.mxu0 0.0
        %825 = vmatpush1.msra.mxu0 %v782
        %826 = vmatprep.subr.mxu0 0.0
        %827 = vmatpush1.msra.mxu0 %v781
        %828 = vmatprep.subr.mxu0 0.0
        %829 = vmatpush1.msra.mxu0 %v780
        %830 = vmatprep.subr.mxu0 0.0
        %831 = vmatpush1.msra.mxu0 %v779
        %832 = vmatprep.subr.mxu0 0.0
        %833 = vmatpush1.msra.mxu0 %v778
        %834 = vmatprep.subr.mxu0 0.0
        %835 = vmatpush1.msra.mxu0 %v777
        %836 = vmatprep.subr.mxu0 0.0
        %837 = vmatpush1.msra.mxu0 %v776
        %838 = vmatprep.subr.mxu0 0.0
        %839 = vmatpush1.msra.mxu0 %v775
        %840 = vmatprep.subr.mxu0 0.0
        %841 = vmatpush1.msra.mxu0 %v774
        %842 = vmatprep.subr.mxu0 0.0
        %843 = vmatpush1.msra.mxu0 %v773
        %844 = vmatprep.subr.mxu0 0.0
        %845 = vmatpush1.msra.mxu0 %v772
        %846 = vmatprep.subr.mxu0 0.0
        %847 = vmatpush1.msra.mxu0 %v771
        %848 = vmatprep.subr.mxu0 0.0
        %849 = vmatpush1.msra.mxu0 %v770
        %850 = vmatprep.subr.mxu0 0.0
        %851 = vmatpush2.msra.mxu0 0.0
        %852 = vmatprep.subr.mxu0 0.0
        %853 = vmatpush2.msra.mxu0 0.0
        %854 = vmatprep.subr.mxu0 0.0
        %855 = vmatpush2.msra.mxu0 0.0
        %856 = vmatprep.subr.mxu0 0.0
        %857 = vmatpush2.msra.mxu0 0.0
        %858 = vmatprep.subr.mxu0 0.0
        %859 = vmatpush2.msra.mxu0 0.0
        %860 = vmatprep.subr.mxu0 0.0
        %861 = vmatpush2.msra.mxu0 0.0
        %862 = vmatprep.subr.mxu0 0.0
        %863 = vmatpush2.msra.mxu0 0.0
        %864 = vmatprep.subr.mxu0 0.0
        %865 = vmatpush2.msra.mxu0 0.0
        %866 = vmatprep.subr.mxu0 0.0
        %867 = vmatpush2.msra.mxu0 0.0
        %868 = vmatprep.subr.mxu0 0.0
        %869 = vmatpush2.msra.mxu0 0.0
        %870 = vmatprep.subr.mxu0 0.0
        %871 = vmatpush2.msra.mxu0 0.0
        %872 = vmatprep.subr.mxu0 0.0
        %873 = vmatpush2.msra.mxu0 0.0
        %874 = vmatprep.subr.mxu0 0.0
        %875 = vmatpush2.msra.mxu0 0.0
        %876 = vmatprep.subr.mxu0 0.0
        %877 = vmatpush2.msra.mxu0 0.0
        %878 = vmatprep.subr.mxu0 0.0
        %879 = vmatpush2.msra.mxu0 0.0
        %880 = vmatprep.subr.mxu0 0.0
        %881 = vmatpush2.msra.mxu0 0.0
        %882 = vmatprep.mubr.f32.mxu0 0.0
        %883 = vmatmul.mubr.f32.gmra.mxu0 %v609
        %v884 = vpop.f32.mrf.mxu0
        %v885 = vadd.f32 0.0, %v884
        %v886 = vpop.f32.mrf.mxu0
        %887 = vdwg.mxu0
        %v888 = vmul.f32 %v885, 0.015625
        %889 = vmatprep.subr.mxu0 0.0
        %890 = vmatpush1.msra.mxu0 %v785
        %891 = vmatprep.subr.mxu0 0.0
        %892 = vmatpush1.msra.mxu0 %v784
        %893 = vmatprep.subr.mxu0 0.0
        %894 = vmatpush1.msra.mxu0 %v783
        %895 = vmatprep.subr.mxu0 0.0
        %896 = vmatpush1.msra.mxu0 %v782
        %897 = vmatprep.subr.mxu0 0.0
        %898 = vmatpush1.msra.mxu0 %v781
        %899 = vmatprep.subr.mxu0 0.0
        %900 = vmatpush1.msra.mxu0 %v780
        %901 = vmatprep.subr.mxu0 0.0
        %902 = vmatpush1.msra.mxu0 %v779
        %903 = vmatprep.subr.mxu0 0.0
        %904 = vmatpush1.msra.mxu0 %v778
        %905 = vmatprep.subr.mxu0 0.0
        %906 = vmatpush1.msra.mxu0 %v777
        %907 = vmatprep.subr.mxu0 0.0
        %908 = vmatpush1.msra.mxu0 %v776
        %909 = vmatprep.subr.mxu0 0.0
        %910 = vmatpush1.msra.mxu0 %v775
        %911 = vmatprep.subr.mxu0 0.0
        %912 = vmatpush1.msra.mxu0 %v774
        %913 = vmatprep.subr.mxu0 0.0
        %914 = vmatpush1.msra.mxu0 %v773
        %915 = vmatprep.subr.mxu0 0.0
        %916 = vmatpush1.msra.mxu0 %v772
        %917 = vmatprep.subr.mxu0 0.0
        %918 = vmatpush1.msra.mxu0 %v771
        %919 = vmatprep.subr.mxu0 0.0
        %920 = vmatpush1.msra.mxu0 %v770
        %921 = vmatprep.subr.mxu0 0.0
        %922 = vmatpush2.msra.mxu0 0.0
        %923 = vmatprep.subr.mxu0 0.0
        %924 = vmatpush2.msra.mxu0 0.0
        %925 = vmatprep.subr.mxu0 0.0
        %926 = vmatpush2.msra.mxu0 0.0
        %927 = vmatprep.subr.mxu0 0.0
        %928 = vmatpush2.msra.mxu0 0.0
        %929 = vmatprep.subr.mxu0 0.0
        %930 = vmatpush2.msra.mxu0 0.0
        %931 = vmatprep.subr.mxu0 0.0
        %932 = vmatpush2.msra.mxu0 0.0
        %933 = vmatprep.subr.mxu0 0.0
        %934 = vmatpush2.msra.mxu0 0.0
        %935 = vmatprep.subr.mxu0 0.0
        %936 = vmatpush2.msra.mxu0 0.0
        %937 = vmatprep.subr.mxu0 0.0
        %938 = vmatpush2.msra.mxu0 0.0
        %939 = vmatprep.subr.mxu0 0.0
        %940 = vmatpush2.msra.mxu0 0.0
        %941 = vmatprep.subr.mxu0 0.0
        %942 = vmatpush2.msra.mxu0 0.0
        %943 = vmatprep.subr.mxu0 0.0
        %944 = vmatpush2.msra.mxu0 0.0
        %945 = vmatprep.subr.mxu0 0.0
        %946 = vmatpush2.msra.mxu0 0.0
        %947 = vmatprep.subr.mxu0 0.0
        %948 = vmatpush2.msra.mxu0 0.0
        %949 = vmatprep.subr.mxu0 0.0
        %950 = vmatpush2.msra.mxu0 0.0
        %951 = vmatprep.subr.mxu0 0.0
        %952 = vmatpush2.msra.mxu0 0.0
        %953 = vmatprep.mubr.f32.mxu0 0.0
        %954 = vmatmul.mubr.f32.gmra.mxu0 %v681
        %v955 = vpop.f32.mrf.mxu0
        %v956 = vadd.f32 0.0, %v955
        %v957 = vpop.f32.mrf.mxu0
        %958 = vdwg.mxu0
        %v959 = vmul.f32 %v956, 0.015625
        %v960 = vmul.f32 %v888, %v888
        %v961 = vsub.f32 %v959, %v960
        %v962 = vmax.f32 %v961, 0.0
        %v963 = vadd.f32 %v962, 1e-05
        %v964 = vrsqrt.pop %v963
        %vm965 = vcmask 261120
        %v967 = vsel %vm965, %v888, 0
        %969 = vmatprep.subr.mxu0 0.0
        %970 = vmatpush1.msra.mxu0 0.0
        %971 = vmatprep.subr.mxu0 0.0
        %972 = vmatpush1.msra.mxu0 0.0
        %973 = vmatprep.subr.mxu0 0.0
        %974 = vmatpush1.msra.mxu0 0.0
        %975 = vmatprep.subr.mxu0 0.0
        %976 = vmatpush1.msra.mxu0 0.0
        %977 = vmatprep.subr.mxu0 0.0
        %978 = vmatpush1.msra.mxu0 0.0
        %979 = vmatprep.subr.mxu0 0.0
        %980 = vmatpush1.msra.mxu0 0.0
        %981 = vmatprep.subr.mxu0 0.0
        %982 = vmatpush1.msra.mxu0 0.0
        %983 = vmatprep.subr.mxu0 0.0
        %984 = vmatpush1.msra.mxu0 0.0
        %985 = vmatprep.subr.mxu0 0.0
        %986 = vmatpush1.msra.mxu0 0.0
        %987 = vmatprep.subr.mxu0 0.0
        %988 = vmatpush1.msra.mxu0 0.0
        %989 = vmatprep.subr.mxu0 0.0
        %990 = vmatpush1.msra.mxu0 0.0
        %991 = vmatprep.subr.mxu0 0.0
        %992 = vmatpush1.msra.mxu0 0.0
        %993 = vmatprep.subr.mxu0 0.0
        %994 = vmatpush1.msra.mxu0 %v817
        %995 = vmatprep.subr.mxu0 0.0
        %996 = vmatpush1.msra.mxu0 %v816
        %997 = vmatprep.subr.mxu0 0.0
        %998 = vmatpush1.msra.mxu0 %v815
        %999 = vmatprep.subr.mxu0 0.0
        %1000 = vmatpush1.msra.mxu0 %v814
        %1001 = vmatprep.subr.mxu0 0.0
        %1002 = vmatpush2.msra.mxu0 0.0
        %1003 = vmatprep.subr.mxu0 0.0
        %1004 = vmatpush2.msra.mxu0 0.0
        %1005 = vmatprep.subr.mxu0 0.0
        %1006 = vmatpush2.msra.mxu0 0.0
        %1007 = vmatprep.subr.mxu0 0.0
        %1008 = vmatpush2.msra.mxu0 0.0
        %1009 = vmatprep.subr.mxu0 0.0
        %1010 = vmatpush2.msra.mxu0 0.0
        %1011 = vmatprep.subr.mxu0 0.0
        %1012 = vmatpush2.msra.mxu0 0.0
        %1013 = vmatprep.subr.mxu0 0.0
        %1014 = vmatpush2.msra.mxu0 0.0
        %1015 = vmatprep.subr.mxu0 0.0
        %1016 = vmatpush2.msra.mxu0 0.0
        %1017 = vmatprep.subr.mxu0 0.0
        %1018 = vmatpush2.msra.mxu0 0.0
        %1019 = vmatprep.subr.mxu0 0.0
        %1020 = vmatpush2.msra.mxu0 0.0
        %1021 = vmatprep.subr.mxu0 0.0
        %1022 = vmatpush2.msra.mxu0 0.0
        %1023 = vmatprep.subr.mxu0 0.0
        %1024 = vmatpush2.msra.mxu0 0.0
        %1025 = vmatprep.subr.mxu0 0.0
        %1026 = vmatpush2.msra.mxu0 0.0
        %1027 = vmatprep.subr.mxu0 0.0
        %1028 = vmatpush2.msra.mxu0 0.0
        %1029 = vmatprep.subr.mxu0 0.0
        %1030 = vmatpush2.msra.mxu0 0.0
        %1031 = vmatprep.subr.mxu0 0.0
        %1032 = vmatpush2.msra.mxu0 0.0
        %1033 = vmatprep.mubr.f32.mxu0 0.0
        %1034 = vmatmul.mubr.f32.gmra.mxu0 %v967
        %v1035 = vpop.f32.mrf.mxu0
        %v1036 = vadd.f32 0.0, %v1035
        %v1037 = vpop.f32.mrf.mxu0
        %1038 = vdwg.mxu0
        %v1040 = vsel %vm965, %v964, 0
        %1042 = vmatprep.subr.mxu0 0.0
        %1043 = vmatpush1.msra.mxu0 0.0
        %1044 = vmatprep.subr.mxu0 0.0
        %1045 = vmatpush1.msra.mxu0 0.0
        %1046 = vmatprep.subr.mxu0 0.0
        %1047 = vmatpush1.msra.mxu0 0.0
        %1048 = vmatprep.subr.mxu0 0.0
        %1049 = vmatpush1.msra.mxu0 0.0
        %1050 = vmatprep.subr.mxu0 0.0
        %1051 = vmatpush1.msra.mxu0 0.0
        %1052 = vmatprep.subr.mxu0 0.0
        %1053 = vmatpush1.msra.mxu0 0.0
        %1054 = vmatprep.subr.mxu0 0.0
        %1055 = vmatpush1.msra.mxu0 0.0
        %1056 = vmatprep.subr.mxu0 0.0
        %1057 = vmatpush1.msra.mxu0 0.0
        %1058 = vmatprep.subr.mxu0 0.0
        %1059 = vmatpush1.msra.mxu0 0.0
        %1060 = vmatprep.subr.mxu0 0.0
        %1061 = vmatpush1.msra.mxu0 0.0
        %1062 = vmatprep.subr.mxu0 0.0
        %1063 = vmatpush1.msra.mxu0 0.0
        %1064 = vmatprep.subr.mxu0 0.0
        %1065 = vmatpush1.msra.mxu0 0.0
        %1066 = vmatprep.subr.mxu0 0.0
        %1067 = vmatpush1.msra.mxu0 %v817
        %1068 = vmatprep.subr.mxu0 0.0
        %1069 = vmatpush1.msra.mxu0 %v816
        %1070 = vmatprep.subr.mxu0 0.0
        %1071 = vmatpush1.msra.mxu0 %v815
        %1072 = vmatprep.subr.mxu0 0.0
        %1073 = vmatpush1.msra.mxu0 %v814
        %1074 = vmatprep.subr.mxu0 0.0
        %1075 = vmatpush2.msra.mxu0 0.0
        %1076 = vmatprep.subr.mxu0 0.0
        %1077 = vmatpush2.msra.mxu0 0.0
        %1078 = vmatprep.subr.mxu0 0.0
        %1079 = vmatpush2.msra.mxu0 0.0
        %1080 = vmatprep.subr.mxu0 0.0
        %1081 = vmatpush2.msra.mxu0 0.0
        %1082 = vmatprep.subr.mxu0 0.0
        %1083 = vmatpush2.msra.mxu0 0.0
        %1084 = vmatprep.subr.mxu0 0.0
        %1085 = vmatpush2.msra.mxu0 0.0
        %1086 = vmatprep.subr.mxu0 0.0
        %1087 = vmatpush2.msra.mxu0 0.0
        %1088 = vmatprep.subr.mxu0 0.0
        %1089 = vmatpush2.msra.mxu0 0.0
        %1090 = vmatprep.subr.mxu0 0.0
        %1091 = vmatpush2.msra.mxu0 0.0
        %1092 = vmatprep.subr.mxu0 0.0
        %1093 = vmatpush2.msra.mxu0 0.0
        %1094 = vmatprep.subr.mxu0 0.0
        %1095 = vmatpush2.msra.mxu0 0.0
        %1096 = vmatprep.subr.mxu0 0.0
        %1097 = vmatpush2.msra.mxu0 0.0
        %1098 = vmatprep.subr.mxu0 0.0
        %1099 = vmatpush2.msra.mxu0 0.0
        %1100 = vmatprep.subr.mxu0 0.0
        %1101 = vmatpush2.msra.mxu0 0.0
        %1102 = vmatprep.subr.mxu0 0.0
        %1103 = vmatpush2.msra.mxu0 0.0
        %1104 = vmatprep.subr.mxu0 0.0
        %1105 = vmatpush2.msra.mxu0 0.0
        %1106 = vmatprep.mubr.f32.mxu0 0.0
        %1107 = vmatmul.mubr.f32.gmra.mxu0 %v1040
        %v1108 = vpop.f32.mrf.mxu0
        %v1109 = vadd.f32 0.0, %v1108
        %v1110 = vpop.f32.mrf.mxu0
        %1111 = vdwg.mxu0
        %v1112 = vlaneseq
        %v1113 = vshrl.u32 %v1112, 7
        %v1114 = vsub.s32 0, %v1113
        %v1115 = vrot.slane %v1036, %v1114
        %v1116 = vsub.f32 %v530, %v1115
        %v1117 = vsub.f32 %v533, %v1115
        %v1118 = vlaneseq
        %v1119 = vshrl.u32 %v1118, 7
        %v1120 = vsub.s32 0, %v1119
        %v1121 = vrot.slane %v1109, %v1120
        %v1122 = vmul.f32 %v1116, %v1121
        %v1123 = vmul.f32 %v1117, %v1121
        %v1125 = vlaneseq
        %v1126 = vshrl.u32 %v1125, 7
        %v1127 = vsub.s32 0, %v1126
        %v1128 = vrot.slane %v536, %v1127
        %v1130 = vmul.f32 %v1122, %v1128
        %v1131 = vmul.f32 %v1123, %v1128
        %v1133 = vlaneseq
        %v1134 = vshrl.u32 %v1133, 7
        %v1135 = vsub.s32 0, %v1134
        %v1136 = vrot.slane %v537, %v1135
        %v1138 = vadd.f32 %v1130, %v1136
        %v1139 = vadd.f32 %v1131, %v1136
        %v1140 = vmax.f32 %v1138, 0.0
        %v1141 = vmax.f32 %v1139, 0.0
        %v1142 = vld [vmem:[%s6] sm:$0x3]
        %1143 = vst [vmem:[#allocation2] sm:$0xff] 0.0
        %1144 = vst [vmem:[#allocation2 + $0x18] sm:$0xff] 0.0
        %1145 = vst [vmem:[#allocation2 + $0x8] sm:$0xff] %v1140
        %1146 = vst [vmem:[#allocation2 + $0x10] sm:$0xff] %v1141
        %v1147 = vld [vmem:[#allocation2 + $0x7] sm:$0xff]
        %v1148 = vld [vmem:[#allocation2 + $0xf] sm:$0xff]
        %v1149 = vld [vmem:[#allocation2 + $0x9] sm:$0xff]
        %v1150 = vld [vmem:[#allocation2 + $0x11] sm:$0xff]
        %v1151 = vpack.c.bf16 %v1148, %v1147
        %v1152 = vpack.c.bf16 %v1141, %v1140
        %v1153 = vpack.c.bf16 %v1150, %v1149
        %v1154 = vld [vmem:[#allocation4] sm:$0xff]
        %v1155 = vld [vmem:[#allocation4 + $0x8] sm:$0xff]
        %v1156 = vld [vmem:[#allocation4 + $0x10] sm:$0xff]
        %v1157 = vld [vmem:[#allocation4 + $0x18] sm:$0xff]
        %v1158 = vld [vmem:[#allocation4 + $0x20] sm:$0xff]
        %v1159 = vld [vmem:[#allocation4 + $0x28] sm:$0xff]
        %v1160 = vld [vmem:[#allocation4 + $0x30] sm:$0xff]
        %v1161 = vld [vmem:[#allocation4 + $0x38] sm:$0xff]
        %v1162 = vld [vmem:[#allocation4 + $0x40] sm:$0xff]
        %v1163 = vld [vmem:[#allocation4 + $0x48] sm:$0xff]
        %v1164 = vld [vmem:[#allocation4 + $0x50] sm:$0xff]
        %v1165 = vld [vmem:[#allocation4 + $0x58] sm:$0xff]
        %v1166 = vld [vmem:[#allocation4 + $0x60] sm:$0xff]
        %v1167 = vld [vmem:[#allocation4 + $0x68] sm:$0xff]
        %v1168 = vld [vmem:[#allocation4 + $0x70] sm:$0xff]
        %v1169 = vld [vmem:[#allocation4 + $0x78] sm:$0xff]
        %v1170 = vld [vmem:[#allocation4 + $0x80] sm:$0xff]
        %v1171 = vld [vmem:[#allocation4 + $0x88] sm:$0xff]
        %v1172 = vld [vmem:[#allocation4 + $0x90] sm:$0xff]
        %v1173 = vld [vmem:[#allocation4 + $0x98] sm:$0xff]
        %v1174 = vld [vmem:[#allocation4 + $0xa0] sm:$0xff]
        %v1175 = vld [vmem:[#allocation4 + $0xa8] sm:$0xff]
        %v1176 = vld [vmem:[#allocation4 + $0xb0] sm:$0xff]
        %v1177 = vld [vmem:[#allocation4 + $0xb8] sm:$0xff]
        %v1178 = vld [vmem:[#allocation4 + $0xc0] sm:$0xff]
        %v1179 = vld [vmem:[#allocation4 + $0xc8] sm:$0xff]
        %v1180 = vld [vmem:[#allocation4 + $0xd0] sm:$0xff]
        %v1181 = vld [vmem:[#allocation4 + $0xd8] sm:$0xff]
        %v1182 = vld [vmem:[#allocation4 + $0xe0] sm:$0xff]
        %v1183 = vld [vmem:[#allocation4 + $0xe8] sm:$0xff]
        %v1184 = vld [vmem:[#allocation4 + $0xf0] sm:$0xff]
        %v1185 = vld [vmem:[#allocation4 + $0xf8] sm:$0xff]
        %v1186 = vld [vmem:[#allocation4 + $0x100] sm:$0xff]
        %v1187 = vld [vmem:[#allocation4 + $0x108] sm:$0xff]
        %v1188 = vld [vmem:[#allocation4 + $0x110] sm:$0xff]
        %v1189 = vld [vmem:[#allocation4 + $0x118] sm:$0xff]
        %v1190 = vld [vmem:[#allocation4 + $0x120] sm:$0xff]
        %v1191 = vld [vmem:[#allocation4 + $0x128] sm:$0xff]
        %v1192 = vld [vmem:[#allocation4 + $0x130] sm:$0xff]
        %v1193 = vld [vmem:[#allocation4 + $0x138] sm:$0xff]
        %v1194 = vld [vmem:[#allocation4 + $0x140] sm:$0xff]
        %v1195 = vld [vmem:[#allocation4 + $0x148] sm:$0xff]
        %v1196 = vld [vmem:[#allocation4 + $0x150] sm:$0xff]
        %v1197 = vld [vmem:[#allocation4 + $0x158] sm:$0xff]
        %v1198 = vld [vmem:[#allocation4 + $0x160] sm:$0xff]
        %v1199 = vld [vmem:[#allocation4 + $0x168] sm:$0xff]
        %v1200 = vld [vmem:[#allocation4 + $0x170] sm:$0xff]
        %v1201 = vld [vmem:[#allocation4 + $0x178] sm:$0xff]
        %v1203 = vlaneseq
        %v1204 = vshrl.u32 %v1203, 7
        %v1205 = vsub.s32 0, %v1204
        %v1206 = vrot.slane %v1142, %v1205
        %v1207 = vlaneseq
        %v1208 = vshrl.u32 %v1207, 7
        %v1209 = vsub.s32 1, %v1208
        %v1210 = vrot.slane %v1142, %v1209
        %v1261 = vunpack.c.l.b16 %v1154
        %v1262 = vunpack.c.h.b16 %v1154
        %v1263 = vunpack.c.l.b16 %v1155
        %v1264 = vunpack.c.h.b16 %v1155
        %v1265 = vunpack.c.l.b16 %v1156
        %v1266 = vunpack.c.h.b16 %v1156
        %v1267 = vunpack.c.l.b16 %v1157
        %v1268 = vunpack.c.h.b16 %v1157
        %v1269 = vunpack.c.l.b16 %v1158
        %v1270 = vunpack.c.h.b16 %v1158
        %v1271 = vunpack.c.l.b16 %v1159
        %v1272 = vunpack.c.h.b16 %v1159
        %v1273 = vunpack.c.l.b16 %v1160
        %v1274 = vunpack.c.h.b16 %v1160
        %v1275 = vunpack.c.l.b16 %v1161
        %v1276 = vunpack.c.h.b16 %v1161
        %v1277 = vunpack.c.l.b16 %v1162
        %v1278 = vunpack.c.h.b16 %v1162
        %v1279 = vunpack.c.l.b16 %v1163
        %v1280 = vunpack.c.h.b16 %v1163
        %v1281 = vunpack.c.l.b16 %v1164
        %v1282 = vunpack.c.h.b16 %v1164
        %v1283 = vunpack.c.l.b16 %v1165
        %v1284 = vunpack.c.h.b16 %v1165
        %v1285 = vunpack.c.l.b16 %v1166
        %v1286 = vunpack.c.h.b16 %v1166
        %v1287 = vunpack.c.l.b16 %v1167
        %v1288 = vunpack.c.h.b16 %v1167
        %v1289 = vunpack.c.l.b16 %v1168
        %v1290 = vunpack.c.h.b16 %v1168
        %v1291 = vunpack.c.l.b16 %v1169
        %v1292 = vunpack.c.h.b16 %v1169
        %v1293 = vunpack.c.l.b16 %v1170
        %v1294 = vunpack.c.h.b16 %v1170
        %v1295 = vunpack.c.l.b16 %v1171
        %v1296 = vunpack.c.h.b16 %v1171
        %v1297 = vunpack.c.l.b16 %v1172
        %v1298 = vunpack.c.h.b16 %v1172
        %v1299 = vunpack.c.l.b16 %v1173
        %v1300 = vunpack.c.h.b16 %v1173
        %v1301 = vunpack.c.l.b16 %v1174
        %v1302 = vunpack.c.h.b16 %v1174
        %v1303 = vunpack.c.l.b16 %v1175
        %v1304 = vunpack.c.h.b16 %v1175
        %v1305 = vunpack.c.l.b16 %v1176
        %v1306 = vunpack.c.h.b16 %v1176
        %v1307 = vunpack.c.l.b16 %v1177
        %v1308 = vunpack.c.h.b16 %v1177
        %v1309 = vunpack.c.l.b16 %v1178
        %v1310 = vunpack.c.h.b16 %v1178
        %v1311 = vunpack.c.l.b16 %v1179
        %v1312 = vunpack.c.h.b16 %v1179
        %v1313 = vunpack.c.l.b16 %v1180
        %v1314 = vunpack.c.h.b16 %v1180
        %v1315 = vunpack.c.l.b16 %v1181
        %v1316 = vunpack.c.h.b16 %v1181
        %v1317 = vunpack.c.l.b16 %v1182
        %v1318 = vunpack.c.h.b16 %v1182
        %v1319 = vunpack.c.l.b16 %v1183
        %v1320 = vunpack.c.h.b16 %v1183
        %v1321 = vunpack.c.l.b16 %v1184
        %v1322 = vunpack.c.h.b16 %v1184
        %v1323 = vunpack.c.l.b16 %v1185
        %v1324 = vunpack.c.h.b16 %v1185
        %v1325 = vunpack.c.l.b16 %v1186
        %v1326 = vunpack.c.h.b16 %v1186
        %v1327 = vunpack.c.l.b16 %v1187
        %v1328 = vunpack.c.h.b16 %v1187
        %v1329 = vunpack.c.l.b16 %v1188
        %v1330 = vunpack.c.h.b16 %v1188
        %v1331 = vunpack.c.l.b16 %v1189
        %v1332 = vunpack.c.h.b16 %v1189
        %v1333 = vunpack.c.l.b16 %v1190
        %v1334 = vunpack.c.h.b16 %v1190
        %v1335 = vunpack.c.l.b16 %v1191
        %v1336 = vunpack.c.h.b16 %v1191
        %v1337 = vunpack.c.l.b16 %v1192
        %v1338 = vunpack.c.h.b16 %v1192
        %v1339 = vunpack.c.l.b16 %v1193
        %v1340 = vunpack.c.h.b16 %v1193
        %v1341 = vunpack.c.l.b16 %v1194
        %v1342 = vunpack.c.h.b16 %v1194
        %v1343 = vunpack.c.l.b16 %v1195
        %v1344 = vunpack.c.h.b16 %v1195
        %v1345 = vunpack.c.l.b16 %v1196
        %v1346 = vunpack.c.h.b16 %v1196
        %v1347 = vunpack.c.l.b16 %v1197
        %v1348 = vunpack.c.h.b16 %v1197
        %v1349 = vunpack.c.l.b16 %v1198
        %v1350 = vunpack.c.h.b16 %v1198
        %v1351 = vunpack.c.l.b16 %v1199
        %v1352 = vunpack.c.h.b16 %v1199
        %v1353 = vunpack.c.l.b16 %v1200
        %v1354 = vunpack.c.h.b16 %v1200
        %v1355 = vunpack.c.l.b16 %v1201
        %v1356 = vunpack.c.h.b16 %v1201
        %v1357 = vpack.c.b16 %v1263, %v1261
        %v1358 = vpack.c.b16 %v1264, %v1262
        %v1359 = vpack.c.b16 %v1267, %v1265
        %v1360 = vpack.c.b16 %v1268, %v1266
        %v1361 = vpack.c.b16 %v1271, %v1269
        %v1362 = vpack.c.b16 %v1272, %v1270
        %v1363 = vpack.c.b16 %v1275, %v1273
        %v1364 = vpack.c.b16 %v1276, %v1274
        %v1365 = vpack.c.b16 %v1279, %v1277
        %v1366 = vpack.c.b16 %v1280, %v1278
        %v1367 = vpack.c.b16 %v1283, %v1281
        %v1368 = vpack.c.b16 %v1284, %v1282
        %v1369 = vpack.c.b16 %v1287, %v1285
        %v1370 = vpack.c.b16 %v1288, %v1286
        %v1371 = vpack.c.b16 %v1291, %v1289
        %v1372 = vpack.c.b16 %v1292, %v1290
        %v1373 = vpack.c.b16 %v1295, %v1293
        %v1374 = vpack.c.b16 %v1296, %v1294
        %v1375 = vpack.c.b16 %v1299, %v1297
        %v1376 = vpack.c.b16 %v1300, %v1298
        %v1377 = vpack.c.b16 %v1303, %v1301
        %v1378 = vpack.c.b16 %v1304, %v1302
        %v1379 = vpack.c.b16 %v1307, %v1305
        %v1380 = vpack.c.b16 %v1308, %v1306
        %v1381 = vpack.c.b16 %v1311, %v1309
        %v1382 = vpack.c.b16 %v1312, %v1310
        %v1383 = vpack.c.b16 %v1315, %v1313
        %v1384 = vpack.c.b16 %v1316, %v1314
        %v1385 = vpack.c.b16 %v1319, %v1317
        %v1386 = vpack.c.b16 %v1320, %v1318
        %v1387 = vpack.c.b16 %v1323, %v1321
        %v1388 = vpack.c.b16 %v1324, %v1322
        %v1389 = vpack.c.b16 %v1327, %v1325
        %v1390 = vpack.c.b16 %v1328, %v1326
        %v1391 = vpack.c.b16 %v1331, %v1329
        %v1392 = vpack.c.b16 %v1332, %v1330
        %v1393 = vpack.c.b16 %v1335, %v1333
        %v1394 = vpack.c.b16 %v1336, %v1334
        %v1395 = vpack.c.b16 %v1339, %v1337
        %v1396 = vpack.c.b16 %v1340, %v1338
        %v1397 = vpack.c.b16 %v1343, %v1341
        %v1398 = vpack.c.b16 %v1344, %v1342
        %v1399 = vpack.c.b16 %v1347, %v1345
        %v1400 = vpack.c.b16 %v1348, %v1346
        %v1401 = vpack.c.b16 %v1351, %v1349
        %v1402 = vpack.c.b16 %v1352, %v1350
        %v1403 = vpack.c.b16 %v1355, %v1353
        %v1404 = vpack.c.b16 %v1356, %v1354
        %1453 = vmatprep.subr.bf16.mxu0 %v1372
        %1454 = vmatpush1.bf16.msra.mxu0 %v1371
        %1455 = vmatprep.subr.bf16.mxu0 %v1370
        %1456 = vmatpush1.bf16.msra.mxu0 %v1369
        %1457 = vmatprep.subr.bf16.mxu0 %v1368
        %1458 = vmatpush1.bf16.msra.mxu0 %v1367
        %1459 = vmatprep.subr.bf16.mxu0 %v1366
        %1460 = vmatpush1.bf16.msra.mxu0 %v1365
        %1461 = vmatprep.subr.bf16.mxu0 %v1364
        %1462 = vmatpush1.bf16.msra.mxu0 %v1363
        %1463 = vmatprep.subr.bf16.mxu0 %v1362
        %1464 = vmatpush1.bf16.msra.mxu0 %v1361
        %1465 = vmatprep.subr.bf16.mxu0 %v1360
        %1466 = vmatpush1.bf16.msra.mxu0 %v1359
        %1467 = vmatprep.subr.bf16.mxu0 %v1358
        %1468 = vmatpush1.bf16.msra.mxu0 %v1357
        %1469 = vmatprep.subr.bf16.mxu0 %v1388
        %1470 = vmatpush2.bf16.msra.mxu0 %v1387
        %1471 = vmatprep.subr.bf16.mxu0 %v1386
        %1472 = vmatpush2.bf16.msra.mxu0 %v1385
        %1473 = vmatprep.subr.bf16.mxu0 %v1384
        %1474 = vmatpush2.bf16.msra.mxu0 %v1383
        %1475 = vmatprep.subr.bf16.mxu0 %v1382
        %1476 = vmatpush2.bf16.msra.mxu0 %v1381
        %1477 = vmatprep.subr.bf16.mxu0 %v1380
        %1478 = vmatpush2.bf16.msra.mxu0 %v1379
        %1479 = vmatprep.subr.bf16.mxu0 %v1378
        %1480 = vmatpush2.bf16.msra.mxu0 %v1377
        %1481 = vmatprep.subr.bf16.mxu0 %v1376
        %1482 = vmatpush2.bf16.msra.mxu0 %v1375
        %1483 = vmatprep.subr.bf16.mxu0 %v1374
        %1484 = vmatpush2.bf16.msra.mxu0 %v1373
        %1485 = vmatprep.mubr.bf16.mxu0 %v1152
        %1486 = vmatmul.mubr.bf16.gmra.mxu0 %v1151
        %v1487 = vpop.f32.mrf.mxu0
        %v1488 = vadd.f32 %v1206, %v1487
        %v1489 = vpop.f32.mrf.mxu0
        %v1490 = vadd.f32 %v1210, %v1489
        %v1491 = vpop.f32.mrf.mxu0
        %v1492 = vadd.f32 %v1206, %v1491
        %v1493 = vpop.f32.mrf.mxu0
        %v1494 = vadd.f32 %v1210, %v1493
        %1495 = vdwg.mxu0
        %1496 = vmatprep.subr.bf16.mxu0 %v1404
        %1497 = vmatpush1.bf16.msra.mxu0 %v1403
        %1498 = vmatprep.subr.bf16.mxu0 %v1402
        %1499 = vmatpush1.bf16.msra.mxu0 %v1401
        %1500 = vmatprep.subr.bf16.mxu0 %v1400
        %1501 = vmatpush1.bf16.msra.mxu0 %v1399
        %1502 = vmatprep.subr.bf16.mxu0 %v1398
        %1503 = vmatpush1.bf16.msra.mxu0 %v1397
        %1504 = vmatprep.subr.bf16.mxu0 %v1396
        %1505 = vmatpush1.bf16.msra.mxu0 %v1395
        %1506 = vmatprep.subr.bf16.mxu0 %v1394
        %1507 = vmatpush1.bf16.msra.mxu0 %v1393
        %1508 = vmatprep.subr.bf16.mxu0 %v1392
        %1509 = vmatpush1.bf16.msra.mxu0 %v1391
        %1510 = vmatprep.subr.bf16.mxu0 %v1390
        %1511 = vmatpush1.bf16.msra.mxu0 %v1389
        %1512 = vmatprep.subr.bf16.mxu0 0
        %1513 = vmatpush2.bf16.msra.mxu0 0
        %1514 = vmatprep.subr.bf16.mxu0 0
        %1515 = vmatpush2.bf16.msra.mxu0 0
        %1516 = vmatprep.subr.bf16.mxu0 0
        %1517 = vmatpush2.bf16.msra.mxu0 0
        %1518 = vmatprep.subr.bf16.mxu0 0
        %1519 = vmatpush2.bf16.msra.mxu0 0
        %1520 = vmatprep.subr.bf16.mxu0 0
        %1521 = vmatpush2.bf16.msra.mxu0 0
        %1522 = vmatprep.subr.bf16.mxu0 0
        %1523 = vmatpush2.bf16.msra.mxu0 0
        %1524 = vmatprep.subr.bf16.mxu0 0
        %1525 = vmatpush2.bf16.msra.mxu0 0
        %1526 = vmatprep.subr.bf16.mxu0 0
        %1527 = vmatpush2.bf16.msra.mxu0 0
        %1528 = vmatprep.mubr.bf16.mxu0 0
        %1529 = vmatmul.mubr.bf16.gmra.mxu0 %v1153
        %v1530 = vpop.f32.mrf.mxu0
        %v1531 = vadd.f32 %v1488, %v1530
        %v1532 = vpop.f32.mrf.mxu0
        %v1533 = vadd.f32 %v1490, %v1532
        %v1534 = vpop.f32.mrf.mxu0
        %v1535 = vadd.f32 %v1492, %v1534
        %v1536 = vpop.f32.mrf.mxu0
        %v1537 = vadd.f32 %v1494, %v1536
        %1538 = vdwg.mxu0
        %v1539 = vld [vmem:[%s7] sm:$0x3]
        %v1540 = vld [vmem:[%s8] sm:$0x3]
        %1541 = vmatprep.subr.mxu0 0.0
        %1542 = vmatpush1.msra.mxu0 0.0
        %1543 = vmatprep.subr.mxu0 0.0
        %1544 = vmatpush1.msra.mxu0 0.0
        %1545 = vmatprep.subr.mxu0 0.0
        %1546 = vmatpush1.msra.mxu0 0.0
        %1547 = vmatprep.subr.mxu0 0.0
        %1548 = vmatpush1.msra.mxu0 0.0
        %1549 = vmatprep.subr.mxu0 0.0
        %1550 = vmatpush1.msra.mxu0 0.0
        %1551 = vmatprep.subr.mxu0 0.0
        %1552 = vmatpush1.msra.mxu0 0.0
        %1553 = vmatprep.subr.mxu0 0.0
        %1554 = vmatpush1.msra.mxu0 0.0
        %1555 = vmatprep.subr.mxu0 0.0
        %1556 = vmatpush1.msra.mxu0 0.0
        %1557 = vmatprep.subr.mxu0 0.0
        %1558 = vmatpush1.msra.mxu0 0.0
        %1559 = vmatprep.subr.mxu0 0.0
        %1560 = vmatpush1.msra.mxu0 0.0
        %1561 = vmatprep.subr.mxu0 0.0
        %1562 = vmatpush1.msra.mxu0 0.0
        %1563 = vmatprep.subr.mxu0 0.0
        %1564 = vmatpush1.msra.mxu0 0.0
        %1565 = vmatprep.subr.mxu0 0.0
        %1566 = vmatpush1.msra.mxu0 0.0
        %1567 = vmatprep.subr.mxu0 0.0
        %1568 = vmatpush1.msra.mxu0 0.0
        %1569 = vmatprep.subr.mxu0 %v1537
        %1570 = vmatpush1.msra.mxu0 %v1535
        %1571 = vmatprep.subr.mxu0 %v1533
        %1572 = vmatpush1.msra.mxu0 %v1531
        %1573 = vmatprep.subr.mxu0 0.0
        %1574 = vmatpush2.msra.mxu0 0.0
        %1575 = vmatprep.subr.mxu0 0.0
        %1576 = vmatpush2.msra.mxu0 0.0
        %1577 = vmatprep.subr.mxu0 0.0
        %1578 = vmatpush2.msra.mxu0 0.0
        %1579 = vmatprep.subr.mxu0 0.0
        %1580 = vmatpush2.msra.mxu0 0.0
        %1581 = vmatprep.subr.mxu0 0.0
        %1582 = vmatpush2.msra.mxu0 0.0
        %1583 = vmatprep.subr.mxu0 0.0
        %1584 = vmatpush2.msra.mxu0 0.0
        %1585 = vmatprep.subr.mxu0 0.0
        %1586 = vmatpush2.msra.mxu0 0.0
        %1587 = vmatprep.subr.mxu0 0.0
        %1588 = vmatpush2.msra.mxu0 0.0
        %1589 = vmatprep.subr.mxu0 0.0
        %1590 = vmatpush2.msra.mxu0 0.0
        %1591 = vmatprep.subr.mxu0 0.0
        %1592 = vmatpush2.msra.mxu0 0.0
        %1593 = vmatprep.subr.mxu0 0.0
        %1594 = vmatpush2.msra.mxu0 0.0
        %1595 = vmatprep.subr.mxu0 0.0
        %1596 = vmatpush2.msra.mxu0 0.0
        %1597 = vmatprep.subr.mxu0 0.0
        %1598 = vmatpush2.msra.mxu0 0.0
        %1599 = vmatprep.subr.mxu0 0.0
        %1600 = vmatpush2.msra.mxu0 0.0
        %1601 = vmatprep.subr.mxu0 0.0
        %1602 = vmatpush2.msra.mxu0 0.0
        %1603 = vmatprep.subr.mxu0 0.0
        %1604 = vmatpush2.msra.mxu0 0.0
        %1605 = vmatprep.mubr.f32.mxu0 0.0
        %1606 = vmatmul.mubr.f32.gmra.mxu0 %v540
        %v1607 = vpop.f32.mrf.mxu0
        %v1608 = vadd.f32 0.0, %v1607
        %v1609 = vpop.f32.mrf.mxu0
        %v1610 = vadd.f32 0.0, %v1609
        %1611 = vdwg.mxu0
        %v1612 = vmul.f32 %v1531, %v1531
        %v1613 = vmul.f32 %v1533, %v1533
        %v1614 = vmul.f32 %v1535, %v1535
        %v1615 = vmul.f32 %v1537, %v1537
        %1616 = vmatprep.subr.mxu0 0.0
        %1617 = vmatpush1.msra.mxu0 0.0
        %1618 = vmatprep.subr.mxu0 0.0
        %1619 = vmatpush1.msra.mxu0 0.0
        %1620 = vmatprep.subr.mxu0 0.0
        %1621 = vmatpush1.msra.mxu0 0.0
        %1622 = vmatprep.subr.mxu0 0.0
        %1623 = vmatpush1.msra.mxu0 0.0
        %1624 = vmatprep.subr.mxu0 0.0
        %1625 = vmatpush1.msra.mxu0 0.0
        %1626 = vmatprep.subr.mxu0 0.0
        %1627 = vmatpush1.msra.mxu0 0.0
        %1628 = vmatprep.subr.mxu0 0.0
        %1629 = vmatpush1.msra.mxu0 0.0
        %1630 = vmatprep.subr.mxu0 0.0
        %1631 = vmatpush1.msra.mxu0 0.0
        %1632 = vmatprep.subr.mxu0 0.0
        %1633 = vmatpush1.msra.mxu0 0.0
        %1634 = vmatprep.subr.mxu0 0.0
        %1635 = vmatpush1.msra.mxu0 0.0
        %1636 = vmatprep.subr.mxu0 0.0
        %1637 = vmatpush1.msra.mxu0 0.0
        %1638 = vmatprep.subr.mxu0 0.0
        %1639 = vmatpush1.msra.mxu0 0.0
        %1640 = vmatprep.subr.mxu0 0.0
        %1641 = vmatpush1.msra.mxu0 0.0
        %1642 = vmatprep.subr.mxu0 0.0
        %1643 = vmatpush1.msra.mxu0 0.0
        %1644 = vmatprep.subr.mxu0 %v1615
        %1645 = vmatpush1.msra.mxu0 %v1614
        %1646 = vmatprep.subr.mxu0 %v1613
        %1647 = vmatpush1.msra.mxu0 %v1612
        %1648 = vmatprep.subr.mxu0 0.0
        %1649 = vmatpush2.msra.mxu0 0.0
        %1650 = vmatprep.subr.mxu0 0.0
        %1651 = vmatpush2.msra.mxu0 0.0
        %1652 = vmatprep.subr.mxu0 0.0
        %1653 = vmatpush2.msra.mxu0 0.0
        %1654 = vmatprep.subr.mxu0 0.0
        %1655 = vmatpush2.msra.mxu0 0.0
        %1656 = vmatprep.subr.mxu0 0.0
        %1657 = vmatpush2.msra.mxu0 0.0
        %1658 = vmatprep.subr.mxu0 0.0
        %1659 = vmatpush2.msra.mxu0 0.0
        %1660 = vmatprep.subr.mxu0 0.0
        %1661 = vmatpush2.msra.mxu0 0.0
        %1662 = vmatprep.subr.mxu0 0.0
        %1663 = vmatpush2.msra.mxu0 0.0
        %1664 = vmatprep.subr.mxu0 0.0
        %1665 = vmatpush2.msra.mxu0 0.0
        %1666 = vmatprep.subr.mxu0 0.0
        %1667 = vmatpush2.msra.mxu0 0.0
        %1668 = vmatprep.subr.mxu0 0.0
        %1669 = vmatpush2.msra.mxu0 0.0
        %1670 = vmatprep.subr.mxu0 0.0
        %1671 = vmatpush2.msra.mxu0 0.0
        %1672 = vmatprep.subr.mxu0 0.0
        %1673 = vmatpush2.msra.mxu0 0.0
        %1674 = vmatprep.subr.mxu0 0.0
        %1675 = vmatpush2.msra.mxu0 0.0
        %1676 = vmatprep.subr.mxu0 0.0
        %1677 = vmatpush2.msra.mxu0 0.0
        %1678 = vmatprep.subr.mxu0 0.0
        %1679 = vmatpush2.msra.mxu0 0.0
        %1680 = vmatprep.mubr.f32.mxu0 0.0
        %1681 = vmatmul.mubr.f32.gmra.mxu0 %v540
        %v1682 = vpop.f32.mrf.mxu0
        %v1683 = vadd.f32 0.0, %v1682
        %v1684 = vpop.f32.mrf.mxu0
        %v1685 = vadd.f32 0.0, %v1684
        %1686 = vdwg.mxu0
        %v1687 = vadd.s32 %v685, 128
        %v1688 = vadd.s32 %v685, 136
        %v1689 = vadd.s32 %v685, 144
        %v1690 = vadd.s32 %v685, 152
        %v1691 = vadd.s32 %v685, 160
        %v1692 = vadd.s32 %v685, 168
        %v1693 = vadd.s32 %v685, 176
        %v1694 = vadd.s32 %v685, 184
        %v1695 = vadd.s32 %v685, 192
        %v1696 = vadd.s32 %v685, 200
        %v1697 = vadd.s32 %v685, 208
        %v1698 = vadd.s32 %v685, 216
        %v1699 = vadd.s32 %v685, 224
        %v1700 = vadd.s32 %v685, 232
        %v1701 = vadd.s32 %v685, 240
        %v1702 = vadd.s32 %v685, 248
        %v1703 = vmul.u32 %v702, 8
        %vm1704 = vcmp.ge.s32.totalorder %v685, %v1703
        %vm1705 = vcmp.ge.s32.totalorder %v686, %v1703
        %vm1706 = vcmp.ge.s32.totalorder %v687, %v1703
        %vm1707 = vcmp.ge.s32.totalorder %v688, %v1703
        %vm1708 = vcmp.ge.s32.totalorder %v689, %v1703
        %vm1709 = vcmp.ge.s32.totalorder %v690, %v1703
        %vm1710 = vcmp.ge.s32.totalorder %v691, %v1703
        %vm1711 = vcmp.ge.s32.totalorder %v692, %v1703
        %vm1712 = vcmp.ge.s32.totalorder %v693, %v1703
        %vm1713 = vcmp.ge.s32.totalorder %v694, %v1703
        %vm1714 = vcmp.ge.s32.totalorder %v695, %v1703
        %vm1715 = vcmp.ge.s32.totalorder %v696, %v1703
        %vm1716 = vcmp.ge.s32.totalorder %v697, %v1703
        %vm1717 = vcmp.ge.s32.totalorder %v698, %v1703
        %vm1718 = vcmp.ge.s32.totalorder %v699, %v1703
        %vm1719 = vcmp.ge.s32.totalorder %v700, %v1703
        %vm1720 = vcmp.ge.s32.totalorder %v1687, %v1703
        %vm1721 = vcmp.ge.s32.totalorder %v1688, %v1703
        %vm1722 = vcmp.ge.s32.totalorder %v1689, %v1703
        %vm1723 = vcmp.ge.s32.totalorder %v1690, %v1703
        %vm1724 = vcmp.ge.s32.totalorder %v1691, %v1703
        %vm1725 = vcmp.ge.s32.totalorder %v1692, %v1703
        %vm1726 = vcmp.ge.s32.totalorder %v1693, %v1703
        %vm1727 = vcmp.ge.s32.totalorder %v1694, %v1703
        %vm1728 = vcmp.ge.s32.totalorder %v1695, %v1703
        %vm1729 = vcmp.ge.s32.totalorder %v1696, %v1703
        %vm1730 = vcmp.ge.s32.totalorder %v1697, %v1703
        %vm1731 = vcmp.ge.s32.totalorder %v1698, %v1703
        %vm1732 = vcmp.ge.s32.totalorder %v1699, %v1703
        %vm1733 = vcmp.ge.s32.totalorder %v1700, %v1703
        %vm1734 = vcmp.ge.s32.totalorder %v1701, %v1703
        %vm1735 = vcmp.ge.s32.totalorder %v1702, %v1703
        %v1736 = vmul.u32 %v720, 8
        %vm1737 = vcmp.lt.s32.totalorder %v685, %v1736
        %vm1738 = vcmp.lt.s32.totalorder %v686, %v1736
        %vm1739 = vcmp.lt.s32.totalorder %v687, %v1736
        %vm1740 = vcmp.lt.s32.totalorder %v688, %v1736
        %vm1741 = vcmp.lt.s32.totalorder %v689, %v1736
        %vm1742 = vcmp.lt.s32.totalorder %v690, %v1736
        %vm1743 = vcmp.lt.s32.totalorder %v691, %v1736
        %vm1744 = vcmp.lt.s32.totalorder %v692, %v1736
        %vm1745 = vcmp.lt.s32.totalorder %v693, %v1736
        %vm1746 = vcmp.lt.s32.totalorder %v694, %v1736
        %vm1747 = vcmp.lt.s32.totalorder %v695, %v1736
        %vm1748 = vcmp.lt.s32.totalorder %v696, %v1736
        %vm1749 = vcmp.lt.s32.totalorder %v697, %v1736
        %vm1750 = vcmp.lt.s32.totalorder %v698, %v1736
        %vm1751 = vcmp.lt.s32.totalorder %v699, %v1736
        %vm1752 = vcmp.lt.s32.totalorder %v700, %v1736
        %vm1753 = vcmp.lt.s32.totalorder %v1687, %v1736
        %vm1754 = vcmp.lt.s32.totalorder %v1688, %v1736
        %vm1755 = vcmp.lt.s32.totalorder %v1689, %v1736
        %vm1756 = vcmp.lt.s32.totalorder %v1690, %v1736
        %vm1757 = vcmp.lt.s32.totalorder %v1691, %v1736
        %vm1758 = vcmp.lt.s32.totalorder %v1692, %v1736
        %vm1759 = vcmp.lt.s32.totalorder %v1693, %v1736
        %vm1760 = vcmp.lt.s32.totalorder %v1694, %v1736
        %vm1761 = vcmp.lt.s32.totalorder %v1695, %v1736
        %vm1762 = vcmp.lt.s32.totalorder %v1696, %v1736
        %vm1763 = vcmp.lt.s32.totalorder %v1697, %v1736
        %vm1764 = vcmp.lt.s32.totalorder %v1698, %v1736
        %vm1765 = vcmp.lt.s32.totalorder %v1699, %v1736
        %vm1766 = vcmp.lt.s32.totalorder %v1700, %v1736
        %vm1767 = vcmp.lt.s32.totalorder %v1701, %v1736
        %vm1768 = vcmp.lt.s32.totalorder %v1702, %v1736
        %vm1769 = vmand %vm1704, %vm1737
        %vm1770 = vmand %vm1705, %vm1738
        %vm1771 = vmand %vm1706, %vm1739
        %vm1772 = vmand %vm1707, %vm1740
        %vm1773 = vmand %vm1708, %vm1741
        %vm1774 = vmand %vm1709, %vm1742
        %vm1775 = vmand %vm1710, %vm1743
        %vm1776 = vmand %vm1711, %vm1744
        %vm1777 = vmand %vm1712, %vm1745
        %vm1778 = vmand %vm1713, %vm1746
        %vm1779 = vmand %vm1714, %vm1747
        %vm1780 = vmand %vm1715, %vm1748
        %vm1781 = vmand %vm1716, %vm1749
        %vm1782 = vmand %vm1717, %vm1750
        %vm1783 = vmand %vm1718, %vm1751
        %vm1784 = vmand %vm1719, %vm1752
        %vm1785 = vmand %vm1720, %vm1753
        %vm1786 = vmand %vm1721, %vm1754
        %vm1787 = vmand %vm1722, %vm1755
        %vm1788 = vmand %vm1723, %vm1756
        %vm1789 = vmand %vm1724, %vm1757
        %vm1790 = vmand %vm1725, %vm1758
        %vm1791 = vmand %vm1726, %vm1759
        %vm1792 = vmand %vm1727, %vm1760
        %vm1793 = vmand %vm1728, %vm1761
        %vm1794 = vmand %vm1729, %vm1762
        %vm1795 = vmand %vm1730, %vm1763
        %vm1796 = vmand %vm1731, %vm1764
        %vm1797 = vmand %vm1732, %vm1765
        %vm1798 = vmand %vm1733, %vm1766
        %vm1799 = vmand %vm1734, %vm1767
        %vm1800 = vmand %vm1735, %vm1768
        %v1801 = vsel %vm1769, 1, 0
        %v1802 = vsel %vm1770, 1, 0
        %v1803 = vsel %vm1771, 1, 0
        %v1804 = vsel %vm1772, 1, 0
        %v1805 = vsel %vm1773, 1, 0
        %v1806 = vsel %vm1774, 1, 0
        %v1807 = vsel %vm1775, 1, 0
        %v1808 = vsel %vm1776, 1, 0
        %v1809 = vsel %vm1777, 1, 0
        %v1810 = vsel %vm1778, 1, 0
        %v1811 = vsel %vm1779, 1, 0
        %v1812 = vsel %vm1780, 1, 0
        %v1813 = vsel %vm1781, 1, 0
        %v1814 = vsel %vm1782, 1, 0
        %v1815 = vsel %vm1783, 1, 0
        %v1816 = vsel %vm1784, 1, 0
        %v1817 = vsel %vm1785, 1, 0
        %v1818 = vsel %vm1786, 1, 0
        %v1819 = vsel %vm1787, 1, 0
        %v1820 = vsel %vm1788, 1, 0
        %v1821 = vsel %vm1789, 1, 0
        %v1822 = vsel %vm1790, 1, 0
        %v1823 = vsel %vm1791, 1, 0
        %v1824 = vsel %vm1792, 1, 0
        %v1825 = vsel %vm1793, 1, 0
        %v1826 = vsel %vm1794, 1, 0
        %v1827 = vsel %vm1795, 1, 0
        %v1828 = vsel %vm1796, 1, 0
        %v1829 = vsel %vm1797, 1, 0
        %v1830 = vsel %vm1798, 1, 0
        %v1831 = vsel %vm1799, 1, 0
        %v1832 = vsel %vm1800, 1, 0
        %v1833 = vcvt.s32.f32 %v1801
        %v1834 = vcvt.s32.f32 %v1802
        %v1835 = vcvt.s32.f32 %v1803
        %v1836 = vcvt.s32.f32 %v1804
        %v1837 = vcvt.s32.f32 %v1805
        %v1838 = vcvt.s32.f32 %v1806
        %v1839 = vcvt.s32.f32 %v1807
        %v1840 = vcvt.s32.f32 %v1808
        %v1841 = vcvt.s32.f32 %v1809
        %v1842 = vcvt.s32.f32 %v1810
        %v1843 = vcvt.s32.f32 %v1811
        %v1844 = vcvt.s32.f32 %v1812
        %v1845 = vcvt.s32.f32 %v1813
        %v1846 = vcvt.s32.f32 %v1814
        %v1847 = vcvt.s32.f32 %v1815
        %v1848 = vcvt.s32.f32 %v1816
        %v1849 = vcvt.s32.f32 %v1817
        %v1850 = vcvt.s32.f32 %v1818
        %v1851 = vcvt.s32.f32 %v1819
        %v1852 = vcvt.s32.f32 %v1820
        %v1853 = vcvt.s32.f32 %v1821
        %v1854 = vcvt.s32.f32 %v1822
        %v1855 = vcvt.s32.f32 %v1823
        %v1856 = vcvt.s32.f32 %v1824
        %v1857 = vcvt.s32.f32 %v1825
        %v1858 = vcvt.s32.f32 %v1826
        %v1859 = vcvt.s32.f32 %v1827
        %v1860 = vcvt.s32.f32 %v1828
        %v1861 = vcvt.s32.f32 %v1829
        %v1862 = vcvt.s32.f32 %v1830
        %v1863 = vcvt.s32.f32 %v1831
        %v1864 = vcvt.s32.f32 %v1832
        %v1865 = vadd.s32 %v702, 128
        %v1866 = vmul.u32 %v685, 8
        %v1867 = vmul.u32 %v686, 8
        %v1868 = vmul.u32 %v687, 8
        %v1869 = vmul.u32 %v688, 8
        %vm1870 = vcmp.ge.s32.totalorder %v702, %v1866
        %vm1871 = vcmp.ge.s32.totalorder %v1865, %v1866
        %vm1872 = vcmp.ge.s32.totalorder %v702, %v1867
        %vm1873 = vcmp.ge.s32.totalorder %v1865, %v1867
        %vm1874 = vcmp.ge.s32.totalorder %v702, %v1868
        %vm1875 = vcmp.ge.s32.totalorder %v1865, %v1868
        %vm1876 = vcmp.ge.s32.totalorder %v702, %v1869
        %vm1877 = vcmp.ge.s32.totalorder %v1865, %v1869
        %v1878 = vmul.u32 %v794, 8
        %v1879 = vmul.u32 %v795, 8
        %v1880 = vmul.u32 %v796, 8
        %v1881 = vmul.u32 %v797, 8
        %vm1882 = vcmp.lt.s32.totalorder %v702, %v1878
        %vm1883 = vcmp.lt.s32.totalorder %v1865, %v1878
        %vm1884 = vcmp.lt.s32.totalorder %v702, %v1879
        %vm1885 = vcmp.lt.s32.totalorder %v1865, %v1879
        %vm1886 = vcmp.lt.s32.totalorder %v702, %v1880
        %vm1887 = vcmp.lt.s32.totalorder %v1865, %v1880
        %vm1888 = vcmp.lt.s32.totalorder %v702, %v1881
        %vm1889 = vcmp.lt.s32.totalorder %v1865, %v1881
        %vm1890 = vmand %vm1870, %vm1882
        %vm1891 = vmand %vm1871, %vm1883
        %vm1892 = vmand %vm1872, %vm1884
        %vm1893 = vmand %vm1873, %vm1885
        %vm1894 = vmand %vm1874, %vm1886
        %vm1895 = vmand %vm1875, %vm1887
        %vm1896 = vmand %vm1876, %vm1888
        %vm1897 = vmand %vm1877, %vm1889
        %v1898 = vsel %vm1890, 1, 0
        %v1899 = vsel %vm1891, 1, 0
        %v1900 = vsel %vm1892, 1, 0
        %v1901 = vsel %vm1893, 1, 0
        %v1902 = vsel %vm1894, 1, 0
        %v1903 = vsel %vm1895, 1, 0
        %v1904 = vsel %vm1896, 1, 0
        %v1905 = vsel %vm1897, 1, 0
        %v1906 = vcvt.s32.f32 %v1898
        %v1907 = vcvt.s32.f32 %v1899
        %v1908 = vcvt.s32.f32 %v1900
        %v1909 = vcvt.s32.f32 %v1901
        %v1910 = vcvt.s32.f32 %v1902
        %v1911 = vcvt.s32.f32 %v1903
        %v1912 = vcvt.s32.f32 %v1904
        %v1913 = vcvt.s32.f32 %v1905
        %1914 = vmatprep.subr.mxu0 0.0
        %1915 = vmatpush1.msra.mxu0 %v1848
        %1916 = vmatprep.subr.mxu0 0.0
        %1917 = vmatpush1.msra.mxu0 %v1847
        %1918 = vmatprep.subr.mxu0 0.0
        %1919 = vmatpush1.msra.mxu0 %v1846
        %1920 = vmatprep.subr.mxu0 0.0
        %1921 = vmatpush1.msra.mxu0 %v1845
        %1922 = vmatprep.subr.mxu0 0.0
        %1923 = vmatpush1.msra.mxu0 %v1844
        %1924 = vmatprep.subr.mxu0 0.0
        %1925 = vmatpush1.msra.mxu0 %v1843
        %1926 = vmatprep.subr.mxu0 0.0
        %1927 = vmatpush1.msra.mxu0 %v1842
        %1928 = vmatprep.subr.mxu0 0.0
        %1929 = vmatpush1.msra.mxu0 %v1841
        %1930 = vmatprep.subr.mxu0 0.0
        %1931 = vmatpush1.msra.mxu0 %v1840
        %1932 = vmatprep.subr.mxu0 0.0
        %1933 = vmatpush1.msra.mxu0 %v1839
        %1934 = vmatprep.subr.mxu0 0.0
        %1935 = vmatpush1.msra.mxu0 %v1838
        %1936 = vmatprep.subr.mxu0 0.0
        %1937 = vmatpush1.msra.mxu0 %v1837
        %1938 = vmatprep.subr.mxu0 0.0
        %1939 = vmatpush1.msra.mxu0 %v1836
        %1940 = vmatprep.subr.mxu0 0.0
        %1941 = vmatpush1.msra.mxu0 %v1835
        %1942 = vmatprep.subr.mxu0 0.0
        %1943 = vmatpush1.msra.mxu0 %v1834
        %1944 = vmatprep.subr.mxu0 0.0
        %1945 = vmatpush1.msra.mxu0 %v1833
        %1946 = vmatprep.subr.mxu0 0.0
        %1947 = vmatpush2.msra.mxu0 %v1864
        %1948 = vmatprep.subr.mxu0 0.0
        %1949 = vmatpush2.msra.mxu0 %v1863
        %1950 = vmatprep.subr.mxu0 0.0
        %1951 = vmatpush2.msra.mxu0 %v1862
        %1952 = vmatprep.subr.mxu0 0.0
        %1953 = vmatpush2.msra.mxu0 %v1861
        %1954 = vmatprep.subr.mxu0 0.0
        %1955 = vmatpush2.msra.mxu0 %v1860
        %1956 = vmatprep.subr.mxu0 0.0
        %1957 = vmatpush2.msra.mxu0 %v1859
        %1958 = vmatprep.subr.mxu0 0.0
        %1959 = vmatpush2.msra.mxu0 %v1858
        %1960 = vmatprep.subr.mxu0 0.0
        %1961 = vmatpush2.msra.mxu0 %v1857
        %1962 = vmatprep.subr.mxu0 0.0
        %1963 = vmatpush2.msra.mxu0 %v1856
        %1964 = vmatprep.subr.mxu0 0.0
        %1965 = vmatpush2.msra.mxu0 %v1855
        %1966 = vmatprep.subr.mxu0 0.0
        %1967 = vmatpush2.msra.mxu0 %v1854
        %1968 = vmatprep.subr.mxu0 0.0
        %1969 = vmatpush2.msra.mxu0 %v1853
        %1970 = vmatprep.subr.mxu0 0.0
        %1971 = vmatpush2.msra.mxu0 %v1852
        %1972 = vmatprep.subr.mxu0 0.0
        %1973 = vmatpush2.msra.mxu0 %v1851
        %1974 = vmatprep.subr.mxu0 0.0
        %1975 = vmatpush2.msra.mxu0 %v1850
        %1976 = vmatprep.subr.mxu0 0.0
        %1977 = vmatpush2.msra.mxu0 %v1849
        %1978 = vmatprep.mubr.f32.mxu0 %v1610
        %1979 = vmatmul.mubr.f32.gmra.mxu0 %v1608
        %v1980 = vpop.f32.mrf.mxu0
        %v1981 = vadd.f32 0.0, %v1980
        %v1982 = vpop.f32.mrf.mxu0
        %1983 = vdwg.mxu0
        %v1984 = vmul.f32 %v1981, 0.0078125
        %1985 = vmatprep.subr.mxu0 0.0
        %1986 = vmatpush1.msra.mxu0 %v1848
        %1987 = vmatprep.subr.mxu0 0.0
        %1988 = vmatpush1.msra.mxu0 %v1847
        %1989 = vmatprep.subr.mxu0 0.0
        %1990 = vmatpush1.msra.mxu0 %v1846
        %1991 = vmatprep.subr.mxu0 0.0
        %1992 = vmatpush1.msra.mxu0 %v1845
        %1993 = vmatprep.subr.mxu0 0.0
        %1994 = vmatpush1.msra.mxu0 %v1844
        %1995 = vmatprep.subr.mxu0 0.0
        %1996 = vmatpush1.msra.mxu0 %v1843
        %1997 = vmatprep.subr.mxu0 0.0
        %1998 = vmatpush1.msra.mxu0 %v1842
        %1999 = vmatprep.subr.mxu0 0.0
        %2000 = vmatpush1.msra.mxu0 %v1841
        %2001 = vmatprep.subr.mxu0 0.0
        %2002 = vmatpush1.msra.mxu0 %v1840
        %2003 = vmatprep.subr.mxu0 0.0
        %2004 = vmatpush1.msra.mxu0 %v1839
        %2005 = vmatprep.subr.mxu0 0.0
        %2006 = vmatpush1.msra.mxu0 %v1838
        %2007 = vmatprep.subr.mxu0 0.0
        %2008 = vmatpush1.msra.mxu0 %v1837
        %2009 = vmatprep.subr.mxu0 0.0
        %2010 = vmatpush1.msra.mxu0 %v1836
        %2011 = vmatprep.subr.mxu0 0.0
        %2012 = vmatpush1.msra.mxu0 %v1835
        %2013 = vmatprep.subr.mxu0 0.0
        %2014 = vmatpush1.msra.mxu0 %v1834
        %2015 = vmatprep.subr.mxu0 0.0
        %2016 = vmatpush1.msra.mxu0 %v1833
        %2017 = vmatprep.subr.mxu0 0.0
        %2018 = vmatpush2.msra.mxu0 %v1864
        %2019 = vmatprep.subr.mxu0 0.0
        %2020 = vmatpush2.msra.mxu0 %v1863
        %2021 = vmatprep.subr.mxu0 0.0
        %2022 = vmatpush2.msra.mxu0 %v1862
        %2023 = vmatprep.subr.mxu0 0.0
        %2024 = vmatpush2.msra.mxu0 %v1861
        %2025 = vmatprep.subr.mxu0 0.0
        %2026 = vmatpush2.msra.mxu0 %v1860
        %2027 = vmatprep.subr.mxu0 0.0
        %2028 = vmatpush2.msra.mxu0 %v1859
        %2029 = vmatprep.subr.mxu0 0.0
        %2030 = vmatpush2.msra.mxu0 %v1858
        %2031 = vmatprep.subr.mxu0 0.0
        %2032 = vmatpush2.msra.mxu0 %v1857
        %2033 = vmatprep.subr.mxu0 0.0
        %2034 = vmatpush2.msra.mxu0 %v1856
        %2035 = vmatprep.subr.mxu0 0.0
        %2036 = vmatpush2.msra.mxu0 %v1855
        %2037 = vmatprep.subr.mxu0 0.0
        %2038 = vmatpush2.msra.mxu0 %v1854
        %2039 = vmatprep.subr.mxu0 0.0
        %2040 = vmatpush2.msra.mxu0 %v1853
        %2041 = vmatprep.subr.mxu0 0.0
        %2042 = vmatpush2.msra.mxu0 %v1852
        %2043 = vmatprep.subr.mxu0 0.0
        %2044 = vmatpush2.msra.mxu0 %v1851
        %2045 = vmatprep.subr.mxu0 0.0
        %2046 = vmatpush2.msra.mxu0 %v1850
        %2047 = vmatprep.subr.mxu0 0.0
        %2048 = vmatpush2.msra.mxu0 %v1849
        %2049 = vmatprep.mubr.f32.mxu0 %v1685
        %2050 = vmatmul.mubr.f32.gmra.mxu0 %v1683
        %v2051 = vpop.f32.mrf.mxu0
        %v2052 = vadd.f32 0.0, %v2051
        %v2053 = vpop.f32.mrf.mxu0
        %2054 = vdwg.mxu0
        %v2055 = vmul.f32 %v2052, 0.0078125
        %v2056 = vmul.f32 %v1984, %v1984
        %v2057 = vsub.f32 %v2055, %v2056
        %v2058 = vmax.f32 %v2057, 0.0
        %v2059 = vadd.f32 %v2058, 1e-05
        %v2060 = vrsqrt.pop %v2059
        %v2062 = vsel %vm965, %v1984, 0
        %2064 = vmatprep.subr.mxu0 0.0
        %2065 = vmatpush1.msra.mxu0 0.0
        %2066 = vmatprep.subr.mxu0 0.0
        %2067 = vmatpush1.msra.mxu0 0.0
        %2068 = vmatprep.subr.mxu0 0.0
        %2069 = vmatpush1.msra.mxu0 0.0
        %2070 = vmatprep.subr.mxu0 0.0
        %2071 = vmatpush1.msra.mxu0 0.0
        %2072 = vmatprep.subr.mxu0 0.0
        %2073 = vmatpush1.msra.mxu0 0.0
        %2074 = vmatprep.subr.mxu0 0.0
        %2075 = vmatpush1.msra.mxu0 0.0
        %2076 = vmatprep.subr.mxu0 0.0
        %2077 = vmatpush1.msra.mxu0 0.0
        %2078 = vmatprep.subr.mxu0 0.0
        %2079 = vmatpush1.msra.mxu0 0.0
        %2080 = vmatprep.subr.mxu0 0.0
        %2081 = vmatpush1.msra.mxu0 0.0
        %2082 = vmatprep.subr.mxu0 0.0
        %2083 = vmatpush1.msra.mxu0 0.0
        %2084 = vmatprep.subr.mxu0 0.0
        %2085 = vmatpush1.msra.mxu0 0.0
        %2086 = vmatprep.subr.mxu0 0.0
        %2087 = vmatpush1.msra.mxu0 0.0
        %2088 = vmatprep.subr.mxu0 %v1913
        %2089 = vmatpush1.msra.mxu0 %v1912
        %2090 = vmatprep.subr.mxu0 %v1911
        %2091 = vmatpush1.msra.mxu0 %v1910
        %2092 = vmatprep.subr.mxu0 %v1909
        %2093 = vmatpush1.msra.mxu0 %v1908
        %2094 = vmatprep.subr.mxu0 %v1907
        %2095 = vmatpush1.msra.mxu0 %v1906
        %2096 = vmatprep.subr.mxu0 0.0
        %2097 = vmatpush2.msra.mxu0 0.0
        %2098 = vmatprep.subr.mxu0 0.0
        %2099 = vmatpush2.msra.mxu0 0.0
        %2100 = vmatprep.subr.mxu0 0.0
        %2101 = vmatpush2.msra.mxu0 0.0
        %2102 = vmatprep.subr.mxu0 0.0
        %2103 = vmatpush2.msra.mxu0 0.0
        %2104 = vmatprep.subr.mxu0 0.0
        %2105 = vmatpush2.msra.mxu0 0.0
        %2106 = vmatprep.subr.mxu0 0.0
        %2107 = vmatpush2.msra.mxu0 0.0
        %2108 = vmatprep.subr.mxu0 0.0
        %2109 = vmatpush2.msra.mxu0 0.0
        %2110 = vmatprep.subr.mxu0 0.0
        %2111 = vmatpush2.msra.mxu0 0.0
        %2112 = vmatprep.subr.mxu0 0.0
        %2113 = vmatpush2.msra.mxu0 0.0
        %2114 = vmatprep.subr.mxu0 0.0
        %2115 = vmatpush2.msra.mxu0 0.0
        %2116 = vmatprep.subr.mxu0 0.0
        %2117 = vmatpush2.msra.mxu0 0.0
        %2118 = vmatprep.subr.mxu0 0.0
        %2119 = vmatpush2.msra.mxu0 0.0
        %2120 = vmatprep.subr.mxu0 0.0
        %2121 = vmatpush2.msra.mxu0 0.0
        %2122 = vmatprep.subr.mxu0 0.0
        %2123 = vmatpush2.msra.mxu0 0.0
        %2124 = vmatprep.subr.mxu0 0.0
        %2125 = vmatpush2.msra.mxu0 0.0
        %2126 = vmatprep.subr.mxu0 0.0
        %2127 = vmatpush2.msra.mxu0 0.0
        %2128 = vmatprep.mubr.f32.mxu0 0.0
        %2129 = vmatmul.mubr.f32.gmra.mxu0 %v2062
        %v2130 = vpop.f32.mrf.mxu0
        %v2131 = vadd.f32 0.0, %v2130
        %v2132 = vpop.f32.mrf.mxu0
        %v2133 = vadd.f32 0.0, %v2132
        %2134 = vdwg.mxu0
        %v2136 = vsel %vm965, %v2060, 0
        %2138 = vmatprep.subr.mxu0 0.0
        %2139 = vmatpush1.msra.mxu0 0.0
        %2140 = vmatprep.subr.mxu0 0.0
        %2141 = vmatpush1.msra.mxu0 0.0
        %2142 = vmatprep.subr.mxu0 0.0
        %2143 = vmatpush1.msra.mxu0 0.0
        %2144 = vmatprep.subr.mxu0 0.0
        %2145 = vmatpush1.msra.mxu0 0.0
        %2146 = vmatprep.subr.mxu0 0.0
        %2147 = vmatpush1.msra.mxu0 0.0
        %2148 = vmatprep.subr.mxu0 0.0
        %2149 = vmatpush1.msra.mxu0 0.0
        %2150 = vmatprep.subr.mxu0 0.0
        %2151 = vmatpush1.msra.mxu0 0.0
        %2152 = vmatprep.subr.mxu0 0.0
        %2153 = vmatpush1.msra.mxu0 0.0
        %2154 = vmatprep.subr.mxu0 0.0
        %2155 = vmatpush1.msra.mxu0 0.0
        %2156 = vmatprep.subr.mxu0 0.0
        %2157 = vmatpush1.msra.mxu0 0.0
        %2158 = vmatprep.subr.mxu0 0.0
        %2159 = vmatpush1.msra.mxu0 0.0
        %2160 = vmatprep.subr.mxu0 0.0
        %2161 = vmatpush1.msra.mxu0 0.0
        %2162 = vmatprep.subr.mxu0 %v1913
        %2163 = vmatpush1.msra.mxu0 %v1912
        %2164 = vmatprep.subr.mxu0 %v1911
        %2165 = vmatpush1.msra.mxu0 %v1910
        %2166 = vmatprep.subr.mxu0 %v1909
        %2167 = vmatpush1.msra.mxu0 %v1908
        %2168 = vmatprep.subr.mxu0 %v1907
        %2169 = vmatpush1.msra.mxu0 %v1906
        %2170 = vmatprep.subr.mxu0 0.0
        %2171 = vmatpush2.msra.mxu0 0.0
        %2172 = vmatprep.subr.mxu0 0.0
        %2173 = vmatpush2.msra.mxu0 0.0
        %2174 = vmatprep.subr.mxu0 0.0
        %2175 = vmatpush2.msra.mxu0 0.0
        %2176 = vmatprep.subr.mxu0 0.0
        %2177 = vmatpush2.msra.mxu0 0.0
        %2178 = vmatprep.subr.mxu0 0.0
        %2179 = vmatpush2.msra.mxu0 0.0
        %2180 = vmatprep.subr.mxu0 0.0
        %2181 = vmatpush2.msra.mxu0 0.0
        %2182 = vmatprep.subr.mxu0 0.0
        %2183 = vmatpush2.msra.mxu0 0.0
        %2184 = vmatprep.subr.mxu0 0.0
        %2185 = vmatpush2.msra.mxu0 0.0
        %2186 = vmatprep.subr.mxu0 0.0
        %2187 = vmatpush2.msra.mxu0 0.0
        %2188 = vmatprep.subr.mxu0 0.0
        %2189 = vmatpush2.msra.mxu0 0.0
        %2190 = vmatprep.subr.mxu0 0.0
        %2191 = vmatpush2.msra.mxu0 0.0
        %2192 = vmatprep.subr.mxu0 0.0
        %2193 = vmatpush2.msra.mxu0 0.0
        %2194 = vmatprep.subr.mxu0 0.0
        %2195 = vmatpush2.msra.mxu0 0.0
        %2196 = vmatprep.subr.mxu0 0.0
        %2197 = vmatpush2.msra.mxu0 0.0
        %2198 = vmatprep.subr.mxu0 0.0
        %2199 = vmatpush2.msra.mxu0 0.0
        %2200 = vmatprep.subr.mxu0 0.0
        %2201 = vmatpush2.msra.mxu0 0.0
        %2202 = vmatprep.mubr.f32.mxu0 0.0
        %2203 = vmatmul.mubr.f32.gmra.mxu0 %v2136
        %v2204 = vpop.f32.mrf.mxu0
        %v2205 = vadd.f32 0.0, %v2204
        %v2206 = vpop.f32.mrf.mxu0
        %v2207 = vadd.f32 0.0, %v2206
        %2208 = vdwg.mxu0
        %v2209 = vlaneseq
        %v2210 = vshrl.u32 %v2209, 7
        %v2211 = vsub.s32 0, %v2210
        %v2212 = vrot.slane %v2131, %v2211
        %v2213 = vlaneseq
        %v2214 = vshrl.u32 %v2213, 7
        %v2215 = vsub.s32 0, %v2214
        %v2216 = vrot.slane %v2133, %v2215
        %v2217 = vsub.f32 %v1531, %v2212
        %v2218 = vsub.f32 %v1533, %v2216
        %v2219 = vsub.f32 %v1535, %v2212
        %v2220 = vsub.f32 %v1537, %v2216
        %v2221 = vlaneseq
        %v2222 = vshrl.u32 %v2221, 7
        %v2223 = vsub.s32 0, %v2222
        %v2224 = vrot.slane %v2205, %v2223
        %v2225 = vlaneseq
        %v2226 = vshrl.u32 %v2225, 7
        %v2227 = vsub.s32 0, %v2226
        %v2228 = vrot.slane %v2207, %v2227
        %v2229 = vmul.f32 %v2217, %v2224
        %v2230 = vmul.f32 %v2218, %v2228
        %v2231 = vmul.f32 %v2219, %v2224
        %v2232 = vmul.f32 %v2220, %v2228
        %v2234 = vlaneseq
        %v2235 = vshrl.u32 %v2234, 7
        %v2236 = vsub.s32 0, %v2235
        %v2237 = vrot.slane %v1539, %v2236
        %v2238 = vlaneseq
        %v2239 = vshrl.u32 %v2238, 7
        %v2240 = vsub.s32 1, %v2239
        %v2241 = vrot.slane %v1539, %v2240
        %v2244 = vmul.f32 %v2229, %v2237
        %v2245 = vmul.f32 %v2230, %v2241
        %v2246 = vmul.f32 %v2231, %v2237
        %v2247 = vmul.f32 %v2232, %v2241
        %v2249 = vlaneseq
        %v2250 = vshrl.u32 %v2249, 7
        %v2251 = vsub.s32 0, %v2250
        %v2252 = vrot.slane %v1540, %v2251
        %v2253 = vlaneseq
        %v2254 = vshrl.u32 %v2253, 7
        %v2255 = vsub.s32 1, %v2254
        %v2256 = vrot.slane %v1540, %v2255
        %v2259 = vadd.f32 %v2244, %v2252
        %v2260 = vadd.f32 %v2245, %v2256
        %v2261 = vadd.f32 %v2246, %v2252
        %v2262 = vadd.f32 %v2247, %v2256
        %v2263 = vmax.f32 %v2259, 0.0
        %v2264 = vmax.f32 %v2260, 0.0
        %v2265 = vmax.f32 %v2261, 0.0
        %v2266 = vmax.f32 %v2262, 0.0
        %v2267 = vld [vmem:[%s10] sm:$0xf]
        %2268 = vst [vmem:[#allocation3] sm:$0xff] 0.0
        %2269 = vst [vmem:[#allocation3 + $0x8] sm:$0xff] 0.0
        %2270 = vst [vmem:[#allocation3 + $0x30] sm:$0xff] 0.0
        %2271 = vst [vmem:[#allocation3 + $0x38] sm:$0xff] 0.0
        %2272 = vst [vmem:[#allocation3 + $0x10] sm:$0xff] %v2263
        %2273 = vst [vmem:[#allocation3 + $0x18] sm:$0xff] %v2264
        %2274 = vst [vmem:[#allocation3 + $0x20] sm:$0xff] %v2265
        %2275 = vst [vmem:[#allocation3 + $0x28] sm:$0xff] %v2266
        %v2276 = vld [vmem:[#allocation3] sm:$0x80]
        %v2277 = vld [vmem:[#allocation3 + $0x8] sm:$0x80]
        %v2278 = vld [vmem:[#allocation3 + $0x10] sm:$0xff]
        %v2279 = vld [vmem:[#allocation3 + $0x18] sm:$0xff]
        %v2280 = vld [vmem:[#allocation3 + $0x20] sm:$0x7f]
        %v2281 = vld [vmem:[#allocation3 + $0x28] sm:$0x7f]
        %v2282 = vld [vmem:[#allocation3 + $0x10] sm:$0xfe]
        %v2283 = vld [vmem:[#allocation3 + $0x18] sm:$0xfe]
        %v2284 = vld [vmem:[#allocation3 + $0x20] sm:$0xff]
        %v2285 = vld [vmem:[#allocation3 + $0x28] sm:$0xff]
        %v2286 = vld [vmem:[#allocation3 + $0x30] sm:$0x1]
        %v2287 = vld [vmem:[#allocation3 + $0x38] sm:$0x1]
        %vm2292 = vcmask 1046528
        %v2293 = vrot.slane %v2263, 1
        %v2294 = vrot.slane %v2264, 1
        %v2295 = vrot.slane %v2265, 1
        %v2296 = vsel %vm2292, %v2293, %v2295
        %v2297 = vrot.slane %v2266, 1
        %v2298 = vsel %vm2292, %v2294, %v2297
        %v2311 = vrot.slane %v2282, 2
        %v2312 = vrot.slane %v2283, 2
        %v2313 = vrot.slane %v2284, 2
        %v2314 = vsel %vm491, %v2311, %v2313
        %v2315 = vrot.slane %v2285, 2
        %v2316 = vsel %vm491, %v2312, %v2315
        %v2317 = vrot.slane %v2286, 2
        %v2318 = vsel %vm491, %v2313, %v2317
        %v2319 = vrot.slane %v2287, 2
        %v2320 = vsel %vm491, %v2315, %v2319
        %v2327 = vpack.c.bf16 %v2278, %v2276
        %v2328 = vpack.c.bf16 %v2279, %v2277
        %v2329 = vpack.c.bf16 %v2296, %v2293
        %v2330 = vpack.c.bf16 %v2298, %v2294
        %v2331 = vpack.c.bf16 %v2314, %v2311
        %v2332 = vpack.c.bf16 %v2316, %v2312
        %v2333 = vpack.c.bf16 %v2280, %v2280
        %v2334 = vpack.c.bf16 %v2281, %v2281
        %v2335 = vpack.c.bf16 %v2295, %v2295
        %v2336 = vpack.c.bf16 %v2297, %v2297
        %v2337 = vpack.c.bf16 %v2318, %v2318
        %v2338 = vpack.c.bf16 %v2320, %v2320
        %v2339 = vld [vmem:[#allocation7] sm:$0xff]
        %v2340 = vld [vmem:[#allocation7 + $0x8] sm:$0xff]
        %v2341 = vld [vmem:[#allocation7 + $0x10] sm:$0xff]
        %v2342 = vld [vmem:[#allocation7 + $0x18] sm:$0xff]
        %v2343 = vld [vmem:[#allocation7 + $0x20] sm:$0xff]
        %v2344 = vld [vmem:[#allocation7 + $0x28] sm:$0xff]
        %v2345 = vld [vmem:[#allocation7 + $0x30] sm:$0xff]
        %v2346 = vld [vmem:[#allocation7 + $0x38] sm:$0xff]
        %v2347 = vld [vmem:[#allocation7 + $0x40] sm:$0xff]
        %v2348 = vld [vmem:[#allocation7 + $0x48] sm:$0xff]
        %v2349 = vld [vmem:[#allocation7 + $0x50] sm:$0xff]
        %v2350 = vld [vmem:[#allocation7 + $0x58] sm:$0xff]
        %v2351 = vld [vmem:[#allocation7 + $0x60] sm:$0xff]
        %v2352 = vld [vmem:[#allocation7 + $0x68] sm:$0xff]
        %v2353 = vld [vmem:[#allocation7 + $0x70] sm:$0xff]
        %v2354 = vld [vmem:[#allocation7 + $0x78] sm:$0xff]
        %v2355 = vld [vmem:[#allocation7 + $0x80] sm:$0xff]
        %v2356 = vld [vmem:[#allocation7 + $0x88] sm:$0xff]
        %v2357 = vld [vmem:[#allocation7 + $0x90] sm:$0xff]
        %v2358 = vld [vmem:[#allocation7 + $0x98] sm:$0xff]
        %v2359 = vld [vmem:[#allocation7 + $0xa0] sm:$0xff]
        %v2360 = vld [vmem:[#allocation7 + $0xa8] sm:$0xff]
        %v2361 = vld [vmem:[#allocation7 + $0xb0] sm:$0xff]
        %v2362 = vld [vmem:[#allocation7 + $0xb8] sm:$0xff]
        %v2363 = vld [vmem:[#allocation7 + $0xc0] sm:$0xff]
        %v2364 = vld [vmem:[#allocation7 + $0xc8] sm:$0xff]
        %v2365 = vld [vmem:[#allocation7 + $0xd0] sm:$0xff]
        %v2366 = vld [vmem:[#allocation7 + $0xd8] sm:$0xff]
        %v2367 = vld [vmem:[#allocation7 + $0xe0] sm:$0xff]
        %v2368 = vld [vmem:[#allocation7 + $0xe8] sm:$0xff]
        %v2369 = vld [vmem:[#allocation7 + $0xf0] sm:$0xff]
        %v2370 = vld [vmem:[#allocation7 + $0xf8] sm:$0xff]
        %v2371 = vld [vmem:[#allocation7 + $0x100] sm:$0xff]
        %v2372 = vld [vmem:[#allocation7 + $0x108] sm:$0xff]
        %v2373 = vld [vmem:[#allocation7 + $0x110] sm:$0xff]
        %v2374 = vld [vmem:[#allocation7 + $0x118] sm:$0xff]
        %v2375 = vld [vmem:[#allocation7 + $0x120] sm:$0xff]
        %v2376 = vld [vmem:[#allocation7 + $0x128] sm:$0xff]
        %v2377 = vld [vmem:[#allocation7 + $0x130] sm:$0xff]
        %v2378 = vld [vmem:[#allocation7 + $0x138] sm:$0xff]
        %v2379 = vld [vmem:[#allocation7 + $0x140] sm:$0xff]
        %v2380 = vld [vmem:[#allocation7 + $0x148] sm:$0xff]
        %v2381 = vld [vmem:[#allocation7 + $0x150] sm:$0xff]
        %v2382 = vld [vmem:[#allocation7 + $0x158] sm:$0xff]
        %v2383 = vld [vmem:[#allocation7 + $0x160] sm:$0xff]
        %v2384 = vld [vmem:[#allocation7 + $0x168] sm:$0xff]
        %v2385 = vld [vmem:[#allocation7 + $0x170] sm:$0xff]
        %v2386 = vld [vmem:[#allocation7 + $0x178] sm:$0xff]
        %v2387 = vld [vmem:[#allocation7 + $0x180] sm:$0xff]
        %v2388 = vld [vmem:[#allocation7 + $0x188] sm:$0xff]
        %v2389 = vld [vmem:[#allocation7 + $0x190] sm:$0xff]
        %v2390 = vld [vmem:[#allocation7 + $0x198] sm:$0xff]
        %v2391 = vld [vmem:[#allocation7 + $0x1a0] sm:$0xff]
        %v2392 = vld [vmem:[#allocation7 + $0x1a8] sm:$0xff]
        %v2393 = vld [vmem:[#allocation7 + $0x1b0] sm:$0xff]
        %v2394 = vld [vmem:[#allocation7 + $0x1b8] sm:$0xff]
        %v2395 = vld [vmem:[#allocation7 + $0x1c0] sm:$0xff]
        %v2396 = vld [vmem:[#allocation7 + $0x1c8] sm:$0xff]
        %v2397 = vld [vmem:[#allocation7 + $0x1d0] sm:$0xff]
        %v2398 = vld [vmem:[#allocation7 + $0x1d8] sm:$0xff]
        %v2399 = vld [vmem:[#allocation7 + $0x1e0] sm:$0xff]
        %v2400 = vld [vmem:[#allocation7 + $0x1e8] sm:$0xff]
        %v2401 = vld [vmem:[#allocation7 + $0x1f0] sm:$0xff]
        %v2402 = vld [vmem:[#allocation7 + $0x1f8] sm:$0xff]
        %v2403 = vld [vmem:[#allocation7 + $0x200] sm:$0xff]
        %v2404 = vld [vmem:[#allocation7 + $0x208] sm:$0xff]
        %v2405 = vld [vmem:[#allocation7 + $0x210] sm:$0xff]
        %v2406 = vld [vmem:[#allocation7 + $0x218] sm:$0xff]
        %v2407 = vld [vmem:[#allocation7 + $0x220] sm:$0xff]
        %v2408 = vld [vmem:[#allocation7 + $0x228] sm:$0xff]
        %v2409 = vld [vmem:[#allocation7 + $0x230] sm:$0xff]
        %v2410 = vld [vmem:[#allocation7 + $0x238] sm:$0xff]
        %v2411 = vld [vmem:[#allocation7 + $0x240] sm:$0xff]
        %v2412 = vld [vmem:[#allocation7 + $0x248] sm:$0xff]
        %v2413 = vld [vmem:[#allocation7 + $0x250] sm:$0xff]
        %v2414 = vld [vmem:[#allocation7 + $0x258] sm:$0xff]
        %v2415 = vld [vmem:[#allocation7 + $0x260] sm:$0xff]
        %v2416 = vld [vmem:[#allocation7 + $0x268] sm:$0xff]
        %v2417 = vld [vmem:[#allocation7 + $0x270] sm:$0xff]
        %v2418 = vld [vmem:[#allocation7 + $0x278] sm:$0xff]
        %v2419 = vld [vmem:[#allocation7 + $0x280] sm:$0xff]
        %v2420 = vld [vmem:[#allocation7 + $0x288] sm:$0xff]
        %v2421 = vld [vmem:[#allocation7 + $0x290] sm:$0xff]
        %v2422 = vld [vmem:[#allocation7 + $0x298] sm:$0xff]
        %v2423 = vld [vmem:[#allocation7 + $0x2a0] sm:$0xff]
        %v2424 = vld [vmem:[#allocation7 + $0x2a8] sm:$0xff]
        %v2425 = vld [vmem:[#allocation7 + $0x2b0] sm:$0xff]
        %v2426 = vld [vmem:[#allocation7 + $0x2b8] sm:$0xff]
        %v2427 = vld [vmem:[#allocation7 + $0x2c0] sm:$0xff]
        %v2428 = vld [vmem:[#allocation7 + $0x2c8] sm:$0xff]
        %v2429 = vld [vmem:[#allocation7 + $0x2d0] sm:$0xff]
        %v2430 = vld [vmem:[#allocation7 + $0x2d8] sm:$0xff]
        %v2431 = vld [vmem:[#allocation7 + $0x2e0] sm:$0xff]
        %v2432 = vld [vmem:[#allocation7 + $0x2e8] sm:$0xff]
        %v2433 = vld [vmem:[#allocation7 + $0x2f0] sm:$0xff]
        %v2434 = vld [vmem:[#allocation7 + $0x2f8] sm:$0xff]
        %v2435 = vld [vmem:[#allocation7 + $0x300] sm:$0xff]
        %v2436 = vld [vmem:[#allocation7 + $0x308] sm:$0xff]
        %v2437 = vld [vmem:[#allocation7 + $0x310] sm:$0xff]
        %v2438 = vld [vmem:[#allocation7 + $0x318] sm:$0xff]
        %v2439 = vld [vmem:[#allocation7 + $0x320] sm:$0xff]
        %v2440 = vld [vmem:[#allocation7 + $0x328] sm:$0xff]
        %v2441 = vld [vmem:[#allocation7 + $0x330] sm:$0xff]
        %v2442 = vld [vmem:[#allocation7 + $0x338] sm:$0xff]
        %v2443 = vld [vmem:[#allocation7 + $0x340] sm:$0xff]
        %v2444 = vld [vmem:[#allocation7 + $0x348] sm:$0xff]
        %v2445 = vld [vmem:[#allocation7 + $0x350] sm:$0xff]
        %v2446 = vld [vmem:[#allocation7 + $0x358] sm:$0xff]
        %v2447 = vld [vmem:[#allocation7 + $0x360] sm:$0xff]
        %v2448 = vld [vmem:[#allocation7 + $0x368] sm:$0xff]
        %v2449 = vld [vmem:[#allocation7 + $0x370] sm:$0xff]
        %v2450 = vld [vmem:[#allocation7 + $0x378] sm:$0xff]
        %v2451 = vld [vmem:[#allocation7 + $0x380] sm:$0xff]
        %v2452 = vld [vmem:[#allocation7 + $0x388] sm:$0xff]
        %v2453 = vld [vmem:[#allocation7 + $0x390] sm:$0xff]
        %v2454 = vld [vmem:[#allocation7 + $0x398] sm:$0xff]
        %v2455 = vld [vmem:[#allocation7 + $0x3a0] sm:$0xff]
        %v2456 = vld [vmem:[#allocation7 + $0x3a8] sm:$0xff]
        %v2457 = vld [vmem:[#allocation7 + $0x3b0] sm:$0xff]
        %v2458 = vld [vmem:[#allocation7 + $0x3b8] sm:$0xff]
        %v2459 = vld [vmem:[#allocation7 + $0x3c0] sm:$0xff]
        %v2460 = vld [vmem:[#allocation7 + $0x3c8] sm:$0xff]
        %v2461 = vld [vmem:[#allocation7 + $0x3d0] sm:$0xff]
        %v2462 = vld [vmem:[#allocation7 + $0x3d8] sm:$0xff]
        %v2463 = vld [vmem:[#allocation7 + $0x3e0] sm:$0xff]
        %v2464 = vld [vmem:[#allocation7 + $0x3e8] sm:$0xff]
        %v2465 = vld [vmem:[#allocation7 + $0x3f0] sm:$0xff]
        %v2466 = vld [vmem:[#allocation7 + $0x3f8] sm:$0xff]
        %v2467 = vld [vmem:[#allocation7 + $0x400] sm:$0xff]
        %v2468 = vld [vmem:[#allocation7 + $0x408] sm:$0xff]
        %v2469 = vld [vmem:[#allocation7 + $0x410] sm:$0xff]
        %v2470 = vld [vmem:[#allocation7 + $0x418] sm:$0xff]
        %v2471 = vld [vmem:[#allocation7 + $0x420] sm:$0xff]
        %v2472 = vld [vmem:[#allocation7 + $0x428] sm:$0xff]
        %v2473 = vld [vmem:[#allocation7 + $0x430] sm:$0xff]
        %v2474 = vld [vmem:[#allocation7 + $0x438] sm:$0xff]
        %v2475 = vld [vmem:[#allocation7 + $0x440] sm:$0xff]
        %v2476 = vld [vmem:[#allocation7 + $0x448] sm:$0xff]
        %v2477 = vld [vmem:[#allocation7 + $0x450] sm:$0xff]
        %v2478 = vld [vmem:[#allocation7 + $0x458] sm:$0xff]
        %v2479 = vld [vmem:[#allocation7 + $0x460] sm:$0xff]
        %v2480 = vld [vmem:[#allocation7 + $0x468] sm:$0xff]
        %v2481 = vld [vmem:[#allocation7 + $0x470] sm:$0xff]
        %v2482 = vld [vmem:[#allocation7 + $0x478] sm:$0xff]
        %v2483 = vld [vmem:[#allocation7 + $0x480] sm:$0xff]
        %v2484 = vld [vmem:[#allocation7 + $0x488] sm:$0xff]
        %v2485 = vld [vmem:[#allocation7 + $0x490] sm:$0xff]
        %v2486 = vld [vmem:[#allocation7 + $0x498] sm:$0xff]
        %v2487 = vld [vmem:[#allocation7 + $0x4a0] sm:$0xff]
        %v2488 = vld [vmem:[#allocation7 + $0x4a8] sm:$0xff]
        %v2489 = vld [vmem:[#allocation7 + $0x4b0] sm:$0xff]
        %v2490 = vld [vmem:[#allocation7 + $0x4b8] sm:$0xff]
        %v2491 = vld [vmem:[#allocation7 + $0x4c0] sm:$0xff]
        %v2492 = vld [vmem:[#allocation7 + $0x4c8] sm:$0xff]
        %v2493 = vld [vmem:[#allocation7 + $0x4d0] sm:$0xff]
        %v2494 = vld [vmem:[#allocation7 + $0x4d8] sm:$0xff]
        %v2495 = vld [vmem:[#allocation7 + $0x4e0] sm:$0xff]
        %v2496 = vld [vmem:[#allocation7 + $0x4e8] sm:$0xff]
        %v2497 = vld [vmem:[#allocation7 + $0x4f0] sm:$0xff]
        %v2498 = vld [vmem:[#allocation7 + $0x4f8] sm:$0xff]
        %v2499 = vld [vmem:[#allocation7 + $0x500] sm:$0xff]
        %v2500 = vld [vmem:[#allocation7 + $0x508] sm:$0xff]
        %v2501 = vld [vmem:[#allocation7 + $0x510] sm:$0xff]
        %v2502 = vld [vmem:[#allocation7 + $0x518] sm:$0xff]
        %v2503 = vld [vmem:[#allocation7 + $0x520] sm:$0xff]
        %v2504 = vld [vmem:[#allocation7 + $0x528] sm:$0xff]
        %v2505 = vld [vmem:[#allocation7 + $0x530] sm:$0xff]
        %v2506 = vld [vmem:[#allocation7 + $0x538] sm:$0xff]
        %v2507 = vld [vmem:[#allocation7 + $0x540] sm:$0xff]
        %v2508 = vld [vmem:[#allocation7 + $0x548] sm:$0xff]
        %v2509 = vld [vmem:[#allocation7 + $0x550] sm:$0xff]
        %v2510 = vld [vmem:[#allocation7 + $0x558] sm:$0xff]
        %v2511 = vld [vmem:[#allocation7 + $0x560] sm:$0xff]
        %v2512 = vld [vmem:[#allocation7 + $0x568] sm:$0xff]
        %v2513 = vld [vmem:[#allocation7 + $0x570] sm:$0xff]
        %v2514 = vld [vmem:[#allocation7 + $0x578] sm:$0xff]
        %v2515 = vld [vmem:[#allocation7 + $0x580] sm:$0xff]
        %v2516 = vld [vmem:[#allocation7 + $0x588] sm:$0xff]
        %v2517 = vld [vmem:[#allocation7 + $0x590] sm:$0xff]
        %v2518 = vld [vmem:[#allocation7 + $0x598] sm:$0xff]
        %v2519 = vld [vmem:[#allocation7 + $0x5a0] sm:$0xff]
        %v2520 = vld [vmem:[#allocation7 + $0x5a8] sm:$0xff]
        %v2521 = vld [vmem:[#allocation7 + $0x5b0] sm:$0xff]
        %v2522 = vld [vmem:[#allocation7 + $0x5b8] sm:$0xff]
        %v2523 = vld [vmem:[#allocation7 + $0x5c0] sm:$0xff]
        %v2524 = vld [vmem:[#allocation7 + $0x5c8] sm:$0xff]
        %v2525 = vld [vmem:[#allocation7 + $0x5d0] sm:$0xff]
        %v2526 = vld [vmem:[#allocation7 + $0x5d8] sm:$0xff]
        %v2527 = vld [vmem:[#allocation7 + $0x5e0] sm:$0xff]
        %v2528 = vld [vmem:[#allocation7 + $0x5e8] sm:$0xff]
        %v2529 = vld [vmem:[#allocation7 + $0x5f0] sm:$0xff]
        %v2530 = vld [vmem:[#allocation7 + $0x5f8] sm:$0xff]
        %v2532 = vlaneseq
        %v2533 = vshrl.u32 %v2532, 7
        %v2534 = vsub.s32 0, %v2533
        %v2535 = vrot.slane %v2267, %v2534
        %v2536 = vlaneseq
        %v2537 = vshrl.u32 %v2536, 7
        %v2538 = vsub.s32 1, %v2537
        %v2539 = vrot.slane %v2267, %v2538
        %v2540 = vlaneseq
        %v2541 = vshrl.u32 %v2540, 7
        %v2542 = vsub.s32 2, %v2541
        %v2543 = vrot.slane %v2267, %v2542
        %v2544 = vlaneseq
        %v2545 = vshrl.u32 %v2544, 7
        %v2546 = vsub.s32 3, %v2545
        %v2547 = vrot.slane %v2267, %v2546
        %vm2552 = vsmask.f32 4352
        %v2554 = vshrl.u32 %v2327, 16
        %v2556 = vrot.slane %v2554, 3
        %v2557 = vshll.u32 %v2327, 16
        %v2559 = vrot.slane %v2557, 4
        %v2560 = vor.u32 %v2556, %v2559
        %v2562 = vshrl.u32 %v2333, 16
        %v2564 = vrot.slane %v2562, 3
        %v2565 = vshll.u32 %v2333, 16
        %v2567 = vrot.slane %v2565, 4
        %v2568 = vor.u32 %v2564, %v2567
        %v2569 = vsel %vm2552, %v2560, %v2568
        %v2571 = vshrl.u32 %v2328, 16
        %v2573 = vrot.slane %v2571, 3
        %v2574 = vshll.u32 %v2328, 16
        %v2576 = vrot.slane %v2574, 4
        %v2577 = vor.u32 %v2573, %v2576
        %v2579 = vshrl.u32 %v2334, 16
        %v2581 = vrot.slane %v2579, 3
        %v2582 = vshll.u32 %v2334, 16
        %v2584 = vrot.slane %v2582, 4
        %v2585 = vor.u32 %v2581, %v2584
        %v2586 = vsel %vm2552, %v2577, %v2585
        %v2588 = vshrl.u32 %v2329, 16
        %v2590 = vrot.slane %v2588, 3
        %v2591 = vshll.u32 %v2329, 16
        %v2593 = vrot.slane %v2591, 4
        %v2594 = vor.u32 %v2590, %v2593
        %v2596 = vshrl.u32 %v2335, 16
        %v2598 = vrot.slane %v2596, 3
        %v2599 = vshll.u32 %v2335, 16
        %v2601 = vrot.slane %v2599, 4
        %v2602 = vor.u32 %v2598, %v2601
        %v2603 = vsel %vm2552, %v2594, %v2602
        %v2605 = vshrl.u32 %v2330, 16
        %v2607 = vrot.slane %v2605, 3
        %v2608 = vshll.u32 %v2330, 16
        %v2610 = vrot.slane %v2608, 4
        %v2611 = vor.u32 %v2607, %v2610
        %v2613 = vshrl.u32 %v2336, 16
        %v2615 = vrot.slane %v2613, 3
        %v2616 = vshll.u32 %v2336, 16
        %v2618 = vrot.slane %v2616, 4
        %v2619 = vor.u32 %v2615, %v2618
        %v2620 = vsel %vm2552, %v2611, %v2619
        %v2622 = vshrl.u32 %v2331, 16
        %v2624 = vrot.slane %v2622, 3
        %v2625 = vshll.u32 %v2331, 16
        %v2627 = vrot.slane %v2625, 4
        %v2628 = vor.u32 %v2624, %v2627
        %v2630 = vshrl.u32 %v2337, 16
        %v2632 = vrot.slane %v2630, 3
        %v2633 = vshll.u32 %v2337, 16
        %v2635 = vrot.slane %v2633, 4
        %v2636 = vor.u32 %v2632, %v2635
        %v2637 = vsel %vm2552, %v2628, %v2636
        %v2639 = vshrl.u32 %v2332, 16
        %v2641 = vrot.slane %v2639, 3
        %v2642 = vshll.u32 %v2332, 16
        %v2644 = vrot.slane %v2642, 4
        %v2645 = vor.u32 %v2641, %v2644
        %v2647 = vshrl.u32 %v2338, 16
        %v2649 = vrot.slane %v2647, 3
        %v2650 = vshll.u32 %v2338, 16
        %v2652 = vrot.slane %v2650, 4
        %v2653 = vor.u32 %v2649, %v2652
        %v2654 = vsel %vm2552, %v2645, %v2653
        %v2853 = vunpack.c.l.b16 %v2339
        %v2854 = vunpack.c.h.b16 %v2339
        %v2855 = vunpack.c.l.b16 %v2340
        %v2856 = vunpack.c.h.b16 %v2340
        %v2857 = vunpack.c.l.b16 %v2341
        %v2858 = vunpack.c.h.b16 %v2341
        %v2859 = vunpack.c.l.b16 %v2342
        %v2860 = vunpack.c.h.b16 %v2342
        %v2861 = vunpack.c.l.b16 %v2343
        %v2862 = vunpack.c.h.b16 %v2343
        %v2863 = vunpack.c.l.b16 %v2344
        %v2864 = vunpack.c.h.b16 %v2344
        %v2865 = vunpack.c.l.b16 %v2345
        %v2866 = vunpack.c.h.b16 %v2345
        %v2867 = vunpack.c.l.b16 %v2346
        %v2868 = vunpack.c.h.b16 %v2346
        %v2869 = vunpack.c.l.b16 %v2347
        %v2870 = vunpack.c.h.b16 %v2347
        %v2871 = vunpack.c.l.b16 %v2348
        %v2872 = vunpack.c.h.b16 %v2348
        %v2873 = vunpack.c.l.b16 %v2349
        %v2874 = vunpack.c.h.b16 %v2349
        %v2875 = vunpack.c.l.b16 %v2350
        %v2876 = vunpack.c.h.b16 %v2350
        %v2877 = vunpack.c.l.b16 %v2351
        %v2878 = vunpack.c.h.b16 %v2351
        %v2879 = vunpack.c.l.b16 %v2352
        %v2880 = vunpack.c.h.b16 %v2352
        %v2881 = vunpack.c.l.b16 %v2353
        %v2882 = vunpack.c.h.b16 %v2353
        %v2883 = vunpack.c.l.b16 %v2354
        %v2884 = vunpack.c.h.b16 %v2354
        %v2885 = vunpack.c.l.b16 %v2355
        %v2886 = vunpack.c.h.b16 %v2355
        %v2887 = vunpack.c.l.b16 %v2356
        %v2888 = vunpack.c.h.b16 %v2356
        %v2889 = vunpack.c.l.b16 %v2357
        %v2890 = vunpack.c.h.b16 %v2357
        %v2891 = vunpack.c.l.b16 %v2358
        %v2892 = vunpack.c.h.b16 %v2358
        %v2893 = vunpack.c.l.b16 %v2359
        %v2894 = vunpack.c.h.b16 %v2359
        %v2895 = vunpack.c.l.b16 %v2360
        %v2896 = vunpack.c.h.b16 %v2360
        %v2897 = vunpack.c.l.b16 %v2361
        %v2898 = vunpack.c.h.b16 %v2361
        %v2899 = vunpack.c.l.b16 %v2362
        %v2900 = vunpack.c.h.b16 %v2362
        %v2901 = vunpack.c.l.b16 %v2363
        %v2902 = vunpack.c.h.b16 %v2363
        %v2903 = vunpack.c.l.b16 %v2364
        %v2904 = vunpack.c.h.b16 %v2364
        %v2905 = vunpack.c.l.b16 %v2365
        %v2906 = vunpack.c.h.b16 %v2365
        %v2907 = vunpack.c.l.b16 %v2366
        %v2908 = vunpack.c.h.b16 %v2366
        %v2909 = vunpack.c.l.b16 %v2367
        %v2910 = vunpack.c.h.b16 %v2367
        %v2911 = vunpack.c.l.b16 %v2368
        %v2912 = vunpack.c.h.b16 %v2368
        %v2913 = vunpack.c.l.b16 %v2369
        %v2914 = vunpack.c.h.b16 %v2369
        %v2915 = vunpack.c.l.b16 %v2370
        %v2916 = vunpack.c.h.b16 %v2370
        %v2917 = vunpack.c.l.b16 %v2371
        %v2918 = vunpack.c.h.b16 %v2371
        %v2919 = vunpack.c.l.b16 %v2372
        %v2920 = vunpack.c.h.b16 %v2372
        %v2921 = vunpack.c.l.b16 %v2373
        %v2922 = vunpack.c.h.b16 %v2373
        %v2923 = vunpack.c.l.b16 %v2374
        %v2924 = vunpack.c.h.b16 %v2374
        %v2925 = vunpack.c.l.b16 %v2375
        %v2926 = vunpack.c.h.b16 %v2375
        %v2927 = vunpack.c.l.b16 %v2376
        %v2928 = vunpack.c.h.b16 %v2376
        %v2929 = vunpack.c.l.b16 %v2377
        %v2930 = vunpack.c.h.b16 %v2377
        %v2931 = vunpack.c.l.b16 %v2378
        %v2932 = vunpack.c.h.b16 %v2378
        %v2933 = vunpack.c.l.b16 %v2379
        %v2934 = vunpack.c.h.b16 %v2379
        %v2935 = vunpack.c.l.b16 %v2380
        %v2936 = vunpack.c.h.b16 %v2380
        %v2937 = vunpack.c.l.b16 %v2381
        %v2938 = vunpack.c.h.b16 %v2381
        %v2939 = vunpack.c.l.b16 %v2382
        %v2940 = vunpack.c.h.b16 %v2382
        %v2941 = vunpack.c.l.b16 %v2383
        %v2942 = vunpack.c.h.b16 %v2383
        %v2943 = vunpack.c.l.b16 %v2384
        %v2944 = vunpack.c.h.b16 %v2384
        %v2945 = vunpack.c.l.b16 %v2385
        %v2946 = vunpack.c.h.b16 %v2385
        %v2947 = vunpack.c.l.b16 %v2386
        %v2948 = vunpack.c.h.b16 %v2386
        %v2949 = vunpack.c.l.b16 %v2387
        %v2950 = vunpack.c.h.b16 %v2387
        %v2951 = vunpack.c.l.b16 %v2388
        %v2952 = vunpack.c.h.b16 %v2388
        %v2953 = vunpack.c.l.b16 %v2389
        %v2954 = vunpack.c.h.b16 %v2389
        %v2955 = vunpack.c.l.b16 %v2390
        %v2956 = vunpack.c.h.b16 %v2390
        %v2957 = vunpack.c.l.b16 %v2391
        %v2958 = vunpack.c.h.b16 %v2391
        %v2959 = vunpack.c.l.b16 %v2392
        %v2960 = vunpack.c.h.b16 %v2392
        %v2961 = vunpack.c.l.b16 %v2393
        %v2962 = vunpack.c.h.b16 %v2393
        %v2963 = vunpack.c.l.b16 %v2394
        %v2964 = vunpack.c.h.b16 %v2394
        %v2965 = vunpack.c.l.b16 %v2395
        %v2966 = vunpack.c.h.b16 %v2395
        %v2967 = vunpack.c.l.b16 %v2396
        %v2968 = vunpack.c.h.b16 %v2396
        %v2969 = vunpack.c.l.b16 %v2397
        %v2970 = vunpack.c.h.b16 %v2397
        %v2971 = vunpack.c.l.b16 %v2398
        %v2972 = vunpack.c.h.b16 %v2398
        %v2973 = vunpack.c.l.b16 %v2399
        %v2974 = vunpack.c.h.b16 %v2399
        %v2975 = vunpack.c.l.b16 %v2400
        %v2976 = vunpack.c.h.b16 %v2400
        %v2977 = vunpack.c.l.b16 %v2401
        %v2978 = vunpack.c.h.b16 %v2401
        %v2979 = vunpack.c.l.b16 %v2402
        %v2980 = vunpack.c.h.b16 %v2402
        %v2981 = vunpack.c.l.b16 %v2403
        %v2982 = vunpack.c.h.b16 %v2403
        %v2983 = vunpack.c.l.b16 %v2404
        %v2984 = vunpack.c.h.b16 %v2404
        %v2985 = vunpack.c.l.b16 %v2405
        %v2986 = vunpack.c.h.b16 %v2405
        %v2987 = vunpack.c.l.b16 %v2406
        %v2988 = vunpack.c.h.b16 %v2406
        %v2989 = vunpack.c.l.b16 %v2407
        %v2990 = vunpack.c.h.b16 %v2407
        %v2991 = vunpack.c.l.b16 %v2408
        %v2992 = vunpack.c.h.b16 %v2408
        %v2993 = vunpack.c.l.b16 %v2409
        %v2994 = vunpack.c.h.b16 %v2409
        %v2995 = vunpack.c.l.b16 %v2410
        %v2996 = vunpack.c.h.b16 %v2410
        %v2997 = vunpack.c.l.b16 %v2411
        %v2998 = vunpack.c.h.b16 %v2411
        %v2999 = vunpack.c.l.b16 %v2412
        %v3000 = vunpack.c.h.b16 %v2412
        %v3001 = vunpack.c.l.b16 %v2413
        %v3002 = vunpack.c.h.b16 %v2413
        %v3003 = vunpack.c.l.b16 %v2414
        %v3004 = vunpack.c.h.b16 %v2414
        %v3005 = vunpack.c.l.b16 %v2415
        %v3006 = vunpack.c.h.b16 %v2415
        %v3007 = vunpack.c.l.b16 %v2416
        %v3008 = vunpack.c.h.b16 %v2416
        %v3009 = vunpack.c.l.b16 %v2417
        %v3010 = vunpack.c.h.b16 %v2417
        %v3011 = vunpack.c.l.b16 %v2418
        %v3012 = vunpack.c.h.b16 %v2418
        %v3013 = vunpack.c.l.b16 %v2419
        %v3014 = vunpack.c.h.b16 %v2419
        %v3015 = vunpack.c.l.b16 %v2420
        %v3016 = vunpack.c.h.b16 %v2420
        %v3017 = vunpack.c.l.b16 %v2421
        %v3018 = vunpack.c.h.b16 %v2421
        %v3019 = vunpack.c.l.b16 %v2422
        %v3020 = vunpack.c.h.b16 %v2422
        %v3021 = vunpack.c.l.b16 %v2423
        %v3022 = vunpack.c.h.b16 %v2423
        %v3023 = vunpack.c.l.b16 %v2424
        %v3024 = vunpack.c.h.b16 %v2424
        %v3025 = vunpack.c.l.b16 %v2425
        %v3026 = vunpack.c.h.b16 %v2425
        %v3027 = vunpack.c.l.b16 %v2426
        %v3028 = vunpack.c.h.b16 %v2426
        %v3029 = vunpack.c.l.b16 %v2427
        %v3030 = vunpack.c.h.b16 %v2427
        %v3031 = vunpack.c.l.b16 %v2428
        %v3032 = vunpack.c.h.b16 %v2428
        %v3033 = vunpack.c.l.b16 %v2429
        %v3034 = vunpack.c.h.b16 %v2429
        %v3035 = vunpack.c.l.b16 %v2430
        %v3036 = vunpack.c.h.b16 %v2430
        %v3037 = vunpack.c.l.b16 %v2431
        %v3038 = vunpack.c.h.b16 %v2431
        %v3039 = vunpack.c.l.b16 %v2432
        %v3040 = vunpack.c.h.b16 %v2432
        %v3041 = vunpack.c.l.b16 %v2433
        %v3042 = vunpack.c.h.b16 %v2433
        %v3043 = vunpack.c.l.b16 %v2434
        %v3044 = vunpack.c.h.b16 %v2434
        %v3045 = vunpack.c.l.b16 %v2435
        %v3046 = vunpack.c.h.b16 %v2435
        %v3047 = vunpack.c.l.b16 %v2436
        %v3048 = vunpack.c.h.b16 %v2436
        %v3049 = vunpack.c.l.b16 %v2437
        %v3050 = vunpack.c.h.b16 %v2437
        %v3051 = vunpack.c.l.b16 %v2438
        %v3052 = vunpack.c.h.b16 %v2438
        %v3053 = vunpack.c.l.b16 %v2439
        %v3054 = vunpack.c.h.b16 %v2439
        %v3055 = vunpack.c.l.b16 %v2440
        %v3056 = vunpack.c.h.b16 %v2440
        %v3057 = vunpack.c.l.b16 %v2441
        %v3058 = vunpack.c.h.b16 %v2441
        %v3059 = vunpack.c.l.b16 %v2442
        %v3060 = vunpack.c.h.b16 %v2442
        %v3061 = vunpack.c.l.b16 %v2443
        %v3062 = vunpack.c.h.b16 %v2443
        %v3063 = vunpack.c.l.b16 %v2444
        %v3064 = vunpack.c.h.b16 %v2444
        %v3065 = vunpack.c.l.b16 %v2445
        %v3066 = vunpack.c.h.b16 %v2445
        %v3067 = vunpack.c.l.b16 %v2446
        %v3068 = vunpack.c.h.b16 %v2446
        %v3069 = vunpack.c.l.b16 %v2447
        %v3070 = vunpack.c.h.b16 %v2447
        %v3071 = vunpack.c.l.b16 %v2448
        %v3072 = vunpack.c.h.b16 %v2448
        %v3073 = vunpack.c.l.b16 %v2449
        %v3074 = vunpack.c.h.b16 %v2449
        %v3075 = vunpack.c.l.b16 %v2450
        %v3076 = vunpack.c.h.b16 %v2450
        %v3077 = vunpack.c.l.b16 %v2451
        %v3078 = vunpack.c.h.b16 %v2451
        %v3079 = vunpack.c.l.b16 %v2452
        %v3080 = vunpack.c.h.b16 %v2452
        %v3081 = vunpack.c.l.b16 %v2453
        %v3082 = vunpack.c.h.b16 %v2453
        %v3083 = vunpack.c.l.b16 %v2454
        %v3084 = vunpack.c.h.b16 %v2454
        %v3085 = vunpack.c.l.b16 %v2455
        %v3086 = vunpack.c.h.b16 %v2455
        %v3087 = vunpack.c.l.b16 %v2456
        %v3088 = vunpack.c.h.b16 %v2456
        %v3089 = vunpack.c.l.b16 %v2457
        %v3090 = vunpack.c.h.b16 %v2457
        %v3091 = vunpack.c.l.b16 %v2458
        %v3092 = vunpack.c.h.b16 %v2458
        %v3093 = vunpack.c.l.b16 %v2459
        %v3094 = vunpack.c.h.b16 %v2459
        %v3095 = vunpack.c.l.b16 %v2460
        %v3096 = vunpack.c.h.b16 %v2460
        %v3097 = vunpack.c.l.b16 %v2461
        %v3098 = vunpack.c.h.b16 %v2461
        %v3099 = vunpack.c.l.b16 %v2462
        %v3100 = vunpack.c.h.b16 %v2462
        %v3101 = vunpack.c.l.b16 %v2463
        %v3102 = vunpack.c.h.b16 %v2463
        %v3103 = vunpack.c.l.b16 %v2464
        %v3104 = vunpack.c.h.b16 %v2464
        %v3105 = vunpack.c.l.b16 %v2465
        %v3106 = vunpack.c.h.b16 %v2465
        %v3107 = vunpack.c.l.b16 %v2466
        %v3108 = vunpack.c.h.b16 %v2466
        %v3109 = vunpack.c.l.b16 %v2467
        %v3110 = vunpack.c.h.b16 %v2467
        %v3111 = vunpack.c.l.b16 %v2468
        %v3112 = vunpack.c.h.b16 %v2468
        %v3113 = vunpack.c.l.b16 %v2469
        %v3114 = vunpack.c.h.b16 %v2469
        %v3115 = vunpack.c.l.b16 %v2470
        %v3116 = vunpack.c.h.b16 %v2470
        %v3117 = vunpack.c.l.b16 %v2471
        %v3118 = vunpack.c.h.b16 %v2471
        %v3119 = vunpack.c.l.b16 %v2472
        %v3120 = vunpack.c.h.b16 %v2472
        %v3121 = vunpack.c.l.b16 %v2473
        %v3122 = vunpack.c.h.b16 %v2473
        %v3123 = vunpack.c.l.b16 %v2474
        %v3124 = vunpack.c.h.b16 %v2474
        %v3125 = vunpack.c.l.b16 %v2475
        %v3126 = vunpack.c.h.b16 %v2475
        %v3127 = vunpack.c.l.b16 %v2476
        %v3128 = vunpack.c.h.b16 %v2476
        %v3129 = vunpack.c.l.b16 %v2477
        %v3130 = vunpack.c.h.b16 %v2477
        %v3131 = vunpack.c.l.b16 %v2478
        %v3132 = vunpack.c.h.b16 %v2478
        %v3133 = vunpack.c.l.b16 %v2479
        %v3134 = vunpack.c.h.b16 %v2479
        %v3135 = vunpack.c.l.b16 %v2480
        %v3136 = vunpack.c.h.b16 %v2480
        %v3137 = vunpack.c.l.b16 %v2481
        %v3138 = vunpack.c.h.b16 %v2481
        %v3139 = vunpack.c.l.b16 %v2482
        %v3140 = vunpack.c.h.b16 %v2482
        %v3141 = vunpack.c.l.b16 %v2483
        %v3142 = vunpack.c.h.b16 %v2483
        %v3143 = vunpack.c.l.b16 %v2484
        %v3144 = vunpack.c.h.b16 %v2484
        %v3145 = vunpack.c.l.b16 %v2485
        %v3146 = vunpack.c.h.b16 %v2485
        %v3147 = vunpack.c.l.b16 %v2486
        %v3148 = vunpack.c.h.b16 %v2486
        %v3149 = vunpack.c.l.b16 %v2487
        %v3150 = vunpack.c.h.b16 %v2487
        %v3151 = vunpack.c.l.b16 %v2488
        %v3152 = vunpack.c.h.b16 %v2488
        %v3153 = vunpack.c.l.b16 %v2489
        %v3154 = vunpack.c.h.b16 %v2489
        %v3155 = vunpack.c.l.b16 %v2490
        %v3156 = vunpack.c.h.b16 %v2490
        %v3157 = vunpack.c.l.b16 %v2491
        %v3158 = vunpack.c.h.b16 %v2491
        %v3159 = vunpack.c.l.b16 %v2492
        %v3160 = vunpack.c.h.b16 %v2492
        %v3161 = vunpack.c.l.b16 %v2493
        %v3162 = vunpack.c.h.b16 %v2493
        %v3163 = vunpack.c.l.b16 %v2494
        %v3164 = vunpack.c.h.b16 %v2494
        %v3165 = vunpack.c.l.b16 %v2495
        %v3166 = vunpack.c.h.b16 %v2495
        %v3167 = vunpack.c.l.b16 %v2496
        %v3168 = vunpack.c.h.b16 %v2496
        %v3169 = vunpack.c.l.b16 %v2497
        %v3170 = vunpack.c.h.b16 %v2497
        %v3171 = vunpack.c.l.b16 %v2498
        %v3172 = vunpack.c.h.b16 %v2498
        %v3173 = vunpack.c.l.b16 %v2499
        %v3174 = vunpack.c.h.b16 %v2499
        %v3175 = vunpack.c.l.b16 %v2500
        %v3176 = vunpack.c.h.b16 %v2500
        %v3177 = vunpack.c.l.b16 %v2501
        %v3178 = vunpack.c.h.b16 %v2501
        %v3179 = vunpack.c.l.b16 %v2502
        %v3180 = vunpack.c.h.b16 %v2502
        %v3181 = vunpack.c.l.b16 %v2503
        %v3182 = vunpack.c.h.b16 %v2503
        %v3183 = vunpack.c.l.b16 %v2504
        %v3184 = vunpack.c.h.b16 %v2504
        %v3185 = vunpack.c.l.b16 %v2505
        %v3186 = vunpack.c.h.b16 %v2505
        %v3187 = vunpack.c.l.b16 %v2506
        %v3188 = vunpack.c.h.b16 %v2506
        %v3189 = vunpack.c.l.b16 %v2507
        %v3190 = vunpack.c.h.b16 %v2507
        %v3191 = vunpack.c.l.b16 %v2508
        %v3192 = vunpack.c.h.b16 %v2508
        %v3193 = vunpack.c.l.b16 %v2509
        %v3194 = vunpack.c.h.b16 %v2509
        %v3195 = vunpack.c.l.b16 %v2510
        %v3196 = vunpack.c.h.b16 %v2510
        %v3197 = vunpack.c.l.b16 %v2511
        %v3198 = vunpack.c.h.b16 %v2511
        %v3199 = vunpack.c.l.b16 %v2512
        %v3200 = vunpack.c.h.b16 %v2512
        %v3201 = vunpack.c.l.b16 %v2513
        %v3202 = vunpack.c.h.b16 %v2513
        %v3203 = vunpack.c.l.b16 %v2514
        %v3204 = vunpack.c.h.b16 %v2514
        %v3205 = vunpack.c.l.b16 %v2515
        %v3206 = vunpack.c.h.b16 %v2515
        %v3207 = vunpack.c.l.b16 %v2516
        %v3208 = vunpack.c.h.b16 %v2516
        %v3209 = vunpack.c.l.b16 %v2517
        %v3210 = vunpack.c.h.b16 %v2517
        %v3211 = vunpack.c.l.b16 %v2518
        %v3212 = vunpack.c.h.b16 %v2518
        %v3213 = vunpack.c.l.b16 %v2519
        %v3214 = vunpack.c.h.b16 %v2519
        %v3215 = vunpack.c.l.b16 %v2520
        %v3216 = vunpack.c.h.b16 %v2520
        %v3217 = vunpack.c.l.b16 %v2521
        %v3218 = vunpack.c.h.b16 %v2521
        %v3219 = vunpack.c.l.b16 %v2522
        %v3220 = vunpack.c.h.b16 %v2522
        %v3221 = vunpack.c.l.b16 %v2523
        %v3222 = vunpack.c.h.b16 %v2523
        %v3223 = vunpack.c.l.b16 %v2524
        %v3224 = vunpack.c.h.b16 %v2524
        %v3225 = vunpack.c.l.b16 %v2525
        %v3226 = vunpack.c.h.b16 %v2525
        %v3227 = vunpack.c.l.b16 %v2526
        %v3228 = vunpack.c.h.b16 %v2526
        %v3229 = vunpack.c.l.b16 %v2527
        %v3230 = vunpack.c.h.b16 %v2527
        %v3231 = vunpack.c.l.b16 %v2528
        %v3232 = vunpack.c.h.b16 %v2528
        %v3233 = vunpack.c.l.b16 %v2529
        %v3234 = vunpack.c.h.b16 %v2529
        %v3235 = vunpack.c.l.b16 %v2530
        %v3236 = vunpack.c.h.b16 %v2530
        %v3237 = vpack.c.b16 %v2857, %v2853
        %v3238 = vpack.c.b16 %v2858, %v2854
        %v3239 = vpack.c.b16 %v2859, %v2855
        %v3240 = vpack.c.b16 %v2860, %v2856
        %v3241 = vpack.c.b16 %v2865, %v2861
        %v3242 = vpack.c.b16 %v2866, %v2862
        %v3243 = vpack.c.b16 %v2867, %v2863
        %v3244 = vpack.c.b16 %v2868, %v2864
        %v3245 = vpack.c.b16 %v2873, %v2869
        %v3246 = vpack.c.b16 %v2874, %v2870
        %v3247 = vpack.c.b16 %v2875, %v2871
        %v3248 = vpack.c.b16 %v2876, %v2872
        %v3249 = vpack.c.b16 %v2881, %v2877
        %v3250 = vpack.c.b16 %v2882, %v2878
        %v3251 = vpack.c.b16 %v2883, %v2879
        %v3252 = vpack.c.b16 %v2884, %v2880
        %v3253 = vpack.c.b16 %v2889, %v2885
        %v3254 = vpack.c.b16 %v2890, %v2886
        %v3255 = vpack.c.b16 %v2891, %v2887
        %v3256 = vpack.c.b16 %v2892, %v2888
        %v3257 = vpack.c.b16 %v2897, %v2893
        %v3258 = vpack.c.b16 %v2898, %v2894
        %v3259 = vpack.c.b16 %v2899, %v2895
        %v3260 = vpack.c.b16 %v2900, %v2896
        %v3261 = vpack.c.b16 %v2905, %v2901
        %v3262 = vpack.c.b16 %v2906, %v2902
        %v3263 = vpack.c.b16 %v2907, %v2903
        %v3264 = vpack.c.b16 %v2908, %v2904
        %v3265 = vpack.c.b16 %v2913, %v2909
        %v3266 = vpack.c.b16 %v2914, %v2910
        %v3267 = vpack.c.b16 %v2915, %v2911
        %v3268 = vpack.c.b16 %v2916, %v2912
        %v3269 = vpack.c.b16 %v2921, %v2917
        %v3270 = vpack.c.b16 %v2922, %v2918
        %v3271 = vpack.c.b16 %v2923, %v2919
        %v3272 = vpack.c.b16 %v2924, %v2920
        %v3273 = vpack.c.b16 %v2929, %v2925
        %v3274 = vpack.c.b16 %v2930, %v2926
        %v3275 = vpack.c.b16 %v2931, %v2927
        %v3276 = vpack.c.b16 %v2932, %v2928
        %v3277 = vpack.c.b16 %v2937, %v2933
        %v3278 = vpack.c.b16 %v2938, %v2934
        %v3279 = vpack.c.b16 %v2939, %v2935
        %v3280 = vpack.c.b16 %v2940, %v2936
        %v3281 = vpack.c.b16 %v2945, %v2941
        %v3282 = vpack.c.b16 %v2946, %v2942
        %v3283 = vpack.c.b16 %v2947, %v2943
        %v3284 = vpack.c.b16 %v2948, %v2944
        %v3285 = vpack.c.b16 %v2953, %v2949
        %v3286 = vpack.c.b16 %v2954, %v2950
        %v3287 = vpack.c.b16 %v2955, %v2951
        %v3288 = vpack.c.b16 %v2956, %v2952
        %v3289 = vpack.c.b16 %v2961, %v2957
        %v3290 = vpack.c.b16 %v2962, %v2958
        %v3291 = vpack.c.b16 %v2963, %v2959
        %v3292 = vpack.c.b16 %v2964, %v2960
        %v3293 = vpack.c.b16 %v2969, %v2965
        %v3294 = vpack.c.b16 %v2970, %v2966
        %v3295 = vpack.c.b16 %v2971, %v2967
        %v3296 = vpack.c.b16 %v2972, %v2968
        %v3297 = vpack.c.b16 %v2977, %v2973
        %v3298 = vpack.c.b16 %v2978, %v2974
        %v3299 = vpack.c.b16 %v2979, %v2975
        %v3300 = vpack.c.b16 %v2980, %v2976
        %v3301 = vpack.c.b16 %v2985, %v2981
        %v3302 = vpack.c.b16 %v2986, %v2982
        %v3303 = vpack.c.b16 %v2987, %v2983
        %v3304 = vpack.c.b16 %v2988, %v2984
        %v3305 = vpack.c.b16 %v2993, %v2989
        %v3306 = vpack.c.b16 %v2994, %v2990
        %v3307 = vpack.c.b16 %v2995, %v2991
        %v3308 = vpack.c.b16 %v2996, %v2992
        %v3309 = vpack.c.b16 %v3001, %v2997
        %v3310 = vpack.c.b16 %v3002, %v2998
        %v3311 = vpack.c.b16 %v3003, %v2999
        %v3312 = vpack.c.b16 %v3004, %v3000
        %v3313 = vpack.c.b16 %v3009, %v3005
        %v3314 = vpack.c.b16 %v3010, %v3006
        %v3315 = vpack.c.b16 %v3011, %v3007
        %v3316 = vpack.c.b16 %v3012, %v3008
        %v3317 = vpack.c.b16 %v3017, %v3013
        %v3318 = vpack.c.b16 %v3018, %v3014
        %v3319 = vpack.c.b16 %v3019, %v3015
        %v3320 = vpack.c.b16 %v3020, %v3016
        %v3321 = vpack.c.b16 %v3025, %v3021
        %v3322 = vpack.c.b16 %v3026, %v3022
        %v3323 = vpack.c.b16 %v3027, %v3023
        %v3324 = vpack.c.b16 %v3028, %v3024
        %v3325 = vpack.c.b16 %v3033, %v3029
        %v3326 = vpack.c.b16 %v3034, %v3030
        %v3327 = vpack.c.b16 %v3035, %v3031
        %v3328 = vpack.c.b16 %v3036, %v3032
        %v3329 = vpack.c.b16 %v3041, %v3037
        %v3330 = vpack.c.b16 %v3042, %v3038
        %v3331 = vpack.c.b16 %v3043, %v3039
        %v3332 = vpack.c.b16 %v3044, %v3040
        %v3333 = vpack.c.b16 %v3049, %v3045
        %v3334 = vpack.c.b16 %v3050, %v3046
        %v3335 = vpack.c.b16 %v3051, %v3047
        %v3336 = vpack.c.b16 %v3052, %v3048
        %v3337 = vpack.c.b16 %v3057, %v3053
        %v3338 = vpack.c.b16 %v3058, %v3054
        %v3339 = vpack.c.b16 %v3059, %v3055
        %v3340 = vpack.c.b16 %v3060, %v3056
        %v3341 = vpack.c.b16 %v3065, %v3061
        %v3342 = vpack.c.b16 %v3066, %v3062
        %v3343 = vpack.c.b16 %v3067, %v3063
        %v3344 = vpack.c.b16 %v3068, %v3064
        %v3345 = vpack.c.b16 %v3073, %v3069
        %v3346 = vpack.c.b16 %v3074, %v3070
        %v3347 = vpack.c.b16 %v3075, %v3071
        %v3348 = vpack.c.b16 %v3076, %v3072
        %v3349 = vpack.c.b16 %v3081, %v3077
        %v3350 = vpack.c.b16 %v3082, %v3078
        %v3351 = vpack.c.b16 %v3083, %v3079
        %v3352 = vpack.c.b16 %v3084, %v3080
        %v3353 = vpack.c.b16 %v3089, %v3085
        %v3354 = vpack.c.b16 %v3090, %v3086
        %v3355 = vpack.c.b16 %v3091, %v3087
        %v3356 = vpack.c.b16 %v3092, %v3088
        %v3357 = vpack.c.b16 %v3097, %v3093
        %v3358 = vpack.c.b16 %v3098, %v3094
        %v3359 = vpack.c.b16 %v3099, %v3095
        %v3360 = vpack.c.b16 %v3100, %v3096
        %v3361 = vpack.c.b16 %v3105, %v3101
        %v3362 = vpack.c.b16 %v3106, %v3102
        %v3363 = vpack.c.b16 %v3107, %v3103
        %v3364 = vpack.c.b16 %v3108, %v3104
        %v3365 = vpack.c.b16 %v3113, %v3109
        %v3366 = vpack.c.b16 %v3114, %v3110
        %v3367 = vpack.c.b16 %v3115, %v3111
        %v3368 = vpack.c.b16 %v3116, %v3112
        %v3369 = vpack.c.b16 %v3121, %v3117
        %v3370 = vpack.c.b16 %v3122, %v3118
        %v3371 = vpack.c.b16 %v3123, %v3119
        %v3372 = vpack.c.b16 %v3124, %v3120
        %v3373 = vpack.c.b16 %v3129, %v3125
        %v3374 = vpack.c.b16 %v3130, %v3126
        %v3375 = vpack.c.b16 %v3131, %v3127
        %v3376 = vpack.c.b16 %v3132, %v3128
        %v3377 = vpack.c.b16 %v3137, %v3133
        %v3378 = vpack.c.b16 %v3138, %v3134
        %v3379 = vpack.c.b16 %v3139, %v3135
        %v3380 = vpack.c.b16 %v3140, %v3136
        %v3381 = vpack.c.b16 %v3145, %v3141
        %v3382 = vpack.c.b16 %v3146, %v3142
        %v3383 = vpack.c.b16 %v3147, %v3143
        %v3384 = vpack.c.b16 %v3148, %v3144
        %v3385 = vpack.c.b16 %v3153, %v3149
        %v3386 = vpack.c.b16 %v3154, %v3150
        %v3387 = vpack.c.b16 %v3155, %v3151
        %v3388 = vpack.c.b16 %v3156, %v3152
        %v3389 = vpack.c.b16 %v3161, %v3157
        %v3390 = vpack.c.b16 %v3162, %v3158
        %v3391 = vpack.c.b16 %v3163, %v3159
        %v3392 = vpack.c.b16 %v3164, %v3160
        %v3393 = vpack.c.b16 %v3169, %v3165
        %v3394 = vpack.c.b16 %v3170, %v3166
        %v3395 = vpack.c.b16 %v3171, %v3167
        %v3396 = vpack.c.b16 %v3172, %v3168
        %v3397 = vpack.c.b16 %v3177, %v3173
        %v3398 = vpack.c.b16 %v3178, %v3174
        %v3399 = vpack.c.b16 %v3179, %v3175
        %v3400 = vpack.c.b16 %v3180, %v3176
        %v3401 = vpack.c.b16 %v3185, %v3181
        %v3402 = vpack.c.b16 %v3186, %v3182
        %v3403 = vpack.c.b16 %v3187, %v3183
        %v3404 = vpack.c.b16 %v3188, %v3184
        %v3405 = vpack.c.b16 %v3193, %v3189
        %v3406 = vpack.c.b16 %v3194, %v3190
        %v3407 = vpack.c.b16 %v3195, %v3191
        %v3408 = vpack.c.b16 %v3196, %v3192
        %v3409 = vpack.c.b16 %v3201, %v3197
        %v3410 = vpack.c.b16 %v3202, %v3198
        %v3411 = vpack.c.b16 %v3203, %v3199
        %v3412 = vpack.c.b16 %v3204, %v3200
        %v3413 = vpack.c.b16 %v3209, %v3205
        %v3414 = vpack.c.b16 %v3210, %v3206
        %v3415 = vpack.c.b16 %v3211, %v3207
        %v3416 = vpack.c.b16 %v3212, %v3208
        %v3417 = vpack.c.b16 %v3217, %v3213
        %v3418 = vpack.c.b16 %v3218, %v3214
        %v3419 = vpack.c.b16 %v3219, %v3215
        %v3420 = vpack.c.b16 %v3220, %v3216
        %v3421 = vpack.c.b16 %v3225, %v3221
        %v3422 = vpack.c.b16 %v3226, %v3222
        %v3423 = vpack.c.b16 %v3227, %v3223
        %v3424 = vpack.c.b16 %v3228, %v3224
        %v3425 = vpack.c.b16 %v3233, %v3229
        %v3426 = vpack.c.b16 %v3234, %v3230
        %v3427 = vpack.c.b16 %v3235, %v3231
        %v3428 = vpack.c.b16 %v3236, %v3232
        %3621 = vmatprep.subr.bf16.mxu0 %v3266
        %3622 = vmatpush1.bf16.msra.mxu0 %v3265
        %3623 = vmatprep.subr.bf16.mxu0 %v3262
        %3624 = vmatpush1.bf16.msra.mxu0 %v3261
        %3625 = vmatprep.subr.bf16.mxu0 %v3258
        %3626 = vmatpush1.bf16.msra.mxu0 %v3257
        %3627 = vmatprep.subr.bf16.mxu0 %v3254
        %3628 = vmatpush1.bf16.msra.mxu0 %v3253
        %3629 = vmatprep.subr.bf16.mxu0 %v3250
        %3630 = vmatpush1.bf16.msra.mxu0 %v3249
        %3631 = vmatprep.subr.bf16.mxu0 %v3246
        %3632 = vmatpush1.bf16.msra.mxu0 %v3245
        %3633 = vmatprep.subr.bf16.mxu0 %v3242
        %3634 = vmatpush1.bf16.msra.mxu0 %v3241
        %3635 = vmatprep.subr.bf16.mxu0 %v3238
        %3636 = vmatpush1.bf16.msra.mxu0 %v3237
        %3637 = vmatprep.subr.bf16.mxu0 %v3298
        %3638 = vmatpush2.bf16.msra.mxu0 %v3297
        %3639 = vmatprep.subr.bf16.mxu0 %v3294
        %3640 = vmatpush2.bf16.msra.mxu0 %v3293
        %3641 = vmatprep.subr.bf16.mxu0 %v3290
        %3642 = vmatpush2.bf16.msra.mxu0 %v3289
        %3643 = vmatprep.subr.bf16.mxu0 %v3286
        %3644 = vmatpush2.bf16.msra.mxu0 %v3285
        %3645 = vmatprep.subr.bf16.mxu0 %v3282
        %3646 = vmatpush2.bf16.msra.mxu0 %v3281
        %3647 = vmatprep.subr.bf16.mxu0 %v3278
        %3648 = vmatpush2.bf16.msra.mxu0 %v3277
        %3649 = vmatprep.subr.bf16.mxu0 %v3274
        %3650 = vmatpush2.bf16.msra.mxu0 %v3273
        %3651 = vmatprep.subr.bf16.mxu0 %v3270
        %3652 = vmatpush2.bf16.msra.mxu0 %v3269
        %3653 = vmatprep.mubr.bf16.mxu0 %v2586
        %3654 = vmatmul.mubr.bf16.gmra.mxu0 %v2569
        %v3655 = vpop.f32.mrf.mxu0
        %v3656 = vadd.f32 %v2535, %v3655
        %v3657 = vpop.f32.mrf.mxu0
        %v3658 = vadd.f32 %v2539, %v3657
        %v3659 = vpop.f32.mrf.mxu0
        %v3660 = vadd.f32 %v2535, %v3659
        %v3661 = vpop.f32.mrf.mxu0
        %v3662 = vadd.f32 %v2539, %v3661
        %3663 = vdwg.mxu0
        %3664 = vmatprep.subr.bf16.mxu0 %v3330
        %3665 = vmatpush1.bf16.msra.mxu0 %v3329
        %3666 = vmatprep.subr.bf16.mxu0 %v3326
        %3667 = vmatpush1.bf16.msra.mxu0 %v3325
        %3668 = vmatprep.subr.bf16.mxu0 %v3322
        %3669 = vmatpush1.bf16.msra.mxu0 %v3321
        %3670 = vmatprep.subr.bf16.mxu0 %v3318
        %3671 = vmatpush1.bf16.msra.mxu0 %v3317
        %3672 = vmatprep.subr.bf16.mxu0 %v3314
        %3673 = vmatpush1.bf16.msra.mxu0 %v3313
        %3674 = vmatprep.subr.bf16.mxu0 %v3310
        %3675 = vmatpush1.bf16.msra.mxu0 %v3309
        %3676 = vmatprep.subr.bf16.mxu0 %v3306
        %3677 = vmatpush1.bf16.msra.mxu0 %v3305
        %3678 = vmatprep.subr.bf16.mxu0 %v3302
        %3679 = vmatpush1.bf16.msra.mxu0 %v3301
        %3680 = vmatprep.subr.bf16.mxu0 %v3362
        %3681 = vmatpush2.bf16.msra.mxu0 %v3361
        %3682 = vmatprep.subr.bf16.mxu0 %v3358
        %3683 = vmatpush2.bf16.msra.mxu0 %v3357
        %3684 = vmatprep.subr.bf16.mxu0 %v3354
        %3685 = vmatpush2.bf16.msra.mxu0 %v3353
        %3686 = vmatprep.subr.bf16.mxu0 %v3350
        %3687 = vmatpush2.bf16.msra.mxu0 %v3349
        %3688 = vmatprep.subr.bf16.mxu0 %v3346
        %3689 = vmatpush2.bf16.msra.mxu0 %v3345
        %3690 = vmatprep.subr.bf16.mxu0 %v3342
        %3691 = vmatpush2.bf16.msra.mxu0 %v3341
        %3692 = vmatprep.subr.bf16.mxu0 %v3338
        %3693 = vmatpush2.bf16.msra.mxu0 %v3337
        %3694 = vmatprep.subr.bf16.mxu0 %v3334
        %3695 = vmatpush2.bf16.msra.mxu0 %v3333
        %3696 = vmatprep.mubr.bf16.mxu0 %v2620
        %3697 = vmatmul.mubr.bf16.gmra.mxu0 %v2603
        %v3698 = vpop.f32.mrf.mxu0
        %v3699 = vadd.f32 %v3656, %v3698
        %v3700 = vpop.f32.mrf.mxu0
        %v3701 = vadd.f32 %v3658, %v3700
        %v3702 = vpop.f32.mrf.mxu0
        %v3703 = vadd.f32 %v3660, %v3702
        %v3704 = vpop.f32.mrf.mxu0
        %v3705 = vadd.f32 %v3662, %v3704
        %3706 = vdwg.mxu0
        %3707 = vmatprep.subr.bf16.mxu0 %v3394
        %3708 = vmatpush1.bf16.msra.mxu0 %v3393
        %3709 = vmatprep.subr.bf16.mxu0 %v3390
        %3710 = vmatpush1.bf16.msra.mxu0 %v3389
        %3711 = vmatprep.subr.bf16.mxu0 %v3386
        %3712 = vmatpush1.bf16.msra.mxu0 %v3385
        %3713 = vmatprep.subr.bf16.mxu0 %v3382
        %3714 = vmatpush1.bf16.msra.mxu0 %v3381
        %3715 = vmatprep.subr.bf16.mxu0 %v3378
        %3716 = vmatpush1.bf16.msra.mxu0 %v3377
        %3717 = vmatprep.subr.bf16.mxu0 %v3374
        %3718 = vmatpush1.bf16.msra.mxu0 %v3373
        %3719 = vmatprep.subr.bf16.mxu0 %v3370
        %3720 = vmatpush1.bf16.msra.mxu0 %v3369
        %3721 = vmatprep.subr.bf16.mxu0 %v3366
        %3722 = vmatpush1.bf16.msra.mxu0 %v3365
        %3723 = vmatprep.subr.bf16.mxu0 %v3426
        %3724 = vmatpush2.bf16.msra.mxu0 %v3425
        %3725 = vmatprep.subr.bf16.mxu0 %v3422
        %3726 = vmatpush2.bf16.msra.mxu0 %v3421
        %3727 = vmatprep.subr.bf16.mxu0 %v3418
        %3728 = vmatpush2.bf16.msra.mxu0 %v3417
        %3729 = vmatprep.subr.bf16.mxu0 %v3414
        %3730 = vmatpush2.bf16.msra.mxu0 %v3413
        %3731 = vmatprep.subr.bf16.mxu0 %v3410
        %3732 = vmatpush2.bf16.msra.mxu0 %v3409
        %3733 = vmatprep.subr.bf16.mxu0 %v3406
        %3734 = vmatpush2.bf16.msra.mxu0 %v3405
        %3735 = vmatprep.subr.bf16.mxu0 %v3402
        %3736 = vmatpush2.bf16.msra.mxu0 %v3401
        %3737 = vmatprep.subr.bf16.mxu0 %v3398
        %3738 = vmatpush2.bf16.msra.mxu0 %v3397
        %3739 = vmatprep.mubr.bf16.mxu0 %v2654
        %3740 = vmatmul.mubr.bf16.gmra.mxu0 %v2637
        %v3741 = vpop.f32.mrf.mxu0
        %v3742 = vadd.f32 %v3699, %v3741
        %v3743 = vpop.f32.mrf.mxu0
        %v3744 = vadd.f32 %v3701, %v3743
        %v3745 = vpop.f32.mrf.mxu0
        %v3746 = vadd.f32 %v3703, %v3745
        %v3747 = vpop.f32.mrf.mxu0
        %v3748 = vadd.f32 %v3705, %v3747
        %3749 = vdwg.mxu0
        %3750 = vmatprep.subr.bf16.mxu0 %v3268
        %3751 = vmatpush1.bf16.msra.mxu0 %v3267
        %3752 = vmatprep.subr.bf16.mxu0 %v3264
        %3753 = vmatpush1.bf16.msra.mxu0 %v3263
        %3754 = vmatprep.subr.bf16.mxu0 %v3260
        %3755 = vmatpush1.bf16.msra.mxu0 %v3259
        %3756 = vmatprep.subr.bf16.mxu0 %v3256
        %3757 = vmatpush1.bf16.msra.mxu0 %v3255
        %3758 = vmatprep.subr.bf16.mxu0 %v3252
        %3759 = vmatpush1.bf16.msra.mxu0 %v3251
        %3760 = vmatprep.subr.bf16.mxu0 %v3248
        %3761 = vmatpush1.bf16.msra.mxu0 %v3247
        %3762 = vmatprep.subr.bf16.mxu0 %v3244
        %3763 = vmatpush1.bf16.msra.mxu0 %v3243
        %3764 = vmatprep.subr.bf16.mxu0 %v3240
        %3765 = vmatpush1.bf16.msra.mxu0 %v3239
        %3766 = vmatprep.subr.bf16.mxu0 %v3300
        %3767 = vmatpush2.bf16.msra.mxu0 %v3299
        %3768 = vmatprep.subr.bf16.mxu0 %v3296
        %3769 = vmatpush2.bf16.msra.mxu0 %v3295
        %3770 = vmatprep.subr.bf16.mxu0 %v3292
        %3771 = vmatpush2.bf16.msra.mxu0 %v3291
        %3772 = vmatprep.subr.bf16.mxu0 %v3288
        %3773 = vmatpush2.bf16.msra.mxu0 %v3287
        %3774 = vmatprep.subr.bf16.mxu0 %v3284
        %3775 = vmatpush2.bf16.msra.mxu0 %v3283
        %3776 = vmatprep.subr.bf16.mxu0 %v3280
        %3777 = vmatpush2.bf16.msra.mxu0 %v3279
        %3778 = vmatprep.subr.bf16.mxu0 %v3276
        %3779 = vmatpush2.bf16.msra.mxu0 %v3275
        %3780 = vmatprep.subr.bf16.mxu0 %v3272
        %3781 = vmatpush2.bf16.msra.mxu0 %v3271
        %3782 = vmatprep.mubr.bf16.mxu0 %v2586
        %3783 = vmatmul.mubr.bf16.gmra.mxu0 %v2569
        %v3784 = vpop.f32.mrf.mxu0
        %v3785 = vadd.f32 %v2543, %v3784
        %v3786 = vpop.f32.mrf.mxu0
        %v3787 = vadd.f32 %v2547, %v3786
        %v3788 = vpop.f32.mrf.mxu0
        %v3789 = vadd.f32 %v2543, %v3788
        %v3790 = vpop.f32.mrf.mxu0
        %v3791 = vadd.f32 %v2547, %v3790
        %3792 = vdwg.mxu0
        %3793 = vmatprep.subr.bf16.mxu0 %v3332
        %3794 = vmatpush1.bf16.msra.mxu0 %v3331
        %3795 = vmatprep.subr.bf16.mxu0 %v3328
        %3796 = vmatpush1.bf16.msra.mxu0 %v3327
        %3797 = vmatprep.subr.bf16.mxu0 %v3324
        %3798 = vmatpush1.bf16.msra.mxu0 %v3323
        %3799 = vmatprep.subr.bf16.mxu0 %v3320
        %3800 = vmatpush1.bf16.msra.mxu0 %v3319
        %3801 = vmatprep.subr.bf16.mxu0 %v3316
        %3802 = vmatpush1.bf16.msra.mxu0 %v3315
        %3803 = vmatprep.subr.bf16.mxu0 %v3312
        %3804 = vmatpush1.bf16.msra.mxu0 %v3311
        %3805 = vmatprep.subr.bf16.mxu0 %v3308
        %3806 = vmatpush1.bf16.msra.mxu0 %v3307
        %3807 = vmatprep.subr.bf16.mxu0 %v3304
        %3808 = vmatpush1.bf16.msra.mxu0 %v3303
        %3809 = vmatprep.subr.bf16.mxu0 %v3364
        %3810 = vmatpush2.bf16.msra.mxu0 %v3363
        %3811 = vmatprep.subr.bf16.mxu0 %v3360
        %3812 = vmatpush2.bf16.msra.mxu0 %v3359
        %3813 = vmatprep.subr.bf16.mxu0 %v3356
        %3814 = vmatpush2.bf16.msra.mxu0 %v3355
        %3815 = vmatprep.subr.bf16.mxu0 %v3352
        %3816 = vmatpush2.bf16.msra.mxu0 %v3351
        %3817 = vmatprep.subr.bf16.mxu0 %v3348
        %3818 = vmatpush2.bf16.msra.mxu0 %v3347
        %3819 = vmatprep.subr.bf16.mxu0 %v3344
        %3820 = vmatpush2.bf16.msra.mxu0 %v3343
        %3821 = vmatprep.subr.bf16.mxu0 %v3340
        %3822 = vmatpush2.bf16.msra.mxu0 %v3339
        %3823 = vmatprep.subr.bf16.mxu0 %v3336
        %3824 = vmatpush2.bf16.msra.mxu0 %v3335
        %3825 = vmatprep.mubr.bf16.mxu0 %v2620
        %3826 = vmatmul.mubr.bf16.gmra.mxu0 %v2603
        %v3827 = vpop.f32.mrf.mxu0
        %v3828 = vadd.f32 %v3785, %v3827
        %v3829 = vpop.f32.mrf.mxu0
        %v3830 = vadd.f32 %v3787, %v3829
        %v3831 = vpop.f32.mrf.mxu0
        %v3832 = vadd.f32 %v3789, %v3831
        %v3833 = vpop.f32.mrf.mxu0
        %v3834 = vadd.f32 %v3791, %v3833
        %3835 = vdwg.mxu0
        %3836 = vmatprep.subr.bf16.mxu0 %v3396
        %3837 = vmatpush1.bf16.msra.mxu0 %v3395
        %3838 = vmatprep.subr.bf16.mxu0 %v3392
        %3839 = vmatpush1.bf16.msra.mxu0 %v3391
        %3840 = vmatprep.subr.bf16.mxu0 %v3388
        %3841 = vmatpush1.bf16.msra.mxu0 %v3387
        %3842 = vmatprep.subr.bf16.mxu0 %v3384
        %3843 = vmatpush1.bf16.msra.mxu0 %v3383
        %3844 = vmatprep.subr.bf16.mxu0 %v3380
        %3845 = vmatpush1.bf16.msra.mxu0 %v3379
        %3846 = vmatprep.subr.bf16.mxu0 %v3376
        %3847 = vmatpush1.bf16.msra.mxu0 %v3375
        %3848 = vmatprep.subr.bf16.mxu0 %v3372
        %3849 = vmatpush1.bf16.msra.mxu0 %v3371
        %3850 = vmatprep.subr.bf16.mxu0 %v3368
        %3851 = vmatpush1.bf16.msra.mxu0 %v3367
        %3852 = vmatprep.subr.bf16.mxu0 %v3428
        %3853 = vmatpush2.bf16.msra.mxu0 %v3427
        %3854 = vmatprep.subr.bf16.mxu0 %v3424
        %3855 = vmatpush2.bf16.msra.mxu0 %v3423
        %3856 = vmatprep.subr.bf16.mxu0 %v3420
        %3857 = vmatpush2.bf16.msra.mxu0 %v3419
        %3858 = vmatprep.subr.bf16.mxu0 %v3416
        %3859 = vmatpush2.bf16.msra.mxu0 %v3415
        %3860 = vmatprep.subr.bf16.mxu0 %v3412
        %3861 = vmatpush2.bf16.msra.mxu0 %v3411
        %3862 = vmatprep.subr.bf16.mxu0 %v3408
        %3863 = vmatpush2.bf16.msra.mxu0 %v3407
        %3864 = vmatprep.subr.bf16.mxu0 %v3404
        %3865 = vmatpush2.bf16.msra.mxu0 %v3403
        %3866 = vmatprep.subr.bf16.mxu0 %v3400
        %3867 = vmatpush2.bf16.msra.mxu0 %v3399
        %3868 = vmatprep.mubr.bf16.mxu0 %v2654
        %3869 = vmatmul.mubr.bf16.gmra.mxu0 %v2637
        %v3870 = vpop.f32.mrf.mxu0
        %v3871 = vadd.f32 %v3828, %v3870
        %v3872 = vpop.f32.mrf.mxu0
        %v3873 = vadd.f32 %v3830, %v3872
        %v3874 = vpop.f32.mrf.mxu0
        %v3875 = vadd.f32 %v3832, %v3874
        %v3876 = vpop.f32.mrf.mxu0
        %v3877 = vadd.f32 %v3834, %v3876
        %3878 = vdwg.mxu0
        %v3879 = vld [vmem:[%s11] sm:$0xf]
        %v3880 = vld [vmem:[%s12] sm:$0xf]
        %3881 = vmatprep.subr.mxu0 0.0
        %3882 = vmatpush1.msra.mxu0 0.0
        %3883 = vmatprep.subr.mxu0 0.0
        %3884 = vmatpush1.msra.mxu0 0.0
        %3885 = vmatprep.subr.mxu0 0.0
        %3886 = vmatpush1.msra.mxu0 0.0
        %3887 = vmatprep.subr.mxu0 0.0
        %3888 = vmatpush1.msra.mxu0 0.0
        %3889 = vmatprep.subr.mxu0 0.0
        %3890 = vmatpush1.msra.mxu0 0.0
        %3891 = vmatprep.subr.mxu0 0.0
        %3892 = vmatpush1.msra.mxu0 0.0
        %3893 = vmatprep.subr.mxu0 0.0
        %3894 = vmatpush1.msra.mxu0 0.0
        %3895 = vmatprep.subr.mxu0 0.0
        %3896 = vmatpush1.msra.mxu0 0.0
        %3897 = vmatprep.subr.mxu0 0.0
        %3898 = vmatpush1.msra.mxu0 0.0
        %3899 = vmatprep.subr.mxu0 0.0
        %3900 = vmatpush1.msra.mxu0 0.0
        %3901 = vmatprep.subr.mxu0 0.0
        %3902 = vmatpush1.msra.mxu0 0.0
        %3903 = vmatprep.subr.mxu0 0.0
        %3904 = vmatpush1.msra.mxu0 0.0
        %3905 = vmatprep.subr.mxu0 0.0
        %3906 = vmatpush1.msra.mxu0 0.0
        %3907 = vmatprep.subr.mxu0 0.0
        %3908 = vmatpush1.msra.mxu0 0.0
        %3909 = vmatprep.subr.mxu0 %v3748
        %3910 = vmatpush1.msra.mxu0 %v3746
        %3911 = vmatprep.subr.mxu0 %v3744
        %3912 = vmatpush1.msra.mxu0 %v3742
        %3913 = vmatprep.subr.mxu0 0.0
        %3914 = vmatpush2.msra.mxu0 0.0
        %3915 = vmatprep.subr.mxu0 0.0
        %3916 = vmatpush2.msra.mxu0 0.0
        %3917 = vmatprep.subr.mxu0 0.0
        %3918 = vmatpush2.msra.mxu0 0.0
        %3919 = vmatprep.subr.mxu0 0.0
        %3920 = vmatpush2.msra.mxu0 0.0
        %3921 = vmatprep.subr.mxu0 0.0
        %3922 = vmatpush2.msra.mxu0 0.0
        %3923 = vmatprep.subr.mxu0 0.0
        %3924 = vmatpush2.msra.mxu0 0.0
        %3925 = vmatprep.subr.mxu0 0.0
        %3926 = vmatpush2.msra.mxu0 0.0
        %3927 = vmatprep.subr.mxu0 0.0
        %3928 = vmatpush2.msra.mxu0 0.0
        %3929 = vmatprep.subr.mxu0 0.0
        %3930 = vmatpush2.msra.mxu0 0.0
        %3931 = vmatprep.subr.mxu0 0.0
        %3932 = vmatpush2.msra.mxu0 0.0
        %3933 = vmatprep.subr.mxu0 0.0
        %3934 = vmatpush2.msra.mxu0 0.0
        %3935 = vmatprep.subr.mxu0 0.0
        %3936 = vmatpush2.msra.mxu0 0.0
        %3937 = vmatprep.subr.mxu0 0.0
        %3938 = vmatpush2.msra.mxu0 0.0
        %3939 = vmatprep.subr.mxu0 0.0
        %3940 = vmatpush2.msra.mxu0 0.0
        %3941 = vmatprep.subr.mxu0 0.0
        %3942 = vmatpush2.msra.mxu0 0.0
        %3943 = vmatprep.subr.mxu0 0.0
        %3944 = vmatpush2.msra.mxu0 0.0
        %3945 = vmatprep.mubr.f32.mxu0 0.0
        %3946 = vmatmul.mubr.f32.gmra.mxu0 %v540
        %v3947 = vpop.f32.mrf.mxu0
        %v3948 = vadd.f32 0.0, %v3947
        %v3949 = vpop.f32.mrf.mxu0
        %v3950 = vadd.f32 0.0, %v3949
        %3951 = vdwg.mxu0
        %3952 = vmatprep.subr.mxu0 0.0
        %3953 = vmatpush1.msra.mxu0 0.0
        %3954 = vmatprep.subr.mxu0 0.0
        %3955 = vmatpush1.msra.mxu0 0.0
        %3956 = vmatprep.subr.mxu0 0.0
        %3957 = vmatpush1.msra.mxu0 0.0
        %3958 = vmatprep.subr.mxu0 0.0
        %3959 = vmatpush1.msra.mxu0 0.0
        %3960 = vmatprep.subr.mxu0 0.0
        %3961 = vmatpush1.msra.mxu0 0.0
        %3962 = vmatprep.subr.mxu0 0.0
        %3963 = vmatpush1.msra.mxu0 0.0
        %3964 = vmatprep.subr.mxu0 0.0
        %3965 = vmatpush1.msra.mxu0 0.0
        %3966 = vmatprep.subr.mxu0 0.0
        %3967 = vmatpush1.msra.mxu0 0.0
        %3968 = vmatprep.subr.mxu0 0.0
        %3969 = vmatpush1.msra.mxu0 0.0
        %3970 = vmatprep.subr.mxu0 0.0
        %3971 = vmatpush1.msra.mxu0 0.0
        %3972 = vmatprep.subr.mxu0 0.0
        %3973 = vmatpush1.msra.mxu0 0.0
        %3974 = vmatprep.subr.mxu0 0.0
        %3975 = vmatpush1.msra.mxu0 0.0
        %3976 = vmatprep.subr.mxu0 0.0
        %3977 = vmatpush1.msra.mxu0 0.0
        %3978 = vmatprep.subr.mxu0 0.0
        %3979 = vmatpush1.msra.mxu0 0.0
        %3980 = vmatprep.subr.mxu0 %v3877
        %3981 = vmatpush1.msra.mxu0 %v3875
        %3982 = vmatprep.subr.mxu0 %v3873
        %3983 = vmatpush1.msra.mxu0 %v3871
        %3984 = vmatprep.subr.mxu0 0.0
        %3985 = vmatpush2.msra.mxu0 0.0
        %3986 = vmatprep.subr.mxu0 0.0
        %3987 = vmatpush2.msra.mxu0 0.0
        %3988 = vmatprep.subr.mxu0 0.0
        %3989 = vmatpush2.msra.mxu0 0.0
        %3990 = vmatprep.subr.mxu0 0.0
        %3991 = vmatpush2.msra.mxu0 0.0
        %3992 = vmatprep.subr.mxu0 0.0
        %3993 = vmatpush2.msra.mxu0 0.0
        %3994 = vmatprep.subr.mxu0 0.0
        %3995 = vmatpush2.msra.mxu0 0.0
        %3996 = vmatprep.subr.mxu0 0.0
        %3997 = vmatpush2.msra.mxu0 0.0
        %3998 = vmatprep.subr.mxu0 0.0
        %3999 = vmatpush2.msra.mxu0 0.0
        %4000 = vmatprep.subr.mxu0 0.0
        %4001 = vmatpush2.msra.mxu0 0.0
        %4002 = vmatprep.subr.mxu0 0.0
        %4003 = vmatpush2.msra.mxu0 0.0
        %4004 = vmatprep.subr.mxu0 0.0
        %4005 = vmatpush2.msra.mxu0 0.0
        %4006 = vmatprep.subr.mxu0 0.0
        %4007 = vmatpush2.msra.mxu0 0.0
        %4008 = vmatprep.subr.mxu0 0.0
        %4009 = vmatpush2.msra.mxu0 0.0
        %4010 = vmatprep.subr.mxu0 0.0
        %4011 = vmatpush2.msra.mxu0 0.0
        %4012 = vmatprep.subr.mxu0 0.0
        %4013 = vmatpush2.msra.mxu0 0.0
        %4014 = vmatprep.subr.mxu0 0.0
        %4015 = vmatpush2.msra.mxu0 0.0
        %4016 = vmatprep.mubr.f32.mxu0 0.0
        %4017 = vmatmul.mubr.f32.gmra.mxu0 %v540
        %v4018 = vpop.f32.mrf.mxu0
        %v4019 = vadd.f32 0.0, %v4018
        %v4020 = vpop.f32.mrf.mxu0
        %v4021 = vadd.f32 0.0, %v4020
        %4022 = vdwg.mxu0
        %v4023 = vmul.f32 %v3742, %v3742
        %v4024 = vmul.f32 %v3744, %v3744
        %v4025 = vmul.f32 %v3871, %v3871
        %v4026 = vmul.f32 %v3873, %v3873
        %v4027 = vmul.f32 %v3746, %v3746
        %v4028 = vmul.f32 %v3748, %v3748
        %v4029 = vmul.f32 %v3875, %v3875
        %v4030 = vmul.f32 %v3877, %v3877
        %4031 = vmatprep.subr.mxu0 0.0
        %4032 = vmatpush1.msra.mxu0 0.0
        %4033 = vmatprep.subr.mxu0 0.0
        %4034 = vmatpush1.msra.mxu0 0.0
        %4035 = vmatprep.subr.mxu0 0.0
        %4036 = vmatpush1.msra.mxu0 0.0
        %4037 = vmatprep.subr.mxu0 0.0
        %4038 = vmatpush1.msra.mxu0 0.0
        %4039 = vmatprep.subr.mxu0 0.0
        %4040 = vmatpush1.msra.mxu0 0.0
        %4041 = vmatprep.subr.mxu0 0.0
        %4042 = vmatpush1.msra.mxu0 0.0
        %4043 = vmatprep.subr.mxu0 0.0
        %4044 = vmatpush1.msra.mxu0 0.0
        %4045 = vmatprep.subr.mxu0 0.0
        %4046 = vmatpush1.msra.mxu0 0.0
        %4047 = vmatprep.subr.mxu0 0.0
        %4048 = vmatpush1.msra.mxu0 0.0
        %4049 = vmatprep.subr.mxu0 0.0
        %4050 = vmatpush1.msra.mxu0 0.0
        %4051 = vmatprep.subr.mxu0 0.0
        %4052 = vmatpush1.msra.mxu0 0.0
        %4053 = vmatprep.subr.mxu0 0.0
        %4054 = vmatpush1.msra.mxu0 0.0
        %4055 = vmatprep.subr.mxu0 0.0
        %4056 = vmatpush1.msra.mxu0 0.0
        %4057 = vmatprep.subr.mxu0 0.0
        %4058 = vmatpush1.msra.mxu0 0.0
        %4059 = vmatprep.subr.mxu0 %v4028
        %4060 = vmatpush1.msra.mxu0 %v4027
        %4061 = vmatprep.subr.mxu0 %v4024
        %4062 = vmatpush1.msra.mxu0 %v4023
        %4063 = vmatprep.subr.mxu0 0.0
        %4064 = vmatpush2.msra.mxu0 0.0
        %4065 = vmatprep.subr.mxu0 0.0
        %4066 = vmatpush2.msra.mxu0 0.0
        %4067 = vmatprep.subr.mxu0 0.0
        %4068 = vmatpush2.msra.mxu0 0.0
        %4069 = vmatprep.subr.mxu0 0.0
        %4070 = vmatpush2.msra.mxu0 0.0
        %4071 = vmatprep.subr.mxu0 0.0
        %4072 = vmatpush2.msra.mxu0 0.0
        %4073 = vmatprep.subr.mxu0 0.0
        %4074 = vmatpush2.msra.mxu0 0.0
        %4075 = vmatprep.subr.mxu0 0.0
        %4076 = vmatpush2.msra.mxu0 0.0
        %4077 = vmatprep.subr.mxu0 0.0
        %4078 = vmatpush2.msra.mxu0 0.0
        %4079 = vmatprep.subr.mxu0 0.0
        %4080 = vmatpush2.msra.mxu0 0.0
        %4081 = vmatprep.subr.mxu0 0.0
        %4082 = vmatpush2.msra.mxu0 0.0
        %4083 = vmatprep.subr.mxu0 0.0
        %4084 = vmatpush2.msra.mxu0 0.0
        %4085 = vmatprep.subr.mxu0 0.0
        %4086 = vmatpush2.msra.mxu0 0.0
        %4087 = vmatprep.subr.mxu0 0.0
        %4088 = vmatpush2.msra.mxu0 0.0
        %4089 = vmatprep.subr.mxu0 0.0
        %4090 = vmatpush2.msra.mxu0 0.0
        %4091 = vmatprep.subr.mxu0 0.0
        %4092 = vmatpush2.msra.mxu0 0.0
        %4093 = vmatprep.subr.mxu0 0.0
        %4094 = vmatpush2.msra.mxu0 0.0
        %4095 = vmatprep.mubr.f32.mxu0 0.0
        %4096 = vmatmul.mubr.f32.gmra.mxu0 %v540
        %v4097 = vpop.f32.mrf.mxu0
        %v4098 = vadd.f32 0.0, %v4097
        %v4099 = vpop.f32.mrf.mxu0
        %v4100 = vadd.f32 0.0, %v4099
        %4101 = vdwg.mxu0
        %4102 = vmatprep.subr.mxu0 0.0
        %4103 = vmatpush1.msra.mxu0 0.0
        %4104 = vmatprep.subr.mxu0 0.0
        %4105 = vmatpush1.msra.mxu0 0.0
        %4106 = vmatprep.subr.mxu0 0.0
        %4107 = vmatpush1.msra.mxu0 0.0
        %4108 = vmatprep.subr.mxu0 0.0
        %4109 = vmatpush1.msra.mxu0 0.0
        %4110 = vmatprep.subr.mxu0 0.0
        %4111 = vmatpush1.msra.mxu0 0.0
        %4112 = vmatprep.subr.mxu0 0.0
        %4113 = vmatpush1.msra.mxu0 0.0
        %4114 = vmatprep.subr.mxu0 0.0
        %4115 = vmatpush1.msra.mxu0 0.0
        %4116 = vmatprep.subr.mxu0 0.0
        %4117 = vmatpush1.msra.mxu0 0.0
        %4118 = vmatprep.subr.mxu0 0.0
        %4119 = vmatpush1.msra.mxu0 0.0
        %4120 = vmatprep.subr.mxu0 0.0
        %4121 = vmatpush1.msra.mxu0 0.0
        %4122 = vmatprep.subr.mxu0 0.0
        %4123 = vmatpush1.msra.mxu0 0.0
        %4124 = vmatprep.subr.mxu0 0.0
        %4125 = vmatpush1.msra.mxu0 0.0
        %4126 = vmatprep.subr.mxu0 0.0
        %4127 = vmatpush1.msra.mxu0 0.0
        %4128 = vmatprep.subr.mxu0 0.0
        %4129 = vmatpush1.msra.mxu0 0.0
        %4130 = vmatprep.subr.mxu0 %v4030
        %4131 = vmatpush1.msra.mxu0 %v4029
        %4132 = vmatprep.subr.mxu0 %v4026
        %4133 = vmatpush1.msra.mxu0 %v4025
        %4134 = vmatprep.subr.mxu0 0.0
        %4135 = vmatpush2.msra.mxu0 0.0
        %4136 = vmatprep.subr.mxu0 0.0
        %4137 = vmatpush2.msra.mxu0 0.0
        %4138 = vmatprep.subr.mxu0 0.0
        %4139 = vmatpush2.msra.mxu0 0.0
        %4140 = vmatprep.subr.mxu0 0.0
        %4141 = vmatpush2.msra.mxu0 0.0
        %4142 = vmatprep.subr.mxu0 0.0
        %4143 = vmatpush2.msra.mxu0 0.0
        %4144 = vmatprep.subr.mxu0 0.0
        %4145 = vmatpush2.msra.mxu0 0.0
        %4146 = vmatprep.subr.mxu0 0.0
        %4147 = vmatpush2.msra.mxu0 0.0
        %4148 = vmatprep.subr.mxu0 0.0
        %4149 = vmatpush2.msra.mxu0 0.0
        %4150 = vmatprep.subr.mxu0 0.0
        %4151 = vmatpush2.msra.mxu0 0.0
        %4152 = vmatprep.subr.mxu0 0.0
        %4153 = vmatpush2.msra.mxu0 0.0
        %4154 = vmatprep.subr.mxu0 0.0
        %4155 = vmatpush2.msra.mxu0 0.0
        %4156 = vmatprep.subr.mxu0 0.0
        %4157 = vmatpush2.msra.mxu0 0.0
        %4158 = vmatprep.subr.mxu0 0.0
        %4159 = vmatpush2.msra.mxu0 0.0
        %4160 = vmatprep.subr.mxu0 0.0
        %4161 = vmatpush2.msra.mxu0 0.0
        %4162 = vmatprep.subr.mxu0 0.0
        %4163 = vmatpush2.msra.mxu0 0.0
        %4164 = vmatprep.subr.mxu0 0.0
        %4165 = vmatpush2.msra.mxu0 0.0
        %4166 = vmatprep.mubr.f32.mxu0 0.0
        %4167 = vmatmul.mubr.f32.gmra.mxu0 %v540
        %v4168 = vpop.f32.mrf.mxu0
        %v4169 = vadd.f32 0.0, %v4168
        %v4170 = vpop.f32.mrf.mxu0
        %v4171 = vadd.f32 0.0, %v4170
        %4172 = vdwg.mxu0
        %v4173 = vadd.s32 %v685, 256
        %v4174 = vadd.s32 %v685, 264
        %v4175 = vadd.s32 %v685, 272
        %v4176 = vadd.s32 %v685, 280
        %v4177 = vadd.s32 %v685, 288
        %v4178 = vadd.s32 %v685, 296
        %v4179 = vadd.s32 %v685, 304
        %v4180 = vadd.s32 %v685, 312
        %v4181 = vadd.s32 %v685, 320
        %v4182 = vadd.s32 %v685, 328
        %v4183 = vadd.s32 %v685, 336
        %v4184 = vadd.s32 %v685, 344
        %v4185 = vadd.s32 %v685, 352
        %v4186 = vadd.s32 %v685, 360
        %v4187 = vadd.s32 %v685, 368
        %v4188 = vadd.s32 %v685, 376
        %v4189 = vadd.s32 %v685, 384
        %v4190 = vadd.s32 %v685, 392
        %v4191 = vadd.s32 %v685, 400
        %v4192 = vadd.s32 %v685, 408
        %v4193 = vadd.s32 %v685, 416
        %v4194 = vadd.s32 %v685, 424
        %v4195 = vadd.s32 %v685, 432
        %v4196 = vadd.s32 %v685, 440
        %v4197 = vadd.s32 %v685, 448
        %v4198 = vadd.s32 %v685, 456
        %v4199 = vadd.s32 %v685, 464
        %v4200 = vadd.s32 %v685, 472
        %v4201 = vadd.s32 %v685, 480
        %v4202 = vadd.s32 %v685, 488
        %v4203 = vadd.s32 %v685, 496
        %v4204 = vadd.s32 %v685, 504
        %v4205 = vmul.u32 %v702, 16
        %vm4206 = vcmp.ge.s32.totalorder %v685, %v4205
        %vm4207 = vcmp.ge.s32.totalorder %v686, %v4205
        %vm4208 = vcmp.ge.s32.totalorder %v687, %v4205
        %vm4209 = vcmp.ge.s32.totalorder %v688, %v4205
        %vm4210 = vcmp.ge.s32.totalorder %v689, %v4205
        %vm4211 = vcmp.ge.s32.totalorder %v690, %v4205
        %vm4212 = vcmp.ge.s32.totalorder %v691, %v4205
        %vm4213 = vcmp.ge.s32.totalorder %v692, %v4205
        %vm4214 = vcmp.ge.s32.totalorder %v693, %v4205
        %vm4215 = vcmp.ge.s32.totalorder %v694, %v4205
        %vm4216 = vcmp.ge.s32.totalorder %v695, %v4205
        %vm4217 = vcmp.ge.s32.totalorder %v696, %v4205
        %vm4218 = vcmp.ge.s32.totalorder %v697, %v4205
        %vm4219 = vcmp.ge.s32.totalorder %v698, %v4205
        %vm4220 = vcmp.ge.s32.totalorder %v699, %v4205
        %vm4221 = vcmp.ge.s32.totalorder %v700, %v4205
        %vm4222 = vcmp.ge.s32.totalorder %v1687, %v4205
        %vm4223 = vcmp.ge.s32.totalorder %v1688, %v4205
        %vm4224 = vcmp.ge.s32.totalorder %v1689, %v4205
        %vm4225 = vcmp.ge.s32.totalorder %v1690, %v4205
        %vm4226 = vcmp.ge.s32.totalorder %v1691, %v4205
        %vm4227 = vcmp.ge.s32.totalorder %v1692, %v4205
        %vm4228 = vcmp.ge.s32.totalorder %v1693, %v4205
        %vm4229 = vcmp.ge.s32.totalorder %v1694, %v4205
        %vm4230 = vcmp.ge.s32.totalorder %v1695, %v4205
        %vm4231 = vcmp.ge.s32.totalorder %v1696, %v4205
        %vm4232 = vcmp.ge.s32.totalorder %v1697, %v4205
        %vm4233 = vcmp.ge.s32.totalorder %v1698, %v4205
        %vm4234 = vcmp.ge.s32.totalorder %v1699, %v4205
        %vm4235 = vcmp.ge.s32.totalorder %v1700, %v4205
        %vm4236 = vcmp.ge.s32.totalorder %v1701, %v4205
        %vm4237 = vcmp.ge.s32.totalorder %v1702, %v4205
        %vm4238 = vcmp.ge.s32.totalorder %v4173, %v4205
        %vm4239 = vcmp.ge.s32.totalorder %v4174, %v4205
        %vm4240 = vcmp.ge.s32.totalorder %v4175, %v4205
        %vm4241 = vcmp.ge.s32.totalorder %v4176, %v4205
        %vm4242 = vcmp.ge.s32.totalorder %v4177, %v4205
        %vm4243 = vcmp.ge.s32.totalorder %v4178, %v4205
        %vm4244 = vcmp.ge.s32.totalorder %v4179, %v4205
        %vm4245 = vcmp.ge.s32.totalorder %v4180, %v4205
        %vm4246 = vcmp.ge.s32.totalorder %v4181, %v4205
        %vm4247 = vcmp.ge.s32.totalorder %v4182, %v4205
        %vm4248 = vcmp.ge.s32.totalorder %v4183, %v4205
        %vm4249 = vcmp.ge.s32.totalorder %v4184, %v4205
        %vm4250 = vcmp.ge.s32.totalorder %v4185, %v4205
        %vm4251 = vcmp.ge.s32.totalorder %v4186, %v4205
        %vm4252 = vcmp.ge.s32.totalorder %v4187, %v4205
        %vm4253 = vcmp.ge.s32.totalorder %v4188, %v4205
        %vm4254 = vcmp.ge.s32.totalorder %v4189, %v4205
        %vm4255 = vcmp.ge.s32.totalorder %v4190, %v4205
        %vm4256 = vcmp.ge.s32.totalorder %v4191, %v4205
        %vm4257 = vcmp.ge.s32.totalorder %v4192, %v4205
        %vm4258 = vcmp.ge.s32.totalorder %v4193, %v4205
        %vm4259 = vcmp.ge.s32.totalorder %v4194, %v4205
        %vm4260 = vcmp.ge.s32.totalorder %v4195, %v4205
        %vm4261 = vcmp.ge.s32.totalorder %v4196, %v4205
        %vm4262 = vcmp.ge.s32.totalorder %v4197, %v4205
        %vm4263 = vcmp.ge.s32.totalorder %v4198, %v4205
        %vm4264 = vcmp.ge.s32.totalorder %v4199, %v4205
        %vm4265 = vcmp.ge.s32.totalorder %v4200, %v4205
        %vm4266 = vcmp.ge.s32.totalorder %v4201, %v4205
        %vm4267 = vcmp.ge.s32.totalorder %v4202, %v4205
        %vm4268 = vcmp.ge.s32.totalorder %v4203, %v4205
        %vm4269 = vcmp.ge.s32.totalorder %v4204, %v4205
        %v4270 = vmul.u32 %v720, 16
        %vm4271 = vcmp.lt.s32.totalorder %v685, %v4270
        %vm4272 = vcmp.lt.s32.totalorder %v686, %v4270
        %vm4273 = vcmp.lt.s32.totalorder %v687, %v4270
        %vm4274 = vcmp.lt.s32.totalorder %v688, %v4270
        %vm4275 = vcmp.lt.s32.totalorder %v689, %v4270
        %vm4276 = vcmp.lt.s32.totalorder %v690, %v4270
        %vm4277 = vcmp.lt.s32.totalorder %v691, %v4270
        %vm4278 = vcmp.lt.s32.totalorder %v692, %v4270
        %vm4279 = vcmp.lt.s32.totalorder %v693, %v4270
        %vm4280 = vcmp.lt.s32.totalorder %v694, %v4270
        %vm4281 = vcmp.lt.s32.totalorder %v695, %v4270
        %vm4282 = vcmp.lt.s32.totalorder %v696, %v4270
        %vm4283 = vcmp.lt.s32.totalorder %v697, %v4270
        %vm4284 = vcmp.lt.s32.totalorder %v698, %v4270
        %vm4285 = vcmp.lt.s32.totalorder %v699, %v4270
        %vm4286 = vcmp.lt.s32.totalorder %v700, %v4270
        %vm4287 = vcmp.lt.s32.totalorder %v1687, %v4270
        %vm4288 = vcmp.lt.s32.totalorder %v1688, %v4270
        %vm4289 = vcmp.lt.s32.totalorder %v1689, %v4270
        %vm4290 = vcmp.lt.s32.totalorder %v1690, %v4270
        %vm4291 = vcmp.lt.s32.totalorder %v1691, %v4270
        %vm4292 = vcmp.lt.s32.totalorder %v1692, %v4270
        %vm4293 = vcmp.lt.s32.totalorder %v1693, %v4270
        %vm4294 = vcmp.lt.s32.totalorder %v1694, %v4270
        %vm4295 = vcmp.lt.s32.totalorder %v1695, %v4270
        %vm4296 = vcmp.lt.s32.totalorder %v1696, %v4270
        %vm4297 = vcmp.lt.s32.totalorder %v1697, %v4270
        %vm4298 = vcmp.lt.s32.totalorder %v1698, %v4270
        %vm4299 = vcmp.lt.s32.totalorder %v1699, %v4270
        %vm4300 = vcmp.lt.s32.totalorder %v1700, %v4270
        %vm4301 = vcmp.lt.s32.totalorder %v1701, %v4270
        %vm4302 = vcmp.lt.s32.totalorder %v1702, %v4270
        %vm4303 = vcmp.lt.s32.totalorder %v4173, %v4270
        %vm4304 = vcmp.lt.s32.totalorder %v4174, %v4270
        %vm4305 = vcmp.lt.s32.totalorder %v4175, %v4270
        %vm4306 = vcmp.lt.s32.totalorder %v4176, %v4270
        %vm4307 = vcmp.lt.s32.totalorder %v4177, %v4270
        %vm4308 = vcmp.lt.s32.totalorder %v4178, %v4270
        %vm4309 = vcmp.lt.s32.totalorder %v4179, %v4270
        %vm4310 = vcmp.lt.s32.totalorder %v4180, %v4270
        %vm4311 = vcmp.lt.s32.totalorder %v4181, %v4270
        %vm4312 = vcmp.lt.s32.totalorder %v4182, %v4270
        %vm4313 = vcmp.lt.s32.totalorder %v4183, %v4270
        %vm4314 = vcmp.lt.s32.totalorder %v4184, %v4270
        %vm4315 = vcmp.lt.s32.totalorder %v4185, %v4270
        %vm4316 = vcmp.lt.s32.totalorder %v4186, %v4270
        %vm4317 = vcmp.lt.s32.totalorder %v4187, %v4270
        %vm4318 = vcmp.lt.s32.totalorder %v4188, %v4270
        %vm4319 = vcmp.lt.s32.totalorder %v4189, %v4270
        %vm4320 = vcmp.lt.s32.totalorder %v4190, %v4270
        %vm4321 = vcmp.lt.s32.totalorder %v4191, %v4270
        %vm4322 = vcmp.lt.s32.totalorder %v4192, %v4270
        %vm4323 = vcmp.lt.s32.totalorder %v4193, %v4270
        %vm4324 = vcmp.lt.s32.totalorder %v4194, %v4270
        %vm4325 = vcmp.lt.s32.totalorder %v4195, %v4270
        %vm4326 = vcmp.lt.s32.totalorder %v4196, %v4270
        %vm4327 = vcmp.lt.s32.totalorder %v4197, %v4270
        %vm4328 = vcmp.lt.s32.totalorder %v4198, %v4270
        %vm4329 = vcmp.lt.s32.totalorder %v4199, %v4270
        %vm4330 = vcmp.lt.s32.totalorder %v4200, %v4270
        %vm4331 = vcmp.lt.s32.totalorder %v4201, %v4270
        %vm4332 = vcmp.lt.s32.totalorder %v4202, %v4270
        %vm4333 = vcmp.lt.s32.totalorder %v4203, %v4270
        %vm4334 = vcmp.lt.s32.totalorder %v4204, %v4270
        %vm4335 = vmand %vm4206, %vm4271
        %vm4336 = vmand %vm4207, %vm4272
        %vm4337 = vmand %vm4208, %vm4273
        %vm4338 = vmand %vm4209, %vm4274
        %vm4339 = vmand %vm4210, %vm4275
        %vm4340 = vmand %vm4211, %vm4276
        %vm4341 = vmand %vm4212, %vm4277
        %vm4342 = vmand %vm4213, %vm4278
        %vm4343 = vmand %vm4214, %vm4279
        %vm4344 = vmand %vm4215, %vm4280
        %vm4345 = vmand %vm4216, %vm4281
        %vm4346 = vmand %vm4217, %vm4282
        %vm4347 = vmand %vm4218, %vm4283
        %vm4348 = vmand %vm4219, %vm4284
        %vm4349 = vmand %vm4220, %vm4285
        %vm4350 = vmand %vm4221, %vm4286
        %vm4351 = vmand %vm4222, %vm4287
        %vm4352 = vmand %vm4223, %vm4288
        %vm4353 = vmand %vm4224, %vm4289
        %vm4354 = vmand %vm4225, %vm4290
        %vm4355 = vmand %vm4226, %vm4291
        %vm4356 = vmand %vm4227, %vm4292
        %vm4357 = vmand %vm4228, %vm4293
        %vm4358 = vmand %vm4229, %vm4294
        %vm4359 = vmand %vm4230, %vm4295
        %vm4360 = vmand %vm4231, %vm4296
        %vm4361 = vmand %vm4232, %vm4297
        %vm4362 = vmand %vm4233, %vm4298
        %vm4363 = vmand %vm4234, %vm4299
        %vm4364 = vmand %vm4235, %vm4300
        %vm4365 = vmand %vm4236, %vm4301
        %vm4366 = vmand %vm4237, %vm4302
        %vm4367 = vmand %vm4238, %vm4303
        %vm4368 = vmand %vm4239, %vm4304
        %vm4369 = vmand %vm4240, %vm4305
        %vm4370 = vmand %vm4241, %vm4306
        %vm4371 = vmand %vm4242, %vm4307
        %vm4372 = vmand %vm4243, %vm4308
        %vm4373 = vmand %vm4244, %vm4309
        %vm4374 = vmand %vm4245, %vm4310
        %vm4375 = vmand %vm4246, %vm4311
        %vm4376 = vmand %vm4247, %vm4312
        %vm4377 = vmand %vm4248, %vm4313
        %vm4378 = vmand %vm4249, %vm4314
        %vm4379 = vmand %vm4250, %vm4315
        %vm4380 = vmand %vm4251, %vm4316
        %vm4381 = vmand %vm4252, %vm4317
        %vm4382 = vmand %vm4253, %vm4318
        %vm4383 = vmand %vm4254, %vm4319
        %vm4384 = vmand %vm4255, %vm4320
        %vm4385 = vmand %vm4256, %vm4321
        %vm4386 = vmand %vm4257, %vm4322
        %vm4387 = vmand %vm4258, %vm4323
        %vm4388 = vmand %vm4259, %vm4324
        %vm4389 = vmand %vm4260, %vm4325
        %vm4390 = vmand %vm4261, %vm4326
        %vm4391 = vmand %vm4262, %vm4327
        %vm4392 = vmand %vm4263, %vm4328
        %vm4393 = vmand %vm4264, %vm4329
        %vm4394 = vmand %vm4265, %vm4330
        %vm4395 = vmand %vm4266, %vm4331
        %vm4396 = vmand %vm4267, %vm4332
        %vm4397 = vmand %vm4268, %vm4333
        %vm4398 = vmand %vm4269, %vm4334
        %v4399 = vsel %vm4335, 1, 0
        %v4400 = vsel %vm4336, 1, 0
        %v4401 = vsel %vm4337, 1, 0
        %v4402 = vsel %vm4338, 1, 0
        %v4403 = vsel %vm4339, 1, 0
        %v4404 = vsel %vm4340, 1, 0
        %v4405 = vsel %vm4341, 1, 0
        %v4406 = vsel %vm4342, 1, 0
        %v4407 = vsel %vm4343, 1, 0
        %v4408 = vsel %vm4344, 1, 0
        %v4409 = vsel %vm4345, 1, 0
        %v4410 = vsel %vm4346, 1, 0
        %v4411 = vsel %vm4347, 1, 0
        %v4412 = vsel %vm4348, 1, 0
        %v4413 = vsel %vm4349, 1, 0
        %v4414 = vsel %vm4350, 1, 0
        %v4415 = vsel %vm4351, 1, 0
        %v4416 = vsel %vm4352, 1, 0
        %v4417 = vsel %vm4353, 1, 0
        %v4418 = vsel %vm4354, 1, 0
        %v4419 = vsel %vm4355, 1, 0
        %v4420 = vsel %vm4356, 1, 0
        %v4421 = vsel %vm4357, 1, 0
        %v4422 = vsel %vm4358, 1, 0
        %v4423 = vsel %vm4359, 1, 0
        %v4424 = vsel %vm4360, 1, 0
        %v4425 = vsel %vm4361, 1, 0
        %v4426 = vsel %vm4362, 1, 0
        %v4427 = vsel %vm4363, 1, 0
        %v4428 = vsel %vm4364, 1, 0
        %v4429 = vsel %vm4365, 1, 0
        %v4430 = vsel %vm4366, 1, 0
        %v4431 = vsel %vm4367, 1, 0
        %v4432 = vsel %vm4368, 1, 0
        %v4433 = vsel %vm4369, 1, 0
        %v4434 = vsel %vm4370, 1, 0
        %v4435 = vsel %vm4371, 1, 0
        %v4436 = vsel %vm4372, 1, 0
        %v4437 = vsel %vm4373, 1, 0
        %v4438 = vsel %vm4374, 1, 0
        %v4439 = vsel %vm4375, 1, 0
        %v4440 = vsel %vm4376, 1, 0
        %v4441 = vsel %vm4377, 1, 0
        %v4442 = vsel %vm4378, 1, 0
        %v4443 = vsel %vm4379, 1, 0
        %v4444 = vsel %vm4380, 1, 0
        %v4445 = vsel %vm4381, 1, 0
        %v4446 = vsel %vm4382, 1, 0
        %v4447 = vsel %vm4383, 1, 0
        %v4448 = vsel %vm4384, 1, 0
        %v4449 = vsel %vm4385, 1, 0
        %v4450 = vsel %vm4386, 1, 0
        %v4451 = vsel %vm4387, 1, 0
        %v4452 = vsel %vm4388, 1, 0
        %v4453 = vsel %vm4389, 1, 0
        %v4454 = vsel %vm4390, 1, 0
        %v4455 = vsel %vm4391, 1, 0
        %v4456 = vsel %vm4392, 1, 0
        %v4457 = vsel %vm4393, 1, 0
        %v4458 = vsel %vm4394, 1, 0
        %v4459 = vsel %vm4395, 1, 0
        %v4460 = vsel %vm4396, 1, 0
        %v4461 = vsel %vm4397, 1, 0
        %v4462 = vsel %vm4398, 1, 0
        %v4463 = vcvt.s32.f32 %v4399
        %v4464 = vcvt.s32.f32 %v4400
        %v4465 = vcvt.s32.f32 %v4401
        %v4466 = vcvt.s32.f32 %v4402
        %v4467 = vcvt.s32.f32 %v4403
        %v4468 = vcvt.s32.f32 %v4404
        %v4469 = vcvt.s32.f32 %v4405
        %v4470 = vcvt.s32.f32 %v4406
        %v4471 = vcvt.s32.f32 %v4407
        %v4472 = vcvt.s32.f32 %v4408
        %v4473 = vcvt.s32.f32 %v4409
        %v4474 = vcvt.s32.f32 %v4410
        %v4475 = vcvt.s32.f32 %v4411
        %v4476 = vcvt.s32.f32 %v4412
        %v4477 = vcvt.s32.f32 %v4413
        %v4478 = vcvt.s32.f32 %v4414
        %v4479 = vcvt.s32.f32 %v4415
        %v4480 = vcvt.s32.f32 %v4416
        %v4481 = vcvt.s32.f32 %v4417
        %v4482 = vcvt.s32.f32 %v4418
        %v4483 = vcvt.s32.f32 %v4419
        %v4484 = vcvt.s32.f32 %v4420
        %v4485 = vcvt.s32.f32 %v4421
        %v4486 = vcvt.s32.f32 %v4422
        %v4487 = vcvt.s32.f32 %v4423
        %v4488 = vcvt.s32.f32 %v4424
        %v4489 = vcvt.s32.f32 %v4425
        %v4490 = vcvt.s32.f32 %v4426
        %v4491 = vcvt.s32.f32 %v4427
        %v4492 = vcvt.s32.f32 %v4428
        %v4493 = vcvt.s32.f32 %v4429
        %v4494 = vcvt.s32.f32 %v4430
        %v4495 = vcvt.s32.f32 %v4431
        %v4496 = vcvt.s32.f32 %v4432
        %v4497 = vcvt.s32.f32 %v4433
        %v4498 = vcvt.s32.f32 %v4434
        %v4499 = vcvt.s32.f32 %v4435
        %v4500 = vcvt.s32.f32 %v4436
        %v4501 = vcvt.s32.f32 %v4437
        %v4502 = vcvt.s32.f32 %v4438
        %v4503 = vcvt.s32.f32 %v4439
        %v4504 = vcvt.s32.f32 %v4440
        %v4505 = vcvt.s32.f32 %v4441
        %v4506 = vcvt.s32.f32 %v4442
        %v4507 = vcvt.s32.f32 %v4443
        %v4508 = vcvt.s32.f32 %v4444
        %v4509 = vcvt.s32.f32 %v4445
        %v4510 = vcvt.s32.f32 %v4446
        %v4511 = vcvt.s32.f32 %v4447
        %v4512 = vcvt.s32.f32 %v4448
        %v4513 = vcvt.s32.f32 %v4449
        %v4514 = vcvt.s32.f32 %v4450
        %v4515 = vcvt.s32.f32 %v4451
        %v4516 = vcvt.s32.f32 %v4452
        %v4517 = vcvt.s32.f32 %v4453
        %v4518 = vcvt.s32.f32 %v4454
        %v4519 = vcvt.s32.f32 %v4455
        %v4520 = vcvt.s32.f32 %v4456
        %v4521 = vcvt.s32.f32 %v4457
        %v4522 = vcvt.s32.f32 %v4458
        %v4523 = vcvt.s32.f32 %v4459
        %v4524 = vcvt.s32.f32 %v4460
        %v4525 = vcvt.s32.f32 %v4461
        %v4526 = vcvt.s32.f32 %v4462
        %v4527 = vadd.s32 %v702, 256
        %v4528 = vadd.s32 %v702, 384
        %v4529 = vmul.u32 %v685, 16
        %v4530 = vmul.u32 %v686, 16
        %v4531 = vmul.u32 %v687, 16
        %v4532 = vmul.u32 %v688, 16
        %vm4533 = vcmp.ge.s32.totalorder %v702, %v4529
        %vm4534 = vcmp.ge.s32.totalorder %v1865, %v4529
        %vm4535 = vcmp.ge.s32.totalorder %v4527, %v4529
        %vm4536 = vcmp.ge.s32.totalorder %v4528, %v4529
        %vm4537 = vcmp.ge.s32.totalorder %v702, %v4530
        %vm4538 = vcmp.ge.s32.totalorder %v1865, %v4530
        %vm4539 = vcmp.ge.s32.totalorder %v4527, %v4530
        %vm4540 = vcmp.ge.s32.totalorder %v4528, %v4530
        %vm4541 = vcmp.ge.s32.totalorder %v702, %v4531
        %vm4542 = vcmp.ge.s32.totalorder %v1865, %v4531
        %vm4543 = vcmp.ge.s32.totalorder %v4527, %v4531
        %vm4544 = vcmp.ge.s32.totalorder %v4528, %v4531
        %vm4545 = vcmp.ge.s32.totalorder %v702, %v4532
        %vm4546 = vcmp.ge.s32.totalorder %v1865, %v4532
        %vm4547 = vcmp.ge.s32.totalorder %v4527, %v4532
        %vm4548 = vcmp.ge.s32.totalorder %v4528, %v4532
        %v4549 = vmul.u32 %v794, 16
        %v4550 = vmul.u32 %v795, 16
        %v4551 = vmul.u32 %v796, 16
        %v4552 = vmul.u32 %v797, 16
        %vm4553 = vcmp.lt.s32.totalorder %v702, %v4549
        %vm4554 = vcmp.lt.s32.totalorder %v1865, %v4549
        %vm4555 = vcmp.lt.s32.totalorder %v4527, %v4549
        %vm4556 = vcmp.lt.s32.totalorder %v4528, %v4549
        %vm4557 = vcmp.lt.s32.totalorder %v702, %v4550
        %vm4558 = vcmp.lt.s32.totalorder %v1865, %v4550
        %vm4559 = vcmp.lt.s32.totalorder %v4527, %v4550
        %vm4560 = vcmp.lt.s32.totalorder %v4528, %v4550
        %vm4561 = vcmp.lt.s32.totalorder %v702, %v4551
        %vm4562 = vcmp.lt.s32.totalorder %v1865, %v4551
        %vm4563 = vcmp.lt.s32.totalorder %v4527, %v4551
        %vm4564 = vcmp.lt.s32.totalorder %v4528, %v4551
        %vm4565 = vcmp.lt.s32.totalorder %v702, %v4552
        %vm4566 = vcmp.lt.s32.totalorder %v1865, %v4552
        %vm4567 = vcmp.lt.s32.totalorder %v4527, %v4552
        %vm4568 = vcmp.lt.s32.totalorder %v4528, %v4552
        %vm4569 = vmand %vm4533, %vm4553
        %vm4570 = vmand %vm4534, %vm4554
        %vm4571 = vmand %vm4535, %vm4555
        %vm4572 = vmand %vm4536, %vm4556
        %vm4573 = vmand %vm4537, %vm4557
        %vm4574 = vmand %vm4538, %vm4558
        %vm4575 = vmand %vm4539, %vm4559
        %vm4576 = vmand %vm4540, %vm4560
        %vm4577 = vmand %vm4541, %vm4561
        %vm4578 = vmand %vm4542, %vm4562
        %vm4579 = vmand %vm4543, %vm4563
        %vm4580 = vmand %vm4544, %vm4564
        %vm4581 = vmand %vm4545, %vm4565
        %vm4582 = vmand %vm4546, %vm4566
        %vm4583 = vmand %vm4547, %vm4567
        %vm4584 = vmand %vm4548, %vm4568
        %v4585 = vsel %vm4569, 1, 0
        %v4586 = vsel %vm4570, 1, 0
        %v4587 = vsel %vm4571, 1, 0
        %v4588 = vsel %vm4572, 1, 0
        %v4589 = vsel %vm4573, 1, 0
        %v4590 = vsel %vm4574, 1, 0
        %v4591 = vsel %vm4575, 1, 0
        %v4592 = vsel %vm4576, 1, 0
        %v4593 = vsel %vm4577, 1, 0
        %v4594 = vsel %vm4578, 1, 0
        %v4595 = vsel %vm4579, 1, 0
        %v4596 = vsel %vm4580, 1, 0
        %v4597 = vsel %vm4581, 1, 0
        %v4598 = vsel %vm4582, 1, 0
        %v4599 = vsel %vm4583, 1, 0
        %v4600 = vsel %vm4584, 1, 0
        %v4601 = vcvt.s32.f32 %v4585
        %v4602 = vcvt.s32.f32 %v4586
        %v4603 = vcvt.s32.f32 %v4587
        %v4604 = vcvt.s32.f32 %v4588
        %v4605 = vcvt.s32.f32 %v4589
        %v4606 = vcvt.s32.f32 %v4590
        %v4607 = vcvt.s32.f32 %v4591
        %v4608 = vcvt.s32.f32 %v4592
        %v4609 = vcvt.s32.f32 %v4593
        %v4610 = vcvt.s32.f32 %v4594
        %v4611 = vcvt.s32.f32 %v4595
        %v4612 = vcvt.s32.f32 %v4596
        %v4613 = vcvt.s32.f32 %v4597
        %v4614 = vcvt.s32.f32 %v4598
        %v4615 = vcvt.s32.f32 %v4599
        %v4616 = vcvt.s32.f32 %v4600
        %4617 = vmatprep.subr.mxu0 0.0
        %4618 = vmatpush1.msra.mxu0 %v4478
        %4619 = vmatprep.subr.mxu0 0.0
        %4620 = vmatpush1.msra.mxu0 %v4477
        %4621 = vmatprep.subr.mxu0 0.0
        %4622 = vmatpush1.msra.mxu0 %v4476
        %4623 = vmatprep.subr.mxu0 0.0
        %4624 = vmatpush1.msra.mxu0 %v4475
        %4625 = vmatprep.subr.mxu0 0.0
        %4626 = vmatpush1.msra.mxu0 %v4474
        %4627 = vmatprep.subr.mxu0 0.0
        %4628 = vmatpush1.msra.mxu0 %v4473
        %4629 = vmatprep.subr.mxu0 0.0
        %4630 = vmatpush1.msra.mxu0 %v4472
        %4631 = vmatprep.subr.mxu0 0.0
        %4632 = vmatpush1.msra.mxu0 %v4471
        %4633 = vmatprep.subr.mxu0 0.0
        %4634 = vmatpush1.msra.mxu0 %v4470
        %4635 = vmatprep.subr.mxu0 0.0
        %4636 = vmatpush1.msra.mxu0 %v4469
        %4637 = vmatprep.subr.mxu0 0.0
        %4638 = vmatpush1.msra.mxu0 %v4468
        %4639 = vmatprep.subr.mxu0 0.0
        %4640 = vmatpush1.msra.mxu0 %v4467
        %4641 = vmatprep.subr.mxu0 0.0
        %4642 = vmatpush1.msra.mxu0 %v4466
        %4643 = vmatprep.subr.mxu0 0.0
        %4644 = vmatpush1.msra.mxu0 %v4465
        %4645 = vmatprep.subr.mxu0 0.0
        %4646 = vmatpush1.msra.mxu0 %v4464
        %4647 = vmatprep.subr.mxu0 0.0
        %4648 = vmatpush1.msra.mxu0 %v4463
        %4649 = vmatprep.subr.mxu0 0.0
        %4650 = vmatpush2.msra.mxu0 %v4494
        %4651 = vmatprep.subr.mxu0 0.0
        %4652 = vmatpush2.msra.mxu0 %v4493
        %4653 = vmatprep.subr.mxu0 0.0
        %4654 = vmatpush2.msra.mxu0 %v4492
        %4655 = vmatprep.subr.mxu0 0.0
        %4656 = vmatpush2.msra.mxu0 %v4491
        %4657 = vmatprep.subr.mxu0 0.0
        %4658 = vmatpush2.msra.mxu0 %v4490
        %4659 = vmatprep.subr.mxu0 0.0
        %4660 = vmatpush2.msra.mxu0 %v4489
        %4661 = vmatprep.subr.mxu0 0.0
        %4662 = vmatpush2.msra.mxu0 %v4488
        %4663 = vmatprep.subr.mxu0 0.0
        %4664 = vmatpush2.msra.mxu0 %v4487
        %4665 = vmatprep.subr.mxu0 0.0
        %4666 = vmatpush2.msra.mxu0 %v4486
        %4667 = vmatprep.subr.mxu0 0.0
        %4668 = vmatpush2.msra.mxu0 %v4485
        %4669 = vmatprep.subr.mxu0 0.0
        %4670 = vmatpush2.msra.mxu0 %v4484
        %4671 = vmatprep.subr.mxu0 0.0
        %4672 = vmatpush2.msra.mxu0 %v4483
        %4673 = vmatprep.subr.mxu0 0.0
        %4674 = vmatpush2.msra.mxu0 %v4482
        %4675 = vmatprep.subr.mxu0 0.0
        %4676 = vmatpush2.msra.mxu0 %v4481
        %4677 = vmatprep.subr.mxu0 0.0
        %4678 = vmatpush2.msra.mxu0 %v4480
        %4679 = vmatprep.subr.mxu0 0.0
        %4680 = vmatpush2.msra.mxu0 %v4479
        %4681 = vmatprep.mubr.f32.mxu0 %v3950
        %4682 = vmatmul.mubr.f32.gmra.mxu0 %v3948
        %v4683 = vpop.f32.mrf.mxu0
        %v4684 = vadd.f32 0.0, %v4683
        %v4685 = vpop.f32.mrf.mxu0
        %4686 = vdwg.mxu0
        %4687 = vmatprep.subr.mxu0 0.0
        %4688 = vmatpush1.msra.mxu0 %v4510
        %4689 = vmatprep.subr.mxu0 0.0
        %4690 = vmatpush1.msra.mxu0 %v4509
        %4691 = vmatprep.subr.mxu0 0.0
        %4692 = vmatpush1.msra.mxu0 %v4508
        %4693 = vmatprep.subr.mxu0 0.0
        %4694 = vmatpush1.msra.mxu0 %v4507
        %4695 = vmatprep.subr.mxu0 0.0
        %4696 = vmatpush1.msra.mxu0 %v4506
        %4697 = vmatprep.subr.mxu0 0.0
        %4698 = vmatpush1.msra.mxu0 %v4505
        %4699 = vmatprep.subr.mxu0 0.0
        %4700 = vmatpush1.msra.mxu0 %v4504
        %4701 = vmatprep.subr.mxu0 0.0
        %4702 = vmatpush1.msra.mxu0 %v4503
        %4703 = vmatprep.subr.mxu0 0.0
        %4704 = vmatpush1.msra.mxu0 %v4502
        %4705 = vmatprep.subr.mxu0 0.0
        %4706 = vmatpush1.msra.mxu0 %v4501
        %4707 = vmatprep.subr.mxu0 0.0
        %4708 = vmatpush1.msra.mxu0 %v4500
        %4709 = vmatprep.subr.mxu0 0.0
        %4710 = vmatpush1.msra.mxu0 %v4499
        %4711 = vmatprep.subr.mxu0 0.0
        %4712 = vmatpush1.msra.mxu0 %v4498
        %4713 = vmatprep.subr.mxu0 0.0
        %4714 = vmatpush1.msra.mxu0 %v4497
        %4715 = vmatprep.subr.mxu0 0.0
        %4716 = vmatpush1.msra.mxu0 %v4496
        %4717 = vmatprep.subr.mxu0 0.0
        %4718 = vmatpush1.msra.mxu0 %v4495
        %4719 = vmatprep.subr.mxu0 0.0
        %4720 = vmatpush2.msra.mxu0 %v4526
        %4721 = vmatprep.subr.mxu0 0.0
        %4722 = vmatpush2.msra.mxu0 %v4525
        %4723 = vmatprep.subr.mxu0 0.0
        %4724 = vmatpush2.msra.mxu0 %v4524
        %4725 = vmatprep.subr.mxu0 0.0
        %4726 = vmatpush2.msra.mxu0 %v4523
        %4727 = vmatprep.subr.mxu0 0.0
        %4728 = vmatpush2.msra.mxu0 %v4522
        %4729 = vmatprep.subr.mxu0 0.0
        %4730 = vmatpush2.msra.mxu0 %v4521
        %4731 = vmatprep.subr.mxu0 0.0
        %4732 = vmatpush2.msra.mxu0 %v4520
        %4733 = vmatprep.subr.mxu0 0.0
        %4734 = vmatpush2.msra.mxu0 %v4519
        %4735 = vmatprep.subr.mxu0 0.0
        %4736 = vmatpush2.msra.mxu0 %v4518
        %4737 = vmatprep.subr.mxu0 0.0
        %4738 = vmatpush2.msra.mxu0 %v4517
        %4739 = vmatprep.subr.mxu0 0.0
        %4740 = vmatpush2.msra.mxu0 %v4516
        %4741 = vmatprep.subr.mxu0 0.0
        %4742 = vmatpush2.msra.mxu0 %v4515
        %4743 = vmatprep.subr.mxu0 0.0
        %4744 = vmatpush2.msra.mxu0 %v4514
        %4745 = vmatprep.subr.mxu0 0.0
        %4746 = vmatpush2.msra.mxu0 %v4513
        %4747 = vmatprep.subr.mxu0 0.0
        %4748 = vmatpush2.msra.mxu0 %v4512
        %4749 = vmatprep.subr.mxu0 0.0
        %4750 = vmatpush2.msra.mxu0 %v4511
        %4751 = vmatprep.mubr.f32.mxu0 %v4021
        %4752 = vmatmul.mubr.f32.gmra.mxu0 %v4019
        %v4753 = vpop.f32.mrf.mxu0
        %v4754 = vadd.f32 %v4684, %v4753
        %v4755 = vpop.f32.mrf.mxu0
        %4756 = vdwg.mxu0
        %v4757 = vmul.f32 %v4754, 0.00390625
        %4758 = vmatprep.subr.mxu0 0.0
        %4759 = vmatpush1.msra.mxu0 %v4478
        %4760 = vmatprep.subr.mxu0 0.0
        %4761 = vmatpush1.msra.mxu0 %v4477
        %4762 = vmatprep.subr.mxu0 0.0
        %4763 = vmatpush1.msra.mxu0 %v4476
        %4764 = vmatprep.subr.mxu0 0.0
        %4765 = vmatpush1.msra.mxu0 %v4475
        %4766 = vmatprep.subr.mxu0 0.0
        %4767 = vmatpush1.msra.mxu0 %v4474
        %4768 = vmatprep.subr.mxu0 0.0
        %4769 = vmatpush1.msra.mxu0 %v4473
        %4770 = vmatprep.subr.mxu0 0.0
        %4771 = vmatpush1.msra.mxu0 %v4472
        %4772 = vmatprep.subr.mxu0 0.0
        %4773 = vmatpush1.msra.mxu0 %v4471
        %4774 = vmatprep.subr.mxu0 0.0
        %4775 = vmatpush1.msra.mxu0 %v4470
        %4776 = vmatprep.subr.mxu0 0.0
        %4777 = vmatpush1.msra.mxu0 %v4469
        %4778 = vmatprep.subr.mxu0 0.0
        %4779 = vmatpush1.msra.mxu0 %v4468
        %4780 = vmatprep.subr.mxu0 0.0
        %4781 = vmatpush1.msra.mxu0 %v4467
        %4782 = vmatprep.subr.mxu0 0.0
        %4783 = vmatpush1.msra.mxu0 %v4466
        %4784 = vmatprep.subr.mxu0 0.0
        %4785 = vmatpush1.msra.mxu0 %v4465
        %4786 = vmatprep.subr.mxu0 0.0
        %4787 = vmatpush1.msra.mxu0 %v4464
        %4788 = vmatprep.subr.mxu0 0.0
        %4789 = vmatpush1.msra.mxu0 %v4463
        %4790 = vmatprep.subr.mxu0 0.0
        %4791 = vmatpush2.msra.mxu0 %v4494
        %4792 = vmatprep.subr.mxu0 0.0
        %4793 = vmatpush2.msra.mxu0 %v4493
        %4794 = vmatprep.subr.mxu0 0.0
        %4795 = vmatpush2.msra.mxu0 %v4492
        %4796 = vmatprep.subr.mxu0 0.0
        %4797 = vmatpush2.msra.mxu0 %v4491
        %4798 = vmatprep.subr.mxu0 0.0
        %4799 = vmatpush2.msra.mxu0 %v4490
        %4800 = vmatprep.subr.mxu0 0.0
        %4801 = vmatpush2.msra.mxu0 %v4489
        %4802 = vmatprep.subr.mxu0 0.0
        %4803 = vmatpush2.msra.mxu0 %v4488
        %4804 = vmatprep.subr.mxu0 0.0
        %4805 = vmatpush2.msra.mxu0 %v4487
        %4806 = vmatprep.subr.mxu0 0.0
        %4807 = vmatpush2.msra.mxu0 %v4486
        %4808 = vmatprep.subr.mxu0 0.0
        %4809 = vmatpush2.msra.mxu0 %v4485
        %4810 = vmatprep.subr.mxu0 0.0
        %4811 = vmatpush2.msra.mxu0 %v4484
        %4812 = vmatprep.subr.mxu0 0.0
        %4813 = vmatpush2.msra.mxu0 %v4483
        %4814 = vmatprep.subr.mxu0 0.0
        %4815 = vmatpush2.msra.mxu0 %v4482
        %4816 = vmatprep.subr.mxu0 0.0
        %4817 = vmatpush2.msra.mxu0 %v4481
        %4818 = vmatprep.subr.mxu0 0.0
        %4819 = vmatpush2.msra.mxu0 %v4480
        %4820 = vmatprep.subr.mxu0 0.0
        %4821 = vmatpush2.msra.mxu0 %v4479
        %4822 = vmatprep.mubr.f32.mxu0 %v4100
        %4823 = vmatmul.mubr.f32.gmra.mxu0 %v4098
        %v4824 = vpop.f32.mrf.mxu0
        %v4825 = vadd.f32 0.0, %v4824
        %v4826 = vpop.f32.mrf.mxu0
        %4827 = vdwg.mxu0
        %4828 = vmatprep.subr.mxu0 0.0
        %4829 = vmatpush1.msra.mxu0 %v4510
        %4830 = vmatprep.subr.mxu0 0.0
        %4831 = vmatpush1.msra.mxu0 %v4509
        %4832 = vmatprep.subr.mxu0 0.0
        %4833 = vmatpush1.msra.mxu0 %v4508
        %4834 = vmatprep.subr.mxu0 0.0
        %4835 = vmatpush1.msra.mxu0 %v4507
        %4836 = vmatprep.subr.mxu0 0.0
        %4837 = vmatpush1.msra.mxu0 %v4506
        %4838 = vmatprep.subr.mxu0 0.0
        %4839 = vmatpush1.msra.mxu0 %v4505
        %4840 = vmatprep.subr.mxu0 0.0
        %4841 = vmatpush1.msra.mxu0 %v4504
        %4842 = vmatprep.subr.mxu0 0.0
        %4843 = vmatpush1.msra.mxu0 %v4503
        %4844 = vmatprep.subr.mxu0 0.0
        %4845 = vmatpush1.msra.mxu0 %v4502
        %4846 = vmatprep.subr.mxu0 0.0
        %4847 = vmatpush1.msra.mxu0 %v4501
        %4848 = vmatprep.subr.mxu0 0.0
        %4849 = vmatpush1.msra.mxu0 %v4500
        %4850 = vmatprep.subr.mxu0 0.0
        %4851 = vmatpush1.msra.mxu0 %v4499
        %4852 = vmatprep.subr.mxu0 0.0
        %4853 = vmatpush1.msra.mxu0 %v4498
        %4854 = vmatprep.subr.mxu0 0.0
        %4855 = vmatpush1.msra.mxu0 %v4497
        %4856 = vmatprep.subr.mxu0 0.0
        %4857 = vmatpush1.msra.mxu0 %v4496
        %4858 = vmatprep.subr.mxu0 0.0
        %4859 = vmatpush1.msra.mxu0 %v4495
        %4860 = vmatprep.subr.mxu0 0.0
        %4861 = vmatpush2.msra.mxu0 %v4526
        %4862 = vmatprep.subr.mxu0 0.0
        %4863 = vmatpush2.msra.mxu0 %v4525
        %4864 = vmatprep.subr.mxu0 0.0
        %4865 = vmatpush2.msra.mxu0 %v4524
        %4866 = vmatprep.subr.mxu0 0.0
        %4867 = vmatpush2.msra.mxu0 %v4523
        %4868 = vmatprep.subr.mxu0 0.0
        %4869 = vmatpush2.msra.mxu0 %v4522
        %4870 = vmatprep.subr.mxu0 0.0
        %4871 = vmatpush2.msra.mxu0 %v4521
        %4872 = vmatprep.subr.mxu0 0.0
        %4873 = vmatpush2.msra.mxu0 %v4520
        %4874 = vmatprep.subr.mxu0 0.0
        %4875 = vmatpush2.msra.mxu0 %v4519
        %4876 = vmatprep.subr.mxu0 0.0
        %4877 = vmatpush2.msra.mxu0 %v4518
        %4878 = vmatprep.subr.mxu0 0.0
        %4879 = vmatpush2.msra.mxu0 %v4517
        %4880 = vmatprep.subr.mxu0 0.0
        %4881 = vmatpush2.msra.mxu0 %v4516
        %4882 = vmatprep.subr.mxu0 0.0
        %4883 = vmatpush2.msra.mxu0 %v4515
        %4884 = vmatprep.subr.mxu0 0.0
        %4885 = vmatpush2.msra.mxu0 %v4514
        %4886 = vmatprep.subr.mxu0 0.0
        %4887 = vmatpush2.msra.mxu0 %v4513
        %4888 = vmatprep.subr.mxu0 0.0
        %4889 = vmatpush2.msra.mxu0 %v4512
        %4890 = vmatprep.subr.mxu0 0.0
        %4891 = vmatpush2.msra.mxu0 %v4511
        %4892 = vmatprep.mubr.f32.mxu0 %v4171
        %4893 = vmatmul.mubr.f32.gmra.mxu0 %v4169
        %v4894 = vpop.f32.mrf.mxu0
        %v4895 = vadd.f32 %v4825, %v4894
        %v4896 = vpop.f32.mrf.mxu0
        %4897 = vdwg.mxu0
        %v4898 = vmul.f32 %v4895, 0.00390625
        %v4899 = vmul.f32 %v4757, %v4757
        %v4900 = vsub.f32 %v4898, %v4899
        %v4901 = vmax.f32 %v4900, 0.0
        %v4902 = vadd.f32 %v4901, 1e-05
        %v4903 = vrsqrt.pop %v4902
        %v4905 = vsel %vm965, %v4757, 0
        %4907 = vmatprep.subr.mxu0 0.0
        %4908 = vmatpush1.msra.mxu0 0.0
        %4909 = vmatprep.subr.mxu0 0.0
        %4910 = vmatpush1.msra.mxu0 0.0
        %4911 = vmatprep.subr.mxu0 0.0
        %4912 = vmatpush1.msra.mxu0 0.0
        %4913 = vmatprep.subr.mxu0 0.0
        %4914 = vmatpush1.msra.mxu0 0.0
        %4915 = vmatprep.subr.mxu0 0.0
        %4916 = vmatpush1.msra.mxu0 0.0
        %4917 = vmatprep.subr.mxu0 0.0
        %4918 = vmatpush1.msra.mxu0 0.0
        %4919 = vmatprep.subr.mxu0 0.0
        %4920 = vmatpush1.msra.mxu0 0.0
        %4921 = vmatprep.subr.mxu0 0.0
        %4922 = vmatpush1.msra.mxu0 0.0
        %4923 = vmatprep.subr.mxu0 0.0
        %4924 = vmatpush1.msra.mxu0 0.0
        %4925 = vmatprep.subr.mxu0 0.0
        %4926 = vmatpush1.msra.mxu0 0.0
        %4927 = vmatprep.subr.mxu0 0.0
        %4928 = vmatpush1.msra.mxu0 0.0
        %4929 = vmatprep.subr.mxu0 0.0
        %4930 = vmatpush1.msra.mxu0 0.0
        %4931 = vmatprep.subr.mxu0 %v4614
        %4932 = vmatpush1.msra.mxu0 %v4613
        %4933 = vmatprep.subr.mxu0 %v4610
        %4934 = vmatpush1.msra.mxu0 %v4609
        %4935 = vmatprep.subr.mxu0 %v4606
        %4936 = vmatpush1.msra.mxu0 %v4605
        %4937 = vmatprep.subr.mxu0 %v4602
        %4938 = vmatpush1.msra.mxu0 %v4601
        %4939 = vmatprep.subr.mxu0 0.0
        %4940 = vmatpush2.msra.mxu0 0.0
        %4941 = vmatprep.subr.mxu0 0.0
        %4942 = vmatpush2.msra.mxu0 0.0
        %4943 = vmatprep.subr.mxu0 0.0
        %4944 = vmatpush2.msra.mxu0 0.0
        %4945 = vmatprep.subr.mxu0 0.0
        %4946 = vmatpush2.msra.mxu0 0.0
        %4947 = vmatprep.subr.mxu0 0.0
        %4948 = vmatpush2.msra.mxu0 0.0
        %4949 = vmatprep.subr.mxu0 0.0
        %4950 = vmatpush2.msra.mxu0 0.0
        %4951 = vmatprep.subr.mxu0 0.0
        %4952 = vmatpush2.msra.mxu0 0.0
        %4953 = vmatprep.subr.mxu0 0.0
        %4954 = vmatpush2.msra.mxu0 0.0
        %4955 = vmatprep.subr.mxu0 0.0
        %4956 = vmatpush2.msra.mxu0 0.0
        %4957 = vmatprep.subr.mxu0 0.0
        %4958 = vmatpush2.msra.mxu0 0.0
        %4959 = vmatprep.subr.mxu0 0.0
        %4960 = vmatpush2.msra.mxu0 0.0
        %4961 = vmatprep.subr.mxu0 0.0
        %4962 = vmatpush2.msra.mxu0 0.0
        %4963 = vmatprep.subr.mxu0 0.0
        %4964 = vmatpush2.msra.mxu0 0.0
        %4965 = vmatprep.subr.mxu0 0.0
        %4966 = vmatpush2.msra.mxu0 0.0
        %4967 = vmatprep.subr.mxu0 0.0
        %4968 = vmatpush2.msra.mxu0 0.0
        %4969 = vmatprep.subr.mxu0 0.0
        %4970 = vmatpush2.msra.mxu0 0.0
        %4971 = vmatprep.mubr.f32.mxu0 0.0
        %4972 = vmatmul.mubr.f32.gmra.mxu0 %v4905
        %v4973 = vpop.f32.mrf.mxu0
        %v4974 = vadd.f32 0.0, %v4973
        %v4975 = vpop.f32.mrf.mxu0
        %v4976 = vadd.f32 0.0, %v4975
        %4977 = vdwg.mxu0
        %4978 = vmatprep.subr.mxu0 0.0
        %4979 = vmatpush1.msra.mxu0 0.0
        %4980 = vmatprep.subr.mxu0 0.0
        %4981 = vmatpush1.msra.mxu0 0.0
        %4982 = vmatprep.subr.mxu0 0.0
        %4983 = vmatpush1.msra.mxu0 0.0
        %4984 = vmatprep.subr.mxu0 0.0
        %4985 = vmatpush1.msra.mxu0 0.0
        %4986 = vmatprep.subr.mxu0 0.0
        %4987 = vmatpush1.msra.mxu0 0.0
        %4988 = vmatprep.subr.mxu0 0.0
        %4989 = vmatpush1.msra.mxu0 0.0
        %4990 = vmatprep.subr.mxu0 0.0
        %4991 = vmatpush1.msra.mxu0 0.0
        %4992 = vmatprep.subr.mxu0 0.0
        %4993 = vmatpush1.msra.mxu0 0.0
        %4994 = vmatprep.subr.mxu0 0.0
        %4995 = vmatpush1.msra.mxu0 0.0
        %4996 = vmatprep.subr.mxu0 0.0
        %4997 = vmatpush1.msra.mxu0 0.0
        %4998 = vmatprep.subr.mxu0 0.0
        %4999 = vmatpush1.msra.mxu0 0.0
        %5000 = vmatprep.subr.mxu0 0.0
        %5001 = vmatpush1.msra.mxu0 0.0
        %5002 = vmatprep.subr.mxu0 %v4616
        %5003 = vmatpush1.msra.mxu0 %v4615
        %5004 = vmatprep.subr.mxu0 %v4612
        %5005 = vmatpush1.msra.mxu0 %v4611
        %5006 = vmatprep.subr.mxu0 %v4608
        %5007 = vmatpush1.msra.mxu0 %v4607
        %5008 = vmatprep.subr.mxu0 %v4604
        %5009 = vmatpush1.msra.mxu0 %v4603
        %5010 = vmatprep.subr.mxu0 0.0
        %5011 = vmatpush2.msra.mxu0 0.0
        %5012 = vmatprep.subr.mxu0 0.0
        %5013 = vmatpush2.msra.mxu0 0.0
        %5014 = vmatprep.subr.mxu0 0.0
        %5015 = vmatpush2.msra.mxu0 0.0
        %5016 = vmatprep.subr.mxu0 0.0
        %5017 = vmatpush2.msra.mxu0 0.0
        %5018 = vmatprep.subr.mxu0 0.0
        %5019 = vmatpush2.msra.mxu0 0.0
        %5020 = vmatprep.subr.mxu0 0.0
        %5021 = vmatpush2.msra.mxu0 0.0
        %5022 = vmatprep.subr.mxu0 0.0
        %5023 = vmatpush2.msra.mxu0 0.0
        %5024 = vmatprep.subr.mxu0 0.0
        %5025 = vmatpush2.msra.mxu0 0.0
        %5026 = vmatprep.subr.mxu0 0.0
        %5027 = vmatpush2.msra.mxu0 0.0
        %5028 = vmatprep.subr.mxu0 0.0
        %5029 = vmatpush2.msra.mxu0 0.0
        %5030 = vmatprep.subr.mxu0 0.0
        %5031 = vmatpush2.msra.mxu0 0.0
        %5032 = vmatprep.subr.mxu0 0.0
        %5033 = vmatpush2.msra.mxu0 0.0
        %5034 = vmatprep.subr.mxu0 0.0
        %5035 = vmatpush2.msra.mxu0 0.0
        %5036 = vmatprep.subr.mxu0 0.0
        %5037 = vmatpush2.msra.mxu0 0.0
        %5038 = vmatprep.subr.mxu0 0.0
        %5039 = vmatpush2.msra.mxu0 0.0
        %5040 = vmatprep.subr.mxu0 0.0
        %5041 = vmatpush2.msra.mxu0 0.0
        %5042 = vmatprep.mubr.f32.mxu0 0.0
        %5043 = vmatmul.mubr.f32.gmra.mxu0 %v4905
        %v5044 = vpop.f32.mrf.mxu0
        %v5045 = vadd.f32 0.0, %v5044
        %v5046 = vpop.f32.mrf.mxu0
        %v5047 = vadd.f32 0.0, %v5046
        %5048 = vdwg.mxu0
        %v5050 = vsel %vm965, %v4903, 0
        %5052 = vmatprep.subr.mxu0 0.0
        %5053 = vmatpush1.msra.mxu0 0.0
        %5054 = vmatprep.subr.mxu0 0.0
        %5055 = vmatpush1.msra.mxu0 0.0
        %5056 = vmatprep.subr.mxu0 0.0
        %5057 = vmatpush1.msra.mxu0 0.0
        %5058 = vmatprep.subr.mxu0 0.0
        %5059 = vmatpush1.msra.mxu0 0.0
        %5060 = vmatprep.subr.mxu0 0.0
        %5061 = vmatpush1.msra.mxu0 0.0
        %5062 = vmatprep.subr.mxu0 0.0
        %5063 = vmatpush1.msra.mxu0 0.0
        %5064 = vmatprep.subr.mxu0 0.0
        %5065 = vmatpush1.msra.mxu0 0.0
        %5066 = vmatprep.subr.mxu0 0.0
        %5067 = vmatpush1.msra.mxu0 0.0
        %5068 = vmatprep.subr.mxu0 0.0
        %5069 = vmatpush1.msra.mxu0 0.0
        %5070 = vmatprep.subr.mxu0 0.0
        %5071 = vmatpush1.msra.mxu0 0.0
        %5072 = vmatprep.subr.mxu0 0.0
        %5073 = vmatpush1.msra.mxu0 0.0
        %5074 = vmatprep.subr.mxu0 0.0
        %5075 = vmatpush1.msra.mxu0 0.0
        %5076 = vmatprep.subr.mxu0 %v4614
        %5077 = vmatpush1.msra.mxu0 %v4613
        %5078 = vmatprep.subr.mxu0 %v4610
        %5079 = vmatpush1.msra.mxu0 %v4609
        %5080 = vmatprep.subr.mxu0 %v4606
        %5081 = vmatpush1.msra.mxu0 %v4605
        %5082 = vmatprep.subr.mxu0 %v4602
        %5083 = vmatpush1.msra.mxu0 %v4601
        %5084 = vmatprep.subr.mxu0 0.0
        %5085 = vmatpush2.msra.mxu0 0.0
        %5086 = vmatprep.subr.mxu0 0.0
        %5087 = vmatpush2.msra.mxu0 0.0
        %5088 = vmatprep.subr.mxu0 0.0
        %5089 = vmatpush2.msra.mxu0 0.0
        %5090 = vmatprep.subr.mxu0 0.0
        %5091 = vmatpush2.msra.mxu0 0.0
        %5092 = vmatprep.subr.mxu0 0.0
        %5093 = vmatpush2.msra.mxu0 0.0
        %5094 = vmatprep.subr.mxu0 0.0
        %5095 = vmatpush2.msra.mxu0 0.0
        %5096 = vmatprep.subr.mxu0 0.0
        %5097 = vmatpush2.msra.mxu0 0.0
        %5098 = vmatprep.subr.mxu0 0.0
        %5099 = vmatpush2.msra.mxu0 0.0
        %5100 = vmatprep.subr.mxu0 0.0
        %5101 = vmatpush2.msra.mxu0 0.0
        %5102 = vmatprep.subr.mxu0 0.0
        %5103 = vmatpush2.msra.mxu0 0.0
        %5104 = vmatprep.subr.mxu0 0.0
        %5105 = vmatpush2.msra.mxu0 0.0
        %5106 = vmatprep.subr.mxu0 0.0
        %5107 = vmatpush2.msra.mxu0 0.0
        %5108 = vmatprep.subr.mxu0 0.0
        %5109 = vmatpush2.msra.mxu0 0.0
        %5110 = vmatprep.subr.mxu0 0.0
        %5111 = vmatpush2.msra.mxu0 0.0
        %5112 = vmatprep.subr.mxu0 0.0
        %5113 = vmatpush2.msra.mxu0 0.0
        %5114 = vmatprep.subr.mxu0 0.0
        %5115 = vmatpush2.msra.mxu0 0.0
        %5116 = vmatprep.mubr.f32.mxu0 0.0
        %5117 = vmatmul.mubr.f32.gmra.mxu0 %v5050
        %v5118 = vpop.f32.mrf.mxu0
        %v5119 = vadd.f32 0.0, %v5118
        %v5120 = vpop.f32.mrf.mxu0
        %v5121 = vadd.f32 0.0, %v5120
        %5122 = vdwg.mxu0
        %5123 = vmatprep.subr.mxu0 0.0
        %5124 = vmatpush1.msra.mxu0 0.0
        %5125 = vmatprep.subr.mxu0 0.0
        %5126 = vmatpush1.msra.mxu0 0.0
        %5127 = vmatprep.subr.mxu0 0.0
        %5128 = vmatpush1.msra.mxu0 0.0
        %5129 = vmatprep.subr.mxu0 0.0
        %5130 = vmatpush1.msra.mxu0 0.0
        %5131 = vmatprep.subr.mxu0 0.0
        %5132 = vmatpush1.msra.mxu0 0.0
        %5133 = vmatprep.subr.mxu0 0.0
        %5134 = vmatpush1.msra.mxu0 0.0
        %5135 = vmatprep.subr.mxu0 0.0
        %5136 = vmatpush1.msra.mxu0 0.0
        %5137 = vmatprep.subr.mxu0 0.0
        %5138 = vmatpush1.msra.mxu0 0.0
        %5139 = vmatprep.subr.mxu0 0.0
        %5140 = vmatpush1.msra.mxu0 0.0
        %5141 = vmatprep.subr.mxu0 0.0
        %5142 = vmatpush1.msra.mxu0 0.0
        %5143 = vmatprep.subr.mxu0 0.0
        %5144 = vmatpush1.msra.mxu0 0.0
        %5145 = vmatprep.subr.mxu0 0.0
        %5146 = vmatpush1.msra.mxu0 0.0
        %5147 = vmatprep.subr.mxu0 %v4616
        %5148 = vmatpush1.msra.mxu0 %v4615
        %5149 = vmatprep.subr.mxu0 %v4612
        %5150 = vmatpush1.msra.mxu0 %v4611
        %5151 = vmatprep.subr.mxu0 %v4608
        %5152 = vmatpush1.msra.mxu0 %v4607
        %5153 = vmatprep.subr.mxu0 %v4604
        %5154 = vmatpush1.msra.mxu0 %v4603
        %5155 = vmatprep.subr.mxu0 0.0
        %5156 = vmatpush2.msra.mxu0 0.0
        %5157 = vmatprep.subr.mxu0 0.0
        %5158 = vmatpush2.msra.mxu0 0.0
        %5159 = vmatprep.subr.mxu0 0.0
        %5160 = vmatpush2.msra.mxu0 0.0
        %5161 = vmatprep.subr.mxu0 0.0
        %5162 = vmatpush2.msra.mxu0 0.0
        %5163 = vmatprep.subr.mxu0 0.0
        %5164 = vmatpush2.msra.mxu0 0.0
        %5165 = vmatprep.subr.mxu0 0.0
        %5166 = vmatpush2.msra.mxu0 0.0
        %5167 = vmatprep.subr.mxu0 0.0
        %5168 = vmatpush2.msra.mxu0 0.0
        %5169 = vmatprep.subr.mxu0 0.0
        %5170 = vmatpush2.msra.mxu0 0.0
        %5171 = vmatprep.subr.mxu0 0.0
        %5172 = vmatpush2.msra.mxu0 0.0
        %5173 = vmatprep.subr.mxu0 0.0
        %5174 = vmatpush2.msra.mxu0 0.0
        %5175 = vmatprep.subr.mxu0 0.0
        %5176 = vmatpush2.msra.mxu0 0.0
        %5177 = vmatprep.subr.mxu0 0.0
        %5178 = vmatpush2.msra.mxu0 0.0
        %5179 = vmatprep.subr.mxu0 0.0
        %5180 = vmatpush2.msra.mxu0 0.0
        %5181 = vmatprep.subr.mxu0 0.0
        %5182 = vmatpush2.msra.mxu0 0.0
        %5183 = vmatprep.subr.mxu0 0.0
        %5184 = vmatpush2.msra.mxu0 0.0
        %5185 = vmatprep.subr.mxu0 0.0
        %5186 = vmatpush2.msra.mxu0 0.0
        %5187 = vmatprep.mubr.f32.mxu0 0.0
        %5188 = vmatmul.mubr.f32.gmra.mxu0 %v5050
        %v5189 = vpop.f32.mrf.mxu0
        %v5190 = vadd.f32 0.0, %v5189
        %v5191 = vpop.f32.mrf.mxu0
        %v5192 = vadd.f32 0.0, %v5191
        %5193 = vdwg.mxu0
        %v5194 = vlaneseq
        %v5195 = vshrl.u32 %v5194, 7
        %v5196 = vsub.s32 0, %v5195
        %v5197 = vrot.slane %v4974, %v5196
        %v5198 = vlaneseq
        %v5199 = vshrl.u32 %v5198, 7
        %v5200 = vsub.s32 0, %v5199
        %v5201 = vrot.slane %v4976, %v5200
        %v5202 = vlaneseq
        %v5203 = vshrl.u32 %v5202, 7
        %v5204 = vsub.s32 0, %v5203
        %v5205 = vrot.slane %v5045, %v5204
        %v5206 = vlaneseq
        %v5207 = vshrl.u32 %v5206, 7
        %v5208 = vsub.s32 0, %v5207
        %v5209 = vrot.slane %v5047, %v5208
        %v5210 = vsub.f32 %v3742, %v5197
        %v5211 = vsub.f32 %v3744, %v5201
        %v5212 = vsub.f32 %v3871, %v5205
        %v5213 = vsub.f32 %v3873, %v5209
        %v5214 = vsub.f32 %v3746, %v5197
        %v5215 = vsub.f32 %v3748, %v5201
        %v5216 = vsub.f32 %v3875, %v5205
        %v5217 = vsub.f32 %v3877, %v5209
        %v5218 = vlaneseq
        %v5219 = vshrl.u32 %v5218, 7
        %v5220 = vsub.s32 0, %v5219
        %v5221 = vrot.slane %v5119, %v5220
        %v5222 = vlaneseq
        %v5223 = vshrl.u32 %v5222, 7
        %v5224 = vsub.s32 0, %v5223
        %v5225 = vrot.slane %v5121, %v5224
        %v5226 = vlaneseq
        %v5227 = vshrl.u32 %v5226, 7
        %v5228 = vsub.s32 0, %v5227
        %v5229 = vrot.slane %v5190, %v5228
        %v5230 = vlaneseq
        %v5231 = vshrl.u32 %v5230, 7
        %v5232 = vsub.s32 0, %v5231
        %v5233 = vrot.slane %v5192, %v5232
        %v5234 = vmul.f32 %v5210, %v5221
        %v5235 = vmul.f32 %v5211, %v5225
        %v5236 = vmul.f32 %v5212, %v5229
        %v5237 = vmul.f32 %v5213, %v5233
        %v5238 = vmul.f32 %v5214, %v5221
        %v5239 = vmul.f32 %v5215, %v5225
        %v5240 = vmul.f32 %v5216, %v5229
        %v5241 = vmul.f32 %v5217, %v5233
        %v5243 = vlaneseq
        %v5244 = vshrl.u32 %v5243, 7
        %v5245 = vsub.s32 0, %v5244
        %v5246 = vrot.slane %v3879, %v5245
        %v5247 = vlaneseq
        %v5248 = vshrl.u32 %v5247, 7
        %v5249 = vsub.s32 1, %v5248
        %v5250 = vrot.slane %v3879, %v5249
        %v5251 = vlaneseq
        %v5252 = vshrl.u32 %v5251, 7
        %v5253 = vsub.s32 2, %v5252
        %v5254 = vrot.slane %v3879, %v5253
        %v5255 = vlaneseq
        %v5256 = vshrl.u32 %v5255, 7
        %v5257 = vsub.s32 3, %v5256
        %v5258 = vrot.slane %v3879, %v5257
        %v5263 = vmul.f32 %v5234, %v5246
        %v5264 = vmul.f32 %v5235, %v5250
        %v5265 = vmul.f32 %v5236, %v5254
        %v5266 = vmul.f32 %v5237, %v5258
        %v5267 = vmul.f32 %v5238, %v5246
        %v5268 = vmul.f32 %v5239, %v5250
        %v5269 = vmul.f32 %v5240, %v5254
        %v5270 = vmul.f32 %v5241, %v5258
        %v5272 = vlaneseq
        %v5273 = vshrl.u32 %v5272, 7
        %v5274 = vsub.s32 0, %v5273
        %v5275 = vrot.slane %v3880, %v5274
        %v5276 = vlaneseq
        %v5277 = vshrl.u32 %v5276, 7
        %v5278 = vsub.s32 1, %v5277
        %v5279 = vrot.slane %v3880, %v5278
        %v5280 = vlaneseq
        %v5281 = vshrl.u32 %v5280, 7
        %v5282 = vsub.s32 2, %v5281
        %v5283 = vrot.slane %v3880, %v5282
        %v5284 = vlaneseq
        %v5285 = vshrl.u32 %v5284, 7
        %v5286 = vsub.s32 3, %v5285
        %v5287 = vrot.slane %v3880, %v5286
        %v5292 = vadd.f32 %v5263, %v5275
        %v5293 = vadd.f32 %v5264, %v5279
        %v5294 = vadd.f32 %v5265, %v5283
        %v5295 = vadd.f32 %v5266, %v5287
        %v5296 = vadd.f32 %v5267, %v5275
        %v5297 = vadd.f32 %v5268, %v5279
        %v5298 = vadd.f32 %v5269, %v5283
        %v5299 = vadd.f32 %v5270, %v5287
        %v5300 = vmax.f32 %v5292, 0.0
        %v5301 = vmax.f32 %v5293, 0.0
        %v5302 = vmax.f32 %v5294, 0.0
        %v5303 = vmax.f32 %v5295, 0.0
        %v5304 = vmax.f32 %v5296, 0.0
        %v5305 = vmax.f32 %v5297, 0.0
        %v5306 = vmax.f32 %v5298, 0.0
        %v5307 = vmax.f32 %v5299, 0.0
        %5308 = vst [vmem:[%s463] sm:$0xff] %v5300
        %5309 = vst [vmem:[%s463 + $0x8] sm:$0xff] %v5301
        %5310 = vst [vmem:[%s463 + $0x10] sm:$0xff] %v5302
        %5311 = vst [vmem:[%s463 + $0x18] sm:$0xff] %v5303
        %5312 = vst [vmem:[%s463 + $0x20] sm:$0xff] %v5304
        %5313 = vst [vmem:[%s463 + $0x28] sm:$0xff] %v5305
        %5314 = vst [vmem:[%s463 + $0x30] sm:$0xff] %v5306
        %5315 = vst [vmem:[%s463 + $0x38] sm:$0xff] %v5307
        %s5316 = sand.u32 %s315, 1
        %s5317 = scalar_lea.sflag [#allocation6], %s5316
        %s5318 = sand.u32 %s315, 1
        %s5319 = smul.addr %s5318, 64
        %s5320 = scalar_lea.vmem [#allocation9], %s5319
        // Predicated region
        $region81: #{tpu_custom_call.1} parent=71 // pred_check
          %p5321 = pneg %p325
        $region82: #{tpu_custom_call.1} parent=71 // pred_check_branch
          %5323 = sbr.rel (%p5321) target = $region84
        $region83: #{tpu_custom_call.1} parent=71 // pred_region
          %s5325 = ssub.s32 1024, 1024
          %5326 = vsyncadd %s5317, %s5325
          %s5327 = smul.addr %s29, 8
          %s5328 = smul.addr %s5327, 128
          %s5329 = scalar_lea.hbm %s13, %s5328
          %s5330 = sshll.u32 %s5320, 4
          %s5331 = int_to_ptr.vmem [resolvable:$true] %s5330
          %5336 = dma.vmem_to_hbm [thread:$0]  %s5331, 1024, %s5329, %s5317, 512, 512, 32
        $region84: #{tpu_custom_call.1} parent=71 // pred_fallthru
          _
      $region72: #{tpu_custom_call.1} parent=5 // pred_fallthru
        _
      %p5337 = scmp.le.s32.totalorder 2, %s24
      // Predicated region
      $region85: #{tpu_custom_call.1} parent=5 // pred_check
        %p5338 = pneg %p5337
      $region86: #{tpu_custom_call.1} parent=5 // pred_check_branch
        %5340 = sbr.rel (%p5338) target = $region88
      $region87: #{tpu_custom_call.1} parent=5 // pred_region
        %s5341 = ssub.s32 %s24, 2
        // Predicated region
        $region89: #{tpu_custom_call.1} parent=87 // pred_check
          %p5342 = pneg %p331
        $region90: #{tpu_custom_call.1} parent=87 // pred_check_branch
          %5344 = sbr.rel (%p5342) target = $region92
        $region91: #{tpu_custom_call.1} parent=87 // pred_region
          %s5345 = sand.u32 %s316, 1
          %s5346 = scalar_lea.sflag [#allocation6], %s5345
          %s5347 = sand.u32 %s316, 1
          %s5348 = smul.addr %s5347, 64
          %s5349 = scalar_lea.vmem [#allocation9], %s5348
          %5350 = dma.done %s5346, 1024
        $region92: #{tpu_custom_call.1} parent=87 // pred_fallthru
          _
      $region88: #{tpu_custom_call.1} parent=5 // pred_fallthru
        _
    $region6: #{tpu_custom_call.1} parent=1 // loop_footer
      %s28 = sadd.s32 1, %s24
    $region7: #{tpu_custom_call.1} parent=1 // loop_footer_branch
      %23 = sbr.rel target = $region3
    $region8: #{tpu_custom_call.1} parent=1 // loop_exit
      _
    %5351 = vsyncpa [#allocation5], 1
    %s5352 = scalar_lea.sflag [#allocation5], 1
    %5353 = vsyncpa %s5352, 1
    %5354 = vsyncpa [#allocation8], 1
    %5355 = vsyncpa [#allocation6], 1
    %s5356 = scalar_lea.sflag [#allocation6], 1
    %5357 = vsyncpa %s5356, 1

</llo_original>
